<compile_context>
chip_gen: v6e
topology: v6e:2x2x1
jax: 0.10.0
libtpu: 0.0.40
codegen_flags: <defaults>
</compile_context>

<pallas_src>
import functools

import jax
import jax.numpy as jnp
from jax.experimental import pallas as pl
from jax.experimental.pallas import tpu as pltpu


_VMEM_LIMIT_BYTES = 64 * 1024 * 1024   # explicit scoped-VMEM limit (default is 16/32 MiB)
_VMEM_TILE_BUDGET = 40 * 1024 * 1024   # per-grid-step footprint target (headroom for v7x)
_MAX_TT = 8                            # timesteps per grid step (sweepable)
_MAX_UNROLL = 8                        # partial unroll of the timestep loop (sweepable)


def _round_up(x, m):
    return ((x + m - 1) // m) * m


def _choose_tt(T, Bp, Dp, Hp, Op, has_seq_out, has_fc,
               max_tt=_MAX_TT, budget=_VMEM_TILE_BUDGET):
    """Largest divisor of T (<= max_tt) whose per-grid-step VMEM footprint fits."""
    def fits(tt):
        xb = tt * Bp * Dp * 2                              # bf16 input chunk
        hs = tt * Bp * Hp * 2 if has_seq_out else 0        # bf16 hseq chunk
        w = Dp * 3 * Hp * 2 + 3 * Hp * 4 + Hp * 3 * Hp * 2 + Hp * 4
        o = 0
        if has_fc:
            w += Hp * Op * 2 + Op * 4
            o = Bp * Op * 4
        scr = tt * Bp * 3 * Hp * 4 + Bp * Hp * 4           # gx + hidden scratch (f32)
        # Count every pipelined operand double-buffered (conservative).
        # TODO(synk): single-buffer the grid-invariant weight operands via
        # pipeline_mode=pl.Buffered(1) to halve their footprint on v7x's 64 MiB VMEM.
        return 2 * (xb + hs + w + o) + scr <= budget
    best = 1
    for tt in range(2, min(T, max_tt) + 1):
        if T % tt == 0 and fits(tt):
            best = tt
    return best


# ---------------------------------------------------------------------------
# GRU cell math (PyTorch semantics).  gx already holds x@W_ih + (b_ih + b_hh[r,z]);
# only b_hn stays here because it must be multiplied by r.
# ---------------------------------------------------------------------------
def _gru_cell(gx, h, w_hh_bf16, b_hn, Hp):
    # TODO(synk): for small B, hold W_hh in MXU staging registers across the chunk via
    # pltpu.matmul_push_rhs / matmul_acc_lhs / matmul_pop (per-step cost is weight-push
    # bound, not LHS-stream bound).
    gh = jnp.dot(h.astype(jnp.bfloat16), w_hh_bf16,
                 preferred_element_type=jnp.float32)            # (B, 3Hp) f32
    r = jax.nn.sigmoid(gx[:, 0:Hp] + gh[:, 0:Hp])
    z = jax.nn.sigmoid(gx[:, Hp:2 * Hp] + gh[:, Hp:2 * Hp])
    n = jnp.tanh(gx[:, 2 * Hp:3 * Hp] + r * (gh[:, 2 * Hp:3 * Hp] + b_hn))
    return (1.0 - z) * n + z * h


# ---------------------------------------------------------------------------
# Fused layer kernels: per grid step, project a TT-chunk (one big MXU matmul into a
# VMEM scratch, outside the serial loop), then run TT recurrent steps.  Hidden state
# is carried across grid steps in a VMEM scratch (f32).
# ---------------------------------------------------------------------------
def _gru_layer_seq_kernel(x_ref, wih_ref, bgx_ref, whh_ref, bhn_ref,
                          hseq_ref, gx_scr, h_scr, *, unroll):
    c = pl.program_id(0)

    @pl.when(c == 0)
    def _():
        h_scr[...] = jnp.zeros_like(h_scr)          # h0 = zeros (matches torch.zeros)

    TT, Bp, Dp = x_ref.shape
    Hp = whh_ref.shape[0]

    # Hoisted per-chunk input projection (no per-timestep x@W_ih on the critical path).
    gx = jnp.dot(x_ref[...].reshape(TT * Bp, Dp), wih_ref[...],
                 preferred_element_type=jnp.float32) + bgx_ref[...]
    gx_scr[...] = gx.reshape(TT, Bp, 3 * Hp)

    w_hh = whh_ref[...]
    b_hn = jnp.broadcast_to(bhn_ref[...], (Bp, Hp))   # hoisted out of the unrolled loop

    def step(s, h):
        h_new = _gru_cell(gx_scr[s], h, w_hh, b_hn, Hp)
        hseq_ref[s] = h_new.astype(hseq_ref.dtype)    # bf16 inter-layer sequence
        return h_new

    h = jax.lax.fori_loop(0, TT, step, h_scr[...], unroll=unroll)
    h_scr[...] = h


def _gru_layer_last_kernel(x_ref, wih_ref, bgx_ref, whh_ref, bhn_ref,
                           wfc_ref, bfc_ref, out_ref, gx_scr, h_scr, *, unroll):
    c = pl.program_id(0)

    @pl.when(c == 0)
    def _():
        h_scr[...] = jnp.zeros_like(h_scr)

    TT, Bp, Dp = x_ref.shape
    Hp = whh_ref.shape[0]

    gx = jnp.dot(x_ref[...].reshape(TT * Bp, Dp), wih_ref[...],
                 preferred_element_type=jnp.float32) + bgx_ref[...]
    gx_scr[...] = gx.reshape(TT, Bp, 3 * Hp)

    w_hh = whh_ref[...]
    b_hn = jnp.broadcast_to(bhn_ref[...], (Bp, Hp))

    def step(s, h):
        return _gru_cell(gx_scr[s], h, w_hh, b_hn, Hp)

    h = jax.lax.fori_loop(0, TT, step, h_scr[...], unroll=unroll)
    h_scr[...] = h

    # Fused final Linear on the last hidden state (written only on the last chunk).
    @pl.when(c == pl.num_programs(0) - 1)
    def _():
        out_ref[...] = (
            jnp.dot(h.astype(jnp.bfloat16), wfc_ref[...],
                    preferred_element_type=jnp.float32)
            + bfc_ref[...]
        )


# ---------------------------------------------------------------------------
# pallas_call wrappers.
# TODO(synk): add a batch-parallel leading grid axis ("parallel") so v7x's second
# TensorCore runs an independent batch shard of the recurrence.
# ---------------------------------------------------------------------------
def gru_layer_seq(x_seq, lp):
    """x_seq: (T, Bp, Dp) bf16 -> (T, Bp, Hp) bf16 hidden sequence."""
    T, Bp, Dp = x_seq.shape
    Hp = lp["w_hh"].shape[0]
    TT = _choose_tt(T, Bp, Dp, Hp, 0, has_seq_out=True, has_fc=False)
    unroll = min(TT, _MAX_UNROLL)
    return pl.pallas_call(
        functools.partial(_gru_layer_seq_kernel, unroll=unroll),
        out_shape=jax.ShapeDtypeStruct((T, Bp, Hp), jnp.bfloat16),
        grid_spec=pltpu.PrefetchScalarGridSpec(
            num_scalar_prefetch=0,
            grid=(T // TT,),
            in_specs=[
                pl.BlockSpec((TT, Bp, Dp), lambda c: (c, 0, 0)),
                pl.BlockSpec((Dp, 3 * Hp), lambda c: (0, 0)),
                pl.BlockSpec((1, 3 * Hp), lambda c: (0, 0)),
                pl.BlockSpec((Hp, 3 * Hp), lambda c: (0, 0)),
                pl.BlockSpec((1, Hp), lambda c: (0, 0)),
            ],
            out_specs=pl.BlockSpec((TT, Bp, Hp), lambda c: (c, 0, 0)),
            scratch_shapes=[
                pltpu.VMEM((TT, Bp, 3 * Hp), jnp.float32),   # chunk projection gx
                pltpu.VMEM((Bp, Hp), jnp.float32),           # carried hidden state
            ],
        ),
        compiler_params=pltpu.CompilerParams(
            dimension_semantics=("arbitrary",),              # serial recurrence over time
            vmem_limit_bytes=_VMEM_LIMIT_BYTES,
        ),
    )(x_seq, lp["w_ih"], lp["b_gx"], lp["w_hh"], lp["b_hn"])


def gru_layer_last(x_seq, lp, w_fc, b_fc):
    """Top layer: no sequence output; fused FC on the last hidden -> (Bp, Op) f32."""
    T, Bp, Dp = x_seq.shape
    Hp = lp["w_hh"].shape[0]
    Op = w_fc.shape[1]
    TT = _choose_tt(T, Bp, Dp, Hp, Op, has_seq_out=False, has_fc=True)
    unroll = min(TT, _MAX_UNROLL)
    return pl.pallas_call(
        functools.partial(_gru_layer_last_kernel, unroll=unroll),
        out_shape=jax.ShapeDtypeStruct((Bp, Op), jnp.float32),
        grid_spec=pltpu.PrefetchScalarGridSpec(
            num_scalar_prefetch=0,
            grid=(T // TT,),
            in_specs=[
                pl.BlockSpec((TT, Bp, Dp), lambda c: (c, 0, 0)),
                pl.BlockSpec((Dp, 3 * Hp), lambda c: (0, 0)),
                pl.BlockSpec((1, 3 * Hp), lambda c: (0, 0)),
                pl.BlockSpec((Hp, 3 * Hp), lambda c: (0, 0)),
                pl.BlockSpec((1, Hp), lambda c: (0, 0)),
                pl.BlockSpec((Hp, Op), lambda c: (0, 0)),
                pl.BlockSpec((1, Op), lambda c: (0, 0)),
            ],
            out_specs=pl.BlockSpec((Bp, Op), lambda c: (0, 0)),   # resident, last-chunk write
            scratch_shapes=[
                pltpu.VMEM((TT, Bp, 3 * Hp), jnp.float32),
                pltpu.VMEM((Bp, Hp), jnp.float32),
            ],
        ),
        compiler_params=pltpu.CompilerParams(
            dimension_semantics=("arbitrary",),
            vmem_limit_bytes=_VMEM_LIMIT_BYTES,
        ),
    )(x_seq, lp["w_ih"], lp["b_gx"], lp["w_hh"], lp["b_hn"], w_fc, b_fc)


# ---------------------------------------------------------------------------
# Parameters: PyTorch-layout init + packing (transpose / gate-pad / bias fold / bf16).
# ---------------------------------------------------------------------------
def init_params(key, input_dim, hidden_dim, num_layers, output_dim):
    """PyTorch layout: w_ih (3H,Din), w_hh (3H,H), b_* (3H,), fc w (O,H), fc b (O,)."""
    params = {"gru": [], "fc": None}
    bound = 1.0 / (hidden_dim ** 0.5)
    for layer in range(num_layers):
        d_in = input_dim if layer == 0 else hidden_dim
        key, k1, k2, k3, k4 = jax.random.split(key, 5)
        w_ih = jax.random.uniform(k1, (3 * hidden_dim, d_in), jnp.float32, -bound, bound)
        w_hh = jax.random.uniform(k2, (3 * hidden_dim, hidden_dim), jnp.float32, -bound, bound)
        b_ih = jax.random.uniform(k3, (3 * hidden_dim,), jnp.float32, -bound, bound)
        b_hh = jax.random.uniform(k4, (3 * hidden_dim,), jnp.float32, -bound, bound)
        params["gru"].append((w_ih, w_hh, b_ih, b_hh))
    key, k1, k2 = jax.random.split(key, 3)
    w_fc = jax.random.uniform(k1, (output_dim, hidden_dim), jnp.float32, -bound, bound)
    b_fc = jax.random.uniform(k2, (output_dim,), jnp.float32, -bound, bound)
    params["fc"] = (w_fc, b_fc)
    return params


def pack_params(params, hidden_dim, output_dim):
    """Transpose to (Dp,3Hp)/(Hp,3Hp), pad gates to Hp=128k and input dims to the
    padded width of the sequence each layer actually consumes (layer 0: Dp=128k of the
    raw input dim; layer>=1: Hp).  Fold b_ih + b_hh[r,z] into the projection bias and
    cast matmul weights to bf16.  Padded rows/cols are zero, so padded lanes stay zero."""
    H = hidden_dim
    Hp = _round_up(H, 128)
    O = output_dim
    Op = _round_up(O, 128)
    packed = {"gru": []}
    for li, (w_ih, w_hh, b_ih, b_hh) in enumerate(params["gru"]):
        Din = w_ih.shape[1]
        Dp = _round_up(Din, 128) if li == 0 else Hp     # layer>=1 input is the padded seq
        wi = jnp.transpose(w_ih.reshape(3, H, Din), (2, 0, 1))              # (Din, 3, H)
        wi = jnp.pad(wi, ((0, Dp - Din), (0, 0), (0, Hp - H))).reshape(Dp, 3 * Hp)
        wh = jnp.transpose(w_hh.reshape(3, H, H), (2, 0, 1))                # (H, 3, H)
        wh = jnp.pad(wh, ((0, Hp - H), (0, 0), (0, Hp - H))).reshape(Hp, 3 * Hp)
        bi = b_ih.reshape(3, H)
        bh = b_hh.reshape(3, H)
        b_gx = jnp.stack([bi[0] + bh[0], bi[1] + bh[1], bi[2]], axis=0)     # (3, H)
        b_gx = jnp.pad(b_gx, ((0, 0), (0, Hp - H))).reshape(1, 3 * Hp)
        b_hn = jnp.pad(bh[2], (0, Hp - H)).reshape(1, Hp)
        packed["gru"].append({
            "w_ih": wi.astype(jnp.bfloat16),
            "w_hh": wh.astype(jnp.bfloat16),
            "b_gx": b_gx.astype(jnp.float32),
            "b_hn": b_hn.astype(jnp.float32),
        })
    w_fc, b_fc = params["fc"]
    packed["w_fc"] = jnp.pad(w_fc.T, ((0, Hp - H), (0, Op - O))).astype(jnp.bfloat16)
    packed["b_fc"] = jnp.pad(b_fc, (0, Op - O)).reshape(1, Op).astype(jnp.float32)
    return packed


# ---------------------------------------------------------------------------
# Full forward: one fused pallas_call per layer; top layer fuses the Linear.
# ---------------------------------------------------------------------------
@functools.partial(jax.jit, static_argnames=("output_dim",))
def gru_model_forward(packed, x_btd, output_dim):
    B, T, D = x_btd.shape
    Bp = _round_up(B, 8)                         # sublane-aligned batch (zero rows)
    Dp = packed["gru"][0]["w_ih"].shape[0]       # lane-aligned layer-0 feature width
    seq = jnp.transpose(x_btd, (1, 0, 2))        # (T, B, D)
    seq = jnp.pad(seq, ((0, 0), (0, Bp - B), (0, Dp - D))).astype(jnp.bfloat16)
    num_layers = len(packed["gru"])
    out = None
    for li, lp in enumerate(packed["gru"]):
        if li == num_layers - 1:
            out = gru_layer_last(seq, lp, packed["w_fc"], packed["b_fc"])
        else:
            seq = gru_layer_seq(seq, lp)         # (T, Bp, Hp) bf16
    return out[:B, :output_dim]


# ---------------------------------------------------------------------------
# Pure-JAX reference (PyTorch GRU semantics).  Matmul inputs are cast to bf16 to
# emulate the kernel's MXU precision (f32 accumulate, f32 gate math/state).
# ---------------------------------------------------------------------------
def gru_model_reference(params, x_btd, hidden_dim):
    bf = lambda a: a.astype(jnp.bfloat16)
    H = hidden_dim
    x = jnp.transpose(x_btd, (1, 0, 2)).astype(jnp.float32)          # (T, B, D)
    for (w_ih, w_hh, b_ih, b_hh) in params["gru"]:
        T, B, _ = x.shape
        h = jnp.zeros((B, H), jnp.float32)
        outs = []
        for t in range(T):
            gx = jnp.dot(bf(x[t]), bf(w_ih.T), preferred_element_type=jnp.float32) + b_ih
            gh = jnp.dot(bf(h), bf(w_hh.T), preferred_element_type=jnp.float32) + b_hh
            r = jax.nn.sigmoid(gx[:, 0:H] + gh[:, 0:H])
            z = jax.nn.sigmoid(gx[:, H:2 * H] + gh[:, H:2 * H])
            n = jnp.tanh(gx[:, 2 * H:3 * H] + r * gh[:, 2 * H:3 * H])
            h = (1.0 - z) * n + z * h
            outs.append(h)
        x = jnp.stack(outs, axis=0)
    w_fc, b_fc = params["fc"]
    return jnp.dot(bf(x[-1]), bf(w_fc.T), preferred_element_type=jnp.float32) + b_fc


if __name__ == "__main__":
    B, T, D = 2, 16, 4                     # T=16 with _MAX_TT=8 -> 2 chunks per layer
    hidden_dim, num_layers, output_dim = 32, 2, 4

    key = jax.random.PRNGKey(0)
    key, kx, kp = jax.random.split(key, 3)
    x = jax.random.normal(kx, (B, T, D), jnp.float32)
    params = init_params(kp, D, hidden_dim, num_layers, output_dim)
    packed = pack_params(params, hidden_dim, output_dim)

    out = gru_model_forward(packed, x, output_dim)
    out = jax.block_until_ready(out)

    ref = gru_model_reference(params, x, hidden_dim)
    assert out.shape == (B, output_dim)
    # Tolerance covers bf16 matmul-input rounding (reference emulates the same).
    assert jnp.allclose(out, ref, atol=2e-2, rtol=2e-2), (out, ref)

    print("KERNEL_OK")
</pallas_src>

<mosaic_0001>
module attributes {stable_mosaic.version = 11 : i64} {
  func.func @_gru_layer_seq_kernel(%arg0: i32, %arg1: memref<8x8x128xbf16, #tpu.memory_space<vmem>>, %arg2: memref<128x384xbf16, #tpu.memory_space<vmem>>, %arg3: memref<1x384xf32, #tpu.memory_space<vmem>>, %arg4: memref<128x384xbf16, #tpu.memory_space<vmem>>, %arg5: memref<1x128xf32, #tpu.memory_space<vmem>>, %arg6: memref<8x8x128xbf16, #tpu.memory_space<vmem>>, %arg7: memref<8x8x384xf32, #tpu.memory_space<vmem>>, %arg8: memref<8x128xf32, #tpu.memory_space<vmem>>) attributes {dimension_semantics = [#tpu.dimension_semantics<arbitrary>], iteration_bounds = array<i64: 2>, scalar_prefetch = 0 : i64, scratch_operands = 2 : i64, tpu.core_type = #tpu.core_type<tc>, window_params = [{transform_indices = @transform_0, window_bounds = array<i64: 8, 8, 128>}, {pipeline_mode = #tpu.pipeline_mode<synchronous>, transform_indices = @transform_1, window_bounds = array<i64: 128, 384>}, {pipeline_mode = #tpu.pipeline_mode<synchronous>, transform_indices = @transform_2, window_bounds = array<i64: 1, 384>}, {pipeline_mode = #tpu.pipeline_mode<synchronous>, transform_indices = @transform_3, window_bounds = array<i64: 128, 384>}, {pipeline_mode = #tpu.pipeline_mode<synchronous>, transform_indices = @transform_4, window_bounds = array<i64: 1, 128>}, {transform_indices = @transform_5, window_bounds = array<i64: 8, 8, 128>}]} {
    %c0_i32 = arith.constant 0 : i32
    %0 = arith.cmpi eq, %arg0, %c0_i32 : i32
    %1 = arith.extui %0 : i1 to i32
    %c0_i32_0 = arith.constant 0 : i32
    %2 = arith.cmpi ne, %1, %c0_i32_0 : i32
    scf.if %2 {
      %cst_83 = arith.constant 0.000000e+00 : f32
      %314 = vector.broadcast %cst_83 : f32 to vector<8x128xf32>
      %c0_84 = arith.constant 0 : index
      %c0_85 = arith.constant 0 : index
      %315 = vector.load %arg8[%c0_84, %c0_85] : memref<8x128xf32, #tpu.memory_space<vmem>>, vector<8x128xf32>
      tpu.vector_store %arg8[%c0_84, %c0_85], %314 {strides = array<i32>} : memref<8x128xf32, #tpu.memory_space<vmem>>, vector<8x128xf32>,
    } else {
    }
    %c0 = arith.constant 0 : index
    %c0_1 = arith.constant 0 : index
    %c0_2 = arith.constant 0 : index
    %3 = vector.load %arg1[%c0, %c0_1, %c0_2] : memref<8x8x128xbf16, #tpu.memory_space<vmem>>, vector<8x8x128xbf16>
    %4 = vector.shape_cast %3 : vector<8x8x128xbf16> to vector<64x128xbf16>
    %c0_3 = arith.constant 0 : index
    %c0_4 = arith.constant 0 : index
    %5 = vector.load %arg2[%c0_3, %c0_4] : memref<128x384xbf16, #tpu.memory_space<vmem>>, vector<128x384xbf16>
    %cst = arith.constant dense<0.000000e+00> : vector<64x384xf32>
    %6 = tpu.matmul %4, %5, %cst {dimension_numbers = #tpu.dot_dimension_numbers<[1], [0], [0], [1], [0, 0, 1, 1], [], []>} : vector<64x128xbf16>, vector<128x384xbf16>, vector<64x384xf32> -> vector<64x384xf32>
    %c0_5 = arith.constant 0 : index
    %c0_6 = arith.constant 0 : index
    %7 = vector.load %arg3[%c0_5, %c0_6] : memref<1x384xf32, #tpu.memory_space<vmem>>, vector<1x384xf32>
    %8 = vector.broadcast %7 : vector<1x384xf32> to vector<64x384xf32>
    %9 = arith.addf %6, %8 : vector<64x384xf32>
    %10 = vector.shape_cast %9 : vector<64x384xf32> to vector<8x8x384xf32>
    %c0_7 = arith.constant 0 : index
    %c0_8 = arith.constant 0 : index
    %c0_9 = arith.constant 0 : index
    %11 = vector.load %arg7[%c0_7, %c0_8, %c0_9] : memref<8x8x384xf32, #tpu.memory_space<vmem>>, vector<8x8x384xf32>
    tpu.vector_store %arg7[%c0_7, %c0_8, %c0_9], %10 {strides = array<i32>} : memref<8x8x384xf32, #tpu.memory_space<vmem>>, vector<8x8x384xf32>,
    %c0_10 = arith.constant 0 : index
    %c0_11 = arith.constant 0 : index
    %12 = vector.load %arg4[%c0_10, %c0_11] : memref<128x384xbf16, #tpu.memory_space<vmem>>, vector<128x384xbf16>
    %c0_12 = arith.constant 0 : index
    %c0_13 = arith.constant 0 : index
    %13 = vector.load %arg5[%c0_12, %c0_13] : memref<1x128xf32, #tpu.memory_space<vmem>>, vector<1x128xf32>
    %14 = vector.shape_cast %13 : vector<1x128xf32> to vector<1x128xf32>
    %15 = vector.broadcast %14 : vector<1x128xf32> to vector<8x128xf32>
    %c0_14 = arith.constant 0 : index
    %c0_15 = arith.constant 0 : index
    %16 = vector.load %arg8[%c0_14, %c0_15] : memref<8x128xf32, #tpu.memory_space<vmem>>, vector<8x128xf32>
    %c0_i32_16 = arith.constant 0 : i32
    %17 = arith.index_cast %c0_i32_16 : i32 to index
    %c0_17 = arith.constant 0 : index
    %c0_18 = arith.constant 0 : index
    %18 = vector.load %arg7[%17, %c0_17, %c0_18] : memref<8x8x384xf32, #tpu.memory_space<vmem>>, vector<1x8x384xf32>
    %19 = vector.shape_cast %18 : vector<1x8x384xf32> to vector<8x384xf32>
    %20 = arith.truncf %16 : vector<8x128xf32> to vector<8x128xbf16>
    %cst_19 = arith.constant dense<0.000000e+00> : vector<8x384xf32>
    %21 = tpu.matmul %20, %12, %cst_19 {dimension_numbers = #tpu.dot_dimension_numbers<[1], [0], [0], [1], [0, 0, 1, 1], [], []>} : vector<8x128xbf16>, vector<128x384xbf16>, vector<8x384xf32> -> vector<8x384xf32>
    %22 = vector.extract_strided_slice %19 {offsets = [0, 0], sizes = [8, 128], strides = [1, 1]} : vector<8x384xf32> to vector<8x128xf32>
    %23 = vector.extract_strided_slice %21 {offsets = [0, 0], sizes = [8, 128], strides = [1, 1]} : vector<8x384xf32> to vector<8x128xf32>
    %24 = arith.addf %22, %23 : vector<8x128xf32>
    %25 = arith.negf %24 : vector<8x128xf32>
    %26 = math.exp %25 : vector<8x128xf32>
    %cst_20 = arith.constant 1.000000e+00 : f32
    %27 = vector.broadcast %cst_20 : f32 to vector<8x128xf32>
    %28 = arith.addf %27, %26 : vector<8x128xf32>
    %29 = arith.divf %27, %28 : vector<8x128xf32>
    %30 = vector.extract_strided_slice %19 {offsets = [0, 128], sizes = [8, 128], strides = [1, 1]} : vector<8x384xf32> to vector<8x128xf32>
    %31 = vector.extract_strided_slice %21 {offsets = [0, 128], sizes = [8, 128], strides = [1, 1]} : vector<8x384xf32> to vector<8x128xf32>
    %32 = arith.addf %30, %31 : vector<8x128xf32>
    %33 = arith.negf %32 : vector<8x128xf32>
    %34 = math.exp %33 : vector<8x128xf32>
    %cst_21 = arith.constant 1.000000e+00 : f32
    %35 = vector.broadcast %cst_21 : f32 to vector<8x128xf32>
    %36 = arith.addf %35, %34 : vector<8x128xf32>
    %37 = arith.divf %35, %36 : vector<8x128xf32>
    %38 = vector.extract_strided_slice %19 {offsets = [0, 256], sizes = [8, 128], strides = [1, 1]} : vector<8x384xf32> to vector<8x128xf32>
    %39 = vector.extract_strided_slice %21 {offsets = [0, 256], sizes = [8, 128], strides = [1, 1]} : vector<8x384xf32> to vector<8x128xf32>
    %40 = arith.addf %39, %15 : vector<8x128xf32>
    %41 = arith.mulf %29, %40 : vector<8x128xf32>
    %42 = arith.addf %38, %41 : vector<8x128xf32>
    %43 = math.tanh %42 : vector<8x128xf32>
    %cst_22 = arith.constant 1.000000e+00 : f32
    %44 = vector.broadcast %cst_22 : f32 to vector<8x128xf32>
    %45 = arith.subf %44, %37 : vector<8x128xf32>
    %46 = arith.mulf %45, %43 : vector<8x128xf32>
    %47 = arith.mulf %37, %16 : vector<8x128xf32>
    %48 = arith.addf %46, %47 : vector<8x128xf32>
    %49 = arith.truncf %48 : vector<8x128xf32> to vector<8x128xbf16>
    %50 = arith.index_cast %c0_i32_16 : i32 to index
    %c0_23 = arith.constant 0 : index
    %c0_24 = arith.constant 0 : index
    %51 = vector.load %arg6[%50, %c0_23, %c0_24] : memref<8x8x128xbf16, #tpu.memory_space<vmem>>, vector<1x8x128xbf16>
    %52 = vector.shape_cast %51 : vector<1x8x128xbf16> to vector<8x128xbf16>
    %53 = vector.shape_cast %49 : vector<8x128xbf16> to vector<1x8x128xbf16>
    tpu.vector_store %arg6[%50, %c0_23, %c0_24], %53 {strides = array<i32>} : memref<8x8x128xbf16, #tpu.memory_space<vmem>>, vector<1x8x128xbf16>,
    %c1_i32 = arith.constant 1 : i32
    %54 = arith.index_cast %c1_i32 : i32 to index
    %c0_25 = arith.constant 0 : index
    %c0_26 = arith.constant 0 : index
    %55 = vector.load %arg7[%54, %c0_25, %c0_26] : memref<8x8x384xf32, #tpu.memory_space<vmem>>, vector<1x8x384xf32>
    %56 = vector.shape_cast %55 : vector<1x8x384xf32> to vector<8x384xf32>
    %57 = arith.truncf %48 : vector<8x128xf32> to vector<8x128xbf16>
    %cst_27 = arith.constant dense<0.000000e+00> : vector<8x384xf32>
    %58 = tpu.matmul %57, %12, %cst_27 {dimension_numbers = #tpu.dot_dimension_numbers<[1], [0], [0], [1], [0, 0, 1, 1], [], []>} : vector<8x128xbf16>, vector<128x384xbf16>, vector<8x384xf32> -> vector<8x384xf32>
    %59 = vector.extract_strided_slice %56 {offsets = [0, 0], sizes = [8, 128], strides = [1, 1]} : vector<8x384xf32> to vector<8x128xf32>
    %60 = vector.extract_strided_slice %58 {offsets = [0, 0], sizes = [8, 128], strides = [1, 1]} : vector<8x384xf32> to vector<8x128xf32>
    %61 = arith.addf %59, %60 : vector<8x128xf32>
    %62 = arith.negf %61 : vector<8x128xf32>
    %63 = math.exp %62 : vector<8x128xf32>
    %cst_28 = arith.constant 1.000000e+00 : f32
    %64 = vector.broadcast %cst_28 : f32 to vector<8x128xf32>
    %65 = arith.addf %64, %63 : vector<8x128xf32>
    %66 = arith.divf %64, %65 : vector<8x128xf32>
    %67 = vector.extract_strided_slice %56 {offsets = [0, 128], sizes = [8, 128], strides = [1, 1]} : vector<8x384xf32> to vector<8x128xf32>
    %68 = vector.extract_strided_slice %58 {offsets = [0, 128], sizes = [8, 128], strides = [1, 1]} : vector<8x384xf32> to vector<8x128xf32>
    %69 = arith.addf %67, %68 : vector<8x128xf32>
    %70 = arith.negf %69 : vector<8x128xf32>
    %71 = math.exp %70 : vector<8x128xf32>
    %cst_29 = arith.constant 1.000000e+00 : f32
    %72 = vector.broadcast %cst_29 : f32 to vector<8x128xf32>
    %73 = arith.addf %72, %71 : vector<8x128xf32>
    %74 = arith.divf %72, %73 : vector<8x128xf32>
    %75 = vector.extract_strided_slice %56 {offsets = [0, 256], sizes = [8, 128], strides = [1, 1]} : vector<8x384xf32> to vector<8x128xf32>
    %76 = vector.extract_strided_slice %58 {offsets = [0, 256], sizes = [8, 128], strides = [1, 1]} : vector<8x384xf32> to vector<8x128xf32>
    %77 = arith.addf %76, %15 : vector<8x128xf32>
    %78 = arith.mulf %66, %77 : vector<8x128xf32>
    %79 = arith.addf %75, %78 : vector<8x128xf32>
    %80 = math.tanh %79 : vector<8x128xf32>
    %cst_30 = arith.constant 1.000000e+00 : f32
    %81 = vector.broadcast %cst_30 : f32 to vector<8x128xf32>
    %82 = arith.subf %81, %74 : vector<8x128xf32>
    %83 = arith.mulf %82, %80 : vector<8x128xf32>
    %84 = arith.mulf %74, %48 : vector<8x128xf32>
    %85 = arith.addf %83, %84 : vector<8x128xf32>
    %86 = arith.truncf %85 : vector<8x128xf32> to vector<8x128xbf16>
    %87 = arith.index_cast %c1_i32 : i32 to index
    %c0_31 = arith.constant 0 : index
    %c0_32 = arith.constant 0 : index
    %88 = vector.load %arg6[%87, %c0_31, %c0_32] : memref<8x8x128xbf16, #tpu.memory_space<vmem>>, vector<1x8x128xbf16>
    %89 = vector.shape_cast %88 : vector<1x8x128xbf16> to vector<8x128xbf16>
    %90 = vector.shape_cast %86 : vector<8x128xbf16> to vector<1x8x128xbf16>
    tpu.vector_store %arg6[%87, %c0_31, %c0_32], %90 {strides = array<i32>} : memref<8x8x128xbf16, #tpu.memory_space<vmem>>, vector<1x8x128xbf16>,
    %c2_i32 = arith.constant 2 : i32
    %91 = arith.index_cast %c2_i32 : i32 to index
    %c0_33 = arith.constant 0 : index
    %c0_34 = arith.constant 0 : index
    %92 = vector.load %arg7[%91, %c0_33, %c0_34] : memref<8x8x384xf32, #tpu.memory_space<vmem>>, vector<1x8x384xf32>
    %93 = vector.shape_cast %92 : vector<1x8x384xf32> to vector<8x384xf32>
    %94 = arith.truncf %85 : vector<8x128xf32> to vector<8x128xbf16>
    %cst_35 = arith.constant dense<0.000000e+00> : vector<8x384xf32>
    %95 = tpu.matmul %94, %12, %cst_35 {dimension_numbers = #tpu.dot_dimension_numbers<[1], [0], [0], [1], [0, 0, 1, 1], [], []>} : vector<8x128xbf16>, vector<128x384xbf16>, vector<8x384xf32> -> vector<8x384xf32>
    %96 = vector.extract_strided_slice %93 {offsets = [0, 0], sizes = [8, 128], strides = [1, 1]} : vector<8x384xf32> to vector<8x128xf32>
    %97 = vector.extract_strided_slice %95 {offsets = [0, 0], sizes = [8, 128], strides = [1, 1]} : vector<8x384xf32> to vector<8x128xf32>
    %98 = arith.addf %96, %97 : vector<8x128xf32>
    %99 = arith.negf %98 : vector<8x128xf32>
    %100 = math.exp %99 : vector<8x128xf32>
    %cst_36 = arith.constant 1.000000e+00 : f32
    %101 = vector.broadcast %cst_36 : f32 to vector<8x128xf32>
    %102 = arith.addf %101, %100 : vector<8x128xf32>
    %103 = arith.divf %101, %102 : vector<8x128xf32>
    %104 = vector.extract_strided_slice %93 {offsets = [0, 128], sizes = [8, 128], strides = [1, 1]} : vector<8x384xf32> to vector<8x128xf32>
    %105 = vector.extract_strided_slice %95 {offsets = [0, 128], sizes = [8, 128], strides = [1, 1]} : vector<8x384xf32> to vector<8x128xf32>
    %106 = arith.addf %104, %105 : vector<8x128xf32>
    %107 = arith.negf %106 : vector<8x128xf32>
    %108 = math.exp %107 : vector<8x128xf32>
    %cst_37 = arith.constant 1.000000e+00 : f32
    %109 = vector.broadcast %cst_37 : f32 to vector<8x128xf32>
    %110 = arith.addf %109, %108 : vector<8x128xf32>
    %111 = arith.divf %109, %110 : vector<8x128xf32>
    %112 = vector.extract_strided_slice %93 {offsets = [0, 256], sizes = [8, 128], strides = [1, 1]} : vector<8x384xf32> to vector<8x128xf32>
    %113 = vector.extract_strided_slice %95 {offsets = [0, 256], sizes = [8, 128], strides = [1, 1]} : vector<8x384xf32> to vector<8x128xf32>
    %114 = arith.addf %113, %15 : vector<8x128xf32>
    %115 = arith.mulf %103, %114 : vector<8x128xf32>
    %116 = arith.addf %112, %115 : vector<8x128xf32>
    %117 = math.tanh %116 : vector<8x128xf32>
    %cst_38 = arith.constant 1.000000e+00 : f32
    %118 = vector.broadcast %cst_38 : f32 to vector<8x128xf32>
    %119 = arith.subf %118, %111 : vector<8x128xf32>
    %120 = arith.mulf %119, %117 : vector<8x128xf32>
    %121 = arith.mulf %111, %85 : vector<8x128xf32>
    %122 = arith.addf %120, %121 : vector<8x128xf32>
    %123 = arith.truncf %122 : vector<8x128xf32> to vector<8x128xbf16>
    %124 = arith.index_cast %c2_i32 : i32 to index
    %c0_39 = arith.constant 0 : index
    %c0_40 = arith.constant 0 : index
    %125 = vector.load %arg6[%124, %c0_39, %c0_40] : memref<8x8x128xbf16, #tpu.memory_space<vmem>>, vector<1x8x128xbf16>
    %126 = vector.shape_cast %125 : vector<1x8x128xbf16> to vector<8x128xbf16>
    %127 = vector.shape_cast %123 : vector<8x128xbf16> to vector<1x8x128xbf16>
    tpu.vector_store %arg6[%124, %c0_39, %c0_40], %127 {strides = array<i32>} : memref<8x8x128xbf16, #tpu.memory_space<vmem>>, vector<1x8x128xbf16>,
    %c3_i32 = arith.constant 3 : i32
    %128 = arith.index_cast %c3_i32 : i32 to index
    %c0_41 = arith.constant 0 : index
    %c0_42 = arith.constant 0 : index
    %129 = vector.load %arg7[%128, %c0_41, %c0_42] : memref<8x8x384xf32, #tpu.memory_space<vmem>>, vector<1x8x384xf32>
    %130 = vector.shape_cast %129 : vector<1x8x384xf32> to vector<8x384xf32>
    %131 = arith.truncf %122 : vector<8x128xf32> to vector<8x128xbf16>
    %cst_43 = arith.constant dense<0.000000e+00> : vector<8x384xf32>
    %132 = tpu.matmul %131, %12, %cst_43 {dimension_numbers = #tpu.dot_dimension_numbers<[1], [0], [0], [1], [0, 0, 1, 1], [], []>} : vector<8x128xbf16>, vector<128x384xbf16>, vector<8x384xf32> -> vector<8x384xf32>
    %133 = vector.extract_strided_slice %130 {offsets = [0, 0], sizes = [8, 128], strides = [1, 1]} : vector<8x384xf32> to vector<8x128xf32>
    %134 = vector.extract_strided_slice %132 {offsets = [0, 0], sizes = [8, 128], strides = [1, 1]} : vector<8x384xf32> to vector<8x128xf32>
    %135 = arith.addf %133, %134 : vector<8x128xf32>
    %136 = arith.negf %135 : vector<8x128xf32>
    %137 = math.exp %136 : vector<8x128xf32>
    %cst_44 = arith.constant 1.000000e+00 : f32
    %138 = vector.broadcast %cst_44 : f32 to vector<8x128xf32>
    %139 = arith.addf %138, %137 : vector<8x128xf32>
    %140 = arith.divf %138, %139 : vector<8x128xf32>
    %141 = vector.extract_strided_slice %130 {offsets = [0, 128], sizes = [8, 128], strides = [1, 1]} : vector<8x384xf32> to vector<8x128xf32>
    %142 = vector.extract_strided_slice %132 {offsets = [0, 128], sizes = [8, 128], strides = [1, 1]} : vector<8x384xf32> to vector<8x128xf32>
    %143 = arith.addf %141, %142 : vector<8x128xf32>
    %144 = arith.negf %143 : vector<8x128xf32>
    %145 = math.exp %144 : vector<8x128xf32>
    %cst_45 = arith.constant 1.000000e+00 : f32
    %146 = vector.broadcast %cst_45 : f32 to vector<8x128xf32>
    %147 = arith.addf %146, %145 : vector<8x128xf32>
    %148 = arith.divf %146, %147 : vector<8x128xf32>
    %149 = vector.extract_strided_slice %130 {offsets = [0, 256], sizes = [8, 128], strides = [1, 1]} : vector<8x384xf32> to vector<8x128xf32>
    %150 = vector.extract_strided_slice %132 {offsets = [0, 256], sizes = [8, 128], strides = [1, 1]} : vector<8x384xf32> to vector<8x128xf32>
    %151 = arith.addf %150, %15 : vector<8x128xf32>
    %152 = arith.mulf %140, %151 : vector<8x128xf32>
    %153 = arith.addf %149, %152 : vector<8x128xf32>
    %154 = math.tanh %153 : vector<8x128xf32>
    %cst_46 = arith.constant 1.000000e+00 : f32
    %155 = vector.broadcast %cst_46 : f32 to vector<8x128xf32>
    %156 = arith.subf %155, %148 : vector<8x128xf32>
    %157 = arith.mulf %156, %154 : vector<8x128xf32>
    %158 = arith.mulf %148, %122 : vector<8x128xf32>
    %159 = arith.addf %157, %158 : vector<8x128xf32>
    %160 = arith.truncf %159 : vector<8x128xf32> to vector<8x128xbf16>
    %161 = arith.index_cast %c3_i32 : i32 to index
    %c0_47 = arith.constant 0 : index
    %c0_48 = arith.constant 0 : index
    %162 = vector.load %arg6[%161, %c0_47, %c0_48] : memref<8x8x128xbf16, #tpu.memory_space<vmem>>, vector<1x8x128xbf16>
    %163 = vector.shape_cast %162 : vector<1x8x128xbf16> to vector<8x128xbf16>
    %164 = vector.shape_cast %160 : vector<8x128xbf16> to vector<1x8x128xbf16>
    tpu.vector_store %arg6[%161, %c0_47, %c0_48], %164 {strides = array<i32>} : memref<8x8x128xbf16, #tpu.memory_space<vmem>>, vector<1x8x128xbf16>,
    %c4_i32 = arith.constant 4 : i32
    %165 = arith.index_cast %c4_i32 : i32 to index
    %c0_49 = arith.constant 0 : index
    %c0_50 = arith.constant 0 : index
    %166 = vector.load %arg7[%165, %c0_49, %c0_50] : memref<8x8x384xf32, #tpu.memory_space<vmem>>, vector<1x8x384xf32>
    %167 = vector.shape_cast %166 : vector<1x8x384xf32> to vector<8x384xf32>
    %168 = arith.truncf %159 : vector<8x128xf32> to vector<8x128xbf16>
    %cst_51 = arith.constant dense<0.000000e+00> : vector<8x384xf32>
    %169 = tpu.matmul %168, %12, %cst_51 {dimension_numbers = #tpu.dot_dimension_numbers<[1], [0], [0], [1], [0, 0, 1, 1], [], []>} : vector<8x128xbf16>, vector<128x384xbf16>, vector<8x384xf32> -> vector<8x384xf32>
    %170 = vector.extract_strided_slice %167 {offsets = [0, 0], sizes = [8, 128], strides = [1, 1]} : vector<8x384xf32> to vector<8x128xf32>
    %171 = vector.extract_strided_slice %169 {offsets = [0, 0], sizes = [8, 128], strides = [1, 1]} : vector<8x384xf32> to vector<8x128xf32>
    %172 = arith.addf %170, %171 : vector<8x128xf32>
    %173 = arith.negf %172 : vector<8x128xf32>
    %174 = math.exp %173 : vector<8x128xf32>
    %cst_52 = arith.constant 1.000000e+00 : f32
    %175 = vector.broadcast %cst_52 : f32 to vector<8x128xf32>
    %176 = arith.addf %175, %174 : vector<8x128xf32>
    %177 = arith.divf %175, %176 : vector<8x128xf32>
    %178 = vector.extract_strided_slice %167 {offsets = [0, 128], sizes = [8, 128], strides = [1, 1]} : vector<8x384xf32> to vector<8x128xf32>
    %179 = vector.extract_strided_slice %169 {offsets = [0, 128], sizes = [8, 128], strides = [1, 1]} : vector<8x384xf32> to vector<8x128xf32>
    %180 = arith.addf %178, %179 : vector<8x128xf32>
    %181 = arith.negf %180 : vector<8x128xf32>
    %182 = math.exp %181 : vector<8x128xf32>
    %cst_53 = arith.constant 1.000000e+00 : f32
    %183 = vector.broadcast %cst_53 : f32 to vector<8x128xf32>
    %184 = arith.addf %183, %182 : vector<8x128xf32>
    %185 = arith.divf %183, %184 : vector<8x128xf32>
    %186 = vector.extract_strided_slice %167 {offsets = [0, 256], sizes = [8, 128], strides = [1, 1]} : vector<8x384xf32> to vector<8x128xf32>
    %187 = vector.extract_strided_slice %169 {offsets = [0, 256], sizes = [8, 128], strides = [1, 1]} : vector<8x384xf32> to vector<8x128xf32>
    %188 = arith.addf %187, %15 : vector<8x128xf32>
    %189 = arith.mulf %177, %188 : vector<8x128xf32>
    %190 = arith.addf %186, %189 : vector<8x128xf32>
    %191 = math.tanh %190 : vector<8x128xf32>
    %cst_54 = arith.constant 1.000000e+00 : f32
    %192 = vector.broadcast %cst_54 : f32 to vector<8x128xf32>
    %193 = arith.subf %192, %185 : vector<8x128xf32>
    %194 = arith.mulf %193, %191 : vector<8x128xf32>
    %195 = arith.mulf %185, %159 : vector<8x128xf32>
    %196 = arith.addf %194, %195 : vector<8x128xf32>
    %197 = arith.truncf %196 : vector<8x128xf32> to vector<8x128xbf16>
    %198 = arith.index_cast %c4_i32 : i32 to index
    %c0_55 = arith.constant 0 : index
    %c0_56 = arith.constant 0 : index
    %199 = vector.load %arg6[%198, %c0_55, %c0_56] : memref<8x8x128xbf16, #tpu.memory_space<vmem>>, vector<1x8x128xbf16>
    %200 = vector.shape_cast %199 : vector<1x8x128xbf16> to vector<8x128xbf16>
    %201 = vector.shape_cast %197 : vector<8x128xbf16> to vector<1x8x128xbf16>
    tpu.vector_store %arg6[%198, %c0_55, %c0_56], %201 {strides = array<i32>} : memref<8x8x128xbf16, #tpu.memory_space<vmem>>, vector<1x8x128xbf16>,
    %c5_i32 = arith.constant 5 : i32
    %202 = arith.index_cast %c5_i32 : i32 to index
    %c0_57 = arith.constant 0 : index
    %c0_58 = arith.constant 0 : index
    %203 = vector.load %arg7[%202, %c0_57, %c0_58] : memref<8x8x384xf32, #tpu.memory_space<vmem>>, vector<1x8x384xf32>
    %204 = vector.shape_cast %203 : vector<1x8x384xf32> to vector<8x384xf32>
    %205 = arith.truncf %196 : vector<8x128xf32> to vector<8x128xbf16>
    %cst_59 = arith.constant dense<0.000000e+00> : vector<8x384xf32>
    %206 = tpu.matmul %205, %12, %cst_59 {dimension_numbers = #tpu.dot_dimension_numbers<[1], [0], [0], [1], [0, 0, 1, 1], [], []>} : vector<8x128xbf16>, vector<128x384xbf16>, vector<8x384xf32> -> vector<8x384xf32>
    %207 = vector.extract_strided_slice %204 {offsets = [0, 0], sizes = [8, 128], strides = [1, 1]} : vector<8x384xf32> to vector<8x128xf32>
    %208 = vector.extract_strided_slice %206 {offsets = [0, 0], sizes = [8, 128], strides = [1, 1]} : vector<8x384xf32> to vector<8x128xf32>
    %209 = arith.addf %207, %208 : vector<8x128xf32>
    %210 = arith.negf %209 : vector<8x128xf32>
    %211 = math.exp %210 : vector<8x128xf32>
    %cst_60 = arith.constant 1.000000e+00 : f32
    %212 = vector.broadcast %cst_60 : f32 to vector<8x128xf32>
    %213 = arith.addf %212, %211 : vector<8x128xf32>
    %214 = arith.divf %212, %213 : vector<8x128xf32>
    %215 = vector.extract_strided_slice %204 {offsets = [0, 128], sizes = [8, 128], strides = [1, 1]} : vector<8x384xf32> to vector<8x128xf32>
    %216 = vector.extract_strided_slice %206 {offsets = [0, 128], sizes = [8, 128], strides = [1, 1]} : vector<8x384xf32> to vector<8x128xf32>
    %217 = arith.addf %215, %216 : vector<8x128xf32>
    %218 = arith.negf %217 : vector<8x128xf32>
    %219 = math.exp %218 : vector<8x128xf32>
    %cst_61 = arith.constant 1.000000e+00 : f32
    %220 = vector.broadcast %cst_61 : f32 to vector<8x128xf32>
    %221 = arith.addf %220, %219 : vector<8x128xf32>
    %222 = arith.divf %220, %221 : vector<8x128xf32>
    %223 = vector.extract_strided_slice %204 {offsets = [0, 256], sizes = [8, 128], strides = [1, 1]} : vector<8x384xf32> to vector<8x128xf32>
    %224 = vector.extract_strided_slice %206 {offsets = [0, 256], sizes = [8, 128], strides = [1, 1]} : vector<8x384xf32> to vector<8x128xf32>
    %225 = arith.addf %224, %15 : vector<8x128xf32>
    %226 = arith.mulf %214, %225 : vector<8x128xf32>
    %227 = arith.addf %223, %226 : vector<8x128xf32>
    %228 = math.tanh %227 : vector<8x128xf32>
    %cst_62 = arith.constant 1.000000e+00 : f32
    %229 = vector.broadcast %cst_62 : f32 to vector<8x128xf32>
    %230 = arith.subf %229, %222 : vector<8x128xf32>
    %231 = arith.mulf %230, %228 : vector<8x128xf32>
    %232 = arith.mulf %222, %196 : vector<8x128xf32>
    %233 = arith.addf %231, %232 : vector<8x128xf32>
    %234 = arith.truncf %233 : vector<8x128xf32> to vector<8x128xbf16>
    %235 = arith.index_cast %c5_i32 : i32 to index
    %c0_63 = arith.constant 0 : index
    %c0_64 = arith.constant 0 : index
    %236 = vector.load %arg6[%235, %c0_63, %c0_64] : memref<8x8x128xbf16, #tpu.memory_space<vmem>>, vector<1x8x128xbf16>
    %237 = vector.shape_cast %236 : vector<1x8x128xbf16> to vector<8x128xbf16>
    %238 = vector.shape_cast %234 : vector<8x128xbf16> to vector<1x8x128xbf16>
    tpu.vector_store %arg6[%235, %c0_63, %c0_64], %238 {strides = array<i32>} : memref<8x8x128xbf16, #tpu.memory_space<vmem>>, vector<1x8x128xbf16>,
    %c6_i32 = arith.constant 6 : i32
    %239 = arith.index_cast %c6_i32 : i32 to index
    %c0_65 = arith.constant 0 : index
    %c0_66 = arith.constant 0 : index
    %240 = vector.load %arg7[%239, %c0_65, %c0_66] : memref<8x8x384xf32, #tpu.memory_space<vmem>>, vector<1x8x384xf32>
    %241 = vector.shape_cast %240 : vector<1x8x384xf32> to vector<8x384xf32>
    %242 = arith.truncf %233 : vector<8x128xf32> to vector<8x128xbf16>
    %cst_67 = arith.constant dense<0.000000e+00> : vector<8x384xf32>
    %243 = tpu.matmul %242, %12, %cst_67 {dimension_numbers = #tpu.dot_dimension_numbers<[1], [0], [0], [1], [0, 0, 1, 1], [], []>} : vector<8x128xbf16>, vector<128x384xbf16>, vector<8x384xf32> -> vector<8x384xf32>
    %244 = vector.extract_strided_slice %241 {offsets = [0, 0], sizes = [8, 128], strides = [1, 1]} : vector<8x384xf32> to vector<8x128xf32>
    %245 = vector.extract_strided_slice %243 {offsets = [0, 0], sizes = [8, 128], strides = [1, 1]} : vector<8x384xf32> to vector<8x128xf32>
    %246 = arith.addf %244, %245 : vector<8x128xf32>
    %247 = arith.negf %246 : vector<8x128xf32>
    %248 = math.exp %247 : vector<8x128xf32>
    %cst_68 = arith.constant 1.000000e+00 : f32
    %249 = vector.broadcast %cst_68 : f32 to vector<8x128xf32>
    %250 = arith.addf %249, %248 : vector<8x128xf32>
    %251 = arith.divf %249, %250 : vector<8x128xf32>
    %252 = vector.extract_strided_slice %241 {offsets = [0, 128], sizes = [8, 128], strides = [1, 1]} : vector<8x384xf32> to vector<8x128xf32>
    %253 = vector.extract_strided_slice %243 {offsets = [0, 128], sizes = [8, 128], strides = [1, 1]} : vector<8x384xf32> to vector<8x128xf32>
    %254 = arith.addf %252, %253 : vector<8x128xf32>
    %255 = arith.negf %254 : vector<8x128xf32>
    %256 = math.exp %255 : vector<8x128xf32>
    %cst_69 = arith.constant 1.000000e+00 : f32
    %257 = vector.broadcast %cst_69 : f32 to vector<8x128xf32>
    %258 = arith.addf %257, %256 : vector<8x128xf32>
    %259 = arith.divf %257, %258 : vector<8x128xf32>
    %260 = vector.extract_strided_slice %241 {offsets = [0, 256], sizes = [8, 128], strides = [1, 1]} : vector<8x384xf32> to vector<8x128xf32>
    %261 = vector.extract_strided_slice %243 {offsets = [0, 256], sizes = [8, 128], strides = [1, 1]} : vector<8x384xf32> to vector<8x128xf32>
    %262 = arith.addf %261, %15 : vector<8x128xf32>
    %263 = arith.mulf %251, %262 : vector<8x128xf32>
    %264 = arith.addf %260, %263 : vector<8x128xf32>
    %265 = math.tanh %264 : vector<8x128xf32>
    %cst_70 = arith.constant 1.000000e+00 : f32
    %266 = vector.broadcast %cst_70 : f32 to vector<8x128xf32>
    %267 = arith.subf %266, %259 : vector<8x128xf32>
    %268 = arith.mulf %267, %265 : vector<8x128xf32>
    %269 = arith.mulf %259, %233 : vector<8x128xf32>
    %270 = arith.addf %268, %269 : vector<8x128xf32>
    %271 = arith.truncf %270 : vector<8x128xf32> to vector<8x128xbf16>
    %272 = arith.index_cast %c6_i32 : i32 to index
    %c0_71 = arith.constant 0 : index
    %c0_72 = arith.constant 0 : index
    %273 = vector.load %arg6[%272, %c0_71, %c0_72] : memref<8x8x128xbf16, #tpu.memory_space<vmem>>, vector<1x8x128xbf16>
    %274 = vector.shape_cast %273 : vector<1x8x128xbf16> to vector<8x128xbf16>
    %275 = vector.shape_cast %271 : vector<8x128xbf16> to vector<1x8x128xbf16>
    tpu.vector_store %arg6[%272, %c0_71, %c0_72], %275 {strides = array<i32>} : memref<8x8x128xbf16, #tpu.memory_space<vmem>>, vector<1x8x128xbf16>,
    %c7_i32 = arith.constant 7 : i32
    %276 = arith.index_cast %c7_i32 : i32 to index
    %c0_73 = arith.constant 0 : index
    %c0_74 = arith.constant 0 : index
    %277 = vector.load %arg7[%276, %c0_73, %c0_74] : memref<8x8x384xf32, #tpu.memory_space<vmem>>, vector<1x8x384xf32>
    %278 = vector.shape_cast %277 : vector<1x8x384xf32> to vector<8x384xf32>
    %279 = arith.truncf %270 : vector<8x128xf32> to vector<8x128xbf16>
    %cst_75 = arith.constant dense<0.000000e+00> : vector<8x384xf32>
    %280 = tpu.matmul %279, %12, %cst_75 {dimension_numbers = #tpu.dot_dimension_numbers<[1], [0], [0], [1], [0, 0, 1, 1], [], []>} : vector<8x128xbf16>, vector<128x384xbf16>, vector<8x384xf32> -> vector<8x384xf32>
    %281 = vector.extract_strided_slice %278 {offsets = [0, 0], sizes = [8, 128], strides = [1, 1]} : vector<8x384xf32> to vector<8x128xf32>
    %282 = vector.extract_strided_slice %280 {offsets = [0, 0], sizes = [8, 128], strides = [1, 1]} : vector<8x384xf32> to vector<8x128xf32>
    %283 = arith.addf %281, %282 : vector<8x128xf32>
    %284 = arith.negf %283 : vector<8x128xf32>
    %285 = math.exp %284 : vector<8x128xf32>
    %cst_76 = arith.constant 1.000000e+00 : f32
    %286 = vector.broadcast %cst_76 : f32 to vector<8x128xf32>
    %287 = arith.addf %286, %285 : vector<8x128xf32>
    %288 = arith.divf %286, %287 : vector<8x128xf32>
    %289 = vector.extract_strided_slice %278 {offsets = [0, 128], sizes = [8, 128], strides = [1, 1]} : vector<8x384xf32> to vector<8x128xf32>
    %290 = vector.extract_strided_slice %280 {offsets = [0, 128], sizes = [8, 128], strides = [1, 1]} : vector<8x384xf32> to vector<8x128xf32>
    %291 = arith.addf %289, %290 : vector<8x128xf32>
    %292 = arith.negf %291 : vector<8x128xf32>
    %293 = math.exp %292 : vector<8x128xf32>
    %cst_77 = arith.constant 1.000000e+00 : f32
    %294 = vector.broadcast %cst_77 : f32 to vector<8x128xf32>
    %295 = arith.addf %294, %293 : vector<8x128xf32>
    %296 = arith.divf %294, %295 : vector<8x128xf32>
    %297 = vector.extract_strided_slice %278 {offsets = [0, 256], sizes = [8, 128], strides = [1, 1]} : vector<8x384xf32> to vector<8x128xf32>
    %298 = vector.extract_strided_slice %280 {offsets = [0, 256], sizes = [8, 128], strides = [1, 1]} : vector<8x384xf32> to vector<8x128xf32>
    %299 = arith.addf %298, %15 : vector<8x128xf32>
    %300 = arith.mulf %288, %299 : vector<8x128xf32>
    %301 = arith.addf %297, %300 : vector<8x128xf32>
    %302 = math.tanh %301 : vector<8x128xf32>
    %cst_78 = arith.constant 1.000000e+00 : f32
    %303 = vector.broadcast %cst_78 : f32 to vector<8x128xf32>
    %304 = arith.subf %303, %296 : vector<8x128xf32>
    %305 = arith.mulf %304, %302 : vector<8x128xf32>
    %306 = arith.mulf %296, %270 : vector<8x128xf32>
    %307 = arith.addf %305, %306 : vector<8x128xf32>
    %308 = arith.truncf %307 : vector<8x128xf32> to vector<8x128xbf16>
    %309 = arith.index_cast %c7_i32 : i32 to index
    %c0_79 = arith.constant 0 : index
    %c0_80 = arith.constant 0 : index
    %310 = vector.load %arg6[%309, %c0_79, %c0_80] : memref<8x8x128xbf16, #tpu.memory_space<vmem>>, vector<1x8x128xbf16>
    %311 = vector.shape_cast %310 : vector<1x8x128xbf16> to vector<8x128xbf16>
    %312 = vector.shape_cast %308 : vector<8x128xbf16> to vector<1x8x128xbf16>
    tpu.vector_store %arg6[%309, %c0_79, %c0_80], %312 {strides = array<i32>} : memref<8x8x128xbf16, #tpu.memory_space<vmem>>, vector<1x8x128xbf16>,
    %c8_i32 = arith.constant 8 : i32
    %c0_81 = arith.constant 0 : index
    %c0_82 = arith.constant 0 : index
    %313 = vector.load %arg8[%c0_81, %c0_82] : memref<8x128xf32, #tpu.memory_space<vmem>>, vector<8x128xf32>
    tpu.vector_store %arg8[%c0_81, %c0_82], %307 {strides = array<i32>} : memref<8x128xf32, #tpu.memory_space<vmem>>, vector<8x128xf32>,
    return
  }
  func.func @transform_0(%arg0: i32) -> (i32, i32, i32) {
    %c0_i32 = arith.constant 0 : i32
    %c0_i32_0 = arith.constant 0 : i32
    %c0_i32_1 = arith.constant 0 : i32
    return %arg0, %c0_i32, %c0_i32_0 : i32, i32, i32
  }
  func.func @transform_1(%arg0: i32) -> (i32, i32) {
    %c0_i32 = arith.constant 0 : i32
    %c0_i32_0 = arith.constant 0 : i32
    %c0_i32_1 = arith.constant 0 : i32
    return %c0_i32, %c0_i32_0 : i32, i32
  }
  func.func @transform_2(%arg0: i32) -> (i32, i32) {
    %c0_i32 = arith.constant 0 : i32
    %c0_i32_0 = arith.constant 0 : i32
    %c0_i32_1 = arith.constant 0 : i32
    return %c0_i32, %c0_i32_0 : i32, i32
  }
  func.func @transform_3(%arg0: i32) -> (i32, i32) {
    %c0_i32 = arith.constant 0 : i32
    %c0_i32_0 = arith.constant 0 : i32
    %c0_i32_1 = arith.constant 0 : i32
    return %c0_i32, %c0_i32_0 : i32, i32
  }
  func.func @transform_4(%arg0: i32) -> (i32, i32) {
    %c0_i32 = arith.constant 0 : i32
    %c0_i32_0 = arith.constant 0 : i32
    %c0_i32_1 = arith.constant 0 : i32
    return %c0_i32, %c0_i32_0 : i32, i32
  }
  func.func @transform_5(%arg0: i32) -> (i32, i32, i32) {
    %c0_i32 = arith.constant 0 : i32
    %c0_i32_0 = arith.constant 0 : i32
    %c0_i32_1 = arith.constant 0 : i32
    return %arg0, %c0_i32, %c0_i32_0 : i32, i32, i32
  }
}

module attributes {stable_mosaic.version = 11 : i64} {
  func.func @_gru_layer_last_kernel(%arg0: i32, %arg1: memref<8x8x128xbf16, #tpu.memory_space<vmem>>, %arg2: memref<128x384xbf16, #tpu.memory_space<vmem>>, %arg3: memref<1x384xf32, #tpu.memory_space<vmem>>, %arg4: memref<128x384xbf16, #tpu.memory_space<vmem>>, %arg5: memref<1x128xf32, #tpu.memory_space<vmem>>, %arg6: memref<128x128xbf16, #tpu.memory_space<vmem>>, %arg7: memref<1x128xf32, #tpu.memory_space<vmem>>, %arg8: memref<8x128xf32, #tpu.memory_space<vmem>>, %arg9: memref<8x8x384xf32, #tpu.memory_space<vmem>>, %arg10: memref<8x128xf32, #tpu.memory_space<vmem>>) attributes {dimension_semantics = [#tpu.dimension_semantics<arbitrary>], iteration_bounds = array<i64: 2>, scalar_prefetch = 0 : i64, scratch_operands = 2 : i64, tpu.core_type = #tpu.core_type<tc>, window_params = [{transform_indices = @transform_0, window_bounds = array<i64: 8, 8, 128>}, {pipeline_mode = #tpu.pipeline_mode<synchronous>, transform_indices = @transform_1, window_bounds = array<i64: 128, 384>}, {pipeline_mode = #tpu.pipeline_mode<synchronous>, transform_indices = @transform_2, window_bounds = array<i64: 1, 384>}, {pipeline_mode = #tpu.pipeline_mode<synchronous>, transform_indices = @transform_3, window_bounds = array<i64: 128, 384>}, {pipeline_mode = #tpu.pipeline_mode<synchronous>, transform_indices = @transform_4, window_bounds = array<i64: 1, 128>}, {pipeline_mode = #tpu.pipeline_mode<synchronous>, transform_indices = @transform_5, window_bounds = array<i64: 128, 128>}, {pipeline_mode = #tpu.pipeline_mode<synchronous>, transform_indices = @transform_6, window_bounds = array<i64: 1, 128>}, {pipeline_mode = #tpu.pipeline_mode<synchronous>, transform_indices = @transform_7, window_bounds = array<i64: 8, 128>}]} {
    %c0_i32 = arith.constant 0 : i32
    %0 = arith.cmpi eq, %arg0, %c0_i32 : i32
    %1 = arith.extui %0 : i1 to i32
    %c0_i32_0 = arith.constant 0 : i32
    %2 = arith.cmpi ne, %1, %c0_i32_0 : i32
    scf.if %2 {
      %cst_69 = arith.constant 0.000000e+00 : f32
      %277 = vector.broadcast %cst_69 : f32 to vector<8x128xf32>
      %c0_70 = arith.constant 0 : index
      %c0_71 = arith.constant 0 : index
      %278 = vector.load %arg10[%c0_70, %c0_71] : memref<8x128xf32, #tpu.memory_space<vmem>>, vector<8x128xf32>
      tpu.vector_store %arg10[%c0_70, %c0_71], %277 {strides = array<i32>} : memref<8x128xf32, #tpu.memory_space<vmem>>, vector<8x128xf32>,
    } else {
    }
    %c0 = arith.constant 0 : index
    %c0_1 = arith.constant 0 : index
    %c0_2 = arith.constant 0 : index
    %3 = vector.load %arg1[%c0, %c0_1, %c0_2] : memref<8x8x128xbf16, #tpu.memory_space<vmem>>, vector<8x8x128xbf16>
    %4 = vector.shape_cast %3 : vector<8x8x128xbf16> to vector<64x128xbf16>
    %c0_3 = arith.constant 0 : index
    %c0_4 = arith.constant 0 : index
    %5 = vector.load %arg2[%c0_3, %c0_4] : memref<128x384xbf16, #tpu.memory_space<vmem>>, vector<128x384xbf16>
    %cst = arith.constant dense<0.000000e+00> : vector<64x384xf32>
    %6 = tpu.matmul %4, %5, %cst {dimension_numbers = #tpu.dot_dimension_numbers<[1], [0], [0], [1], [0, 0, 1, 1], [], []>} : vector<64x128xbf16>, vector<128x384xbf16>, vector<64x384xf32> -> vector<64x384xf32>
    %c0_5 = arith.constant 0 : index
    %c0_6 = arith.constant 0 : index
    %7 = vector.load %arg3[%c0_5, %c0_6] : memref<1x384xf32, #tpu.memory_space<vmem>>, vector<1x384xf32>
    %8 = vector.broadcast %7 : vector<1x384xf32> to vector<64x384xf32>
    %9 = arith.addf %6, %8 : vector<64x384xf32>
    %10 = vector.shape_cast %9 : vector<64x384xf32> to vector<8x8x384xf32>
    %c0_7 = arith.constant 0 : index
    %c0_8 = arith.constant 0 : index
    %c0_9 = arith.constant 0 : index
    %11 = vector.load %arg9[%c0_7, %c0_8, %c0_9] : memref<8x8x384xf32, #tpu.memory_space<vmem>>, vector<8x8x384xf32>
    tpu.vector_store %arg9[%c0_7, %c0_8, %c0_9], %10 {strides = array<i32>} : memref<8x8x384xf32, #tpu.memory_space<vmem>>, vector<8x8x384xf32>,
    %c0_10 = arith.constant 0 : index
    %c0_11 = arith.constant 0 : index
    %12 = vector.load %arg4[%c0_10, %c0_11] : memref<128x384xbf16, #tpu.memory_space<vmem>>, vector<128x384xbf16>
    %c0_12 = arith.constant 0 : index
    %c0_13 = arith.constant 0 : index
    %13 = vector.load %arg5[%c0_12, %c0_13] : memref<1x128xf32, #tpu.memory_space<vmem>>, vector<1x128xf32>
    %14 = vector.shape_cast %13 : vector<1x128xf32> to vector<1x128xf32>
    %15 = vector.broadcast %14 : vector<1x128xf32> to vector<8x128xf32>
    %c0_14 = arith.constant 0 : index
    %c0_15 = arith.constant 0 : index
    %16 = vector.load %arg10[%c0_14, %c0_15] : memref<8x128xf32, #tpu.memory_space<vmem>>, vector<8x128xf32>
    %c0_i32_16 = arith.constant 0 : i32
    %17 = arith.index_cast %c0_i32_16 : i32 to index
    %c0_17 = arith.constant 0 : index
    %c0_18 = arith.constant 0 : index
    %18 = vector.load %arg9[%17, %c0_17, %c0_18] : memref<8x8x384xf32, #tpu.memory_space<vmem>>, vector<1x8x384xf32>
    %19 = vector.shape_cast %18 : vector<1x8x384xf32> to vector<8x384xf32>
    %20 = arith.truncf %16 : vector<8x128xf32> to vector<8x128xbf16>
    %cst_19 = arith.constant dense<0.000000e+00> : vector<8x384xf32>
    %21 = tpu.matmul %20, %12, %cst_19 {dimension_numbers = #tpu.dot_dimension_numbers<[1], [0], [0], [1], [0, 0, 1, 1], [], []>} : vector<8x128xbf16>, vector<128x384xbf16>, vector<8x384xf32> -> vector<8x384xf32>
    %22 = vector.extract_strided_slice %19 {offsets = [0, 0], sizes = [8, 128], strides = [1, 1]} : vector<8x384xf32> to vector<8x128xf32>
    %23 = vector.extract_strided_slice %21 {offsets = [0, 0], sizes = [8, 128], strides = [1, 1]} : vector<8x384xf32> to vector<8x128xf32>
    %24 = arith.addf %22, %23 : vector<8x128xf32>
    %25 = arith.negf %24 : vector<8x128xf32>
    %26 = math.exp %25 : vector<8x128xf32>
    %cst_20 = arith.constant 1.000000e+00 : f32
    %27 = vector.broadcast %cst_20 : f32 to vector<8x128xf32>
    %28 = arith.addf %27, %26 : vector<8x128xf32>
    %29 = arith.divf %27, %28 : vector<8x128xf32>
    %30 = vector.extract_strided_slice %19 {offsets = [0, 128], sizes = [8, 128], strides = [1, 1]} : vector<8x384xf32> to vector<8x128xf32>
    %31 = vector.extract_strided_slice %21 {offsets = [0, 128], sizes = [8, 128], strides = [1, 1]} : vector<8x384xf32> to vector<8x128xf32>
    %32 = arith.addf %30, %31 : vector<8x128xf32>
    %33 = arith.negf %32 : vector<8x128xf32>
    %34 = math.exp %33 : vector<8x128xf32>
    %cst_21 = arith.constant 1.000000e+00 : f32
    %35 = vector.broadcast %cst_21 : f32 to vector<8x128xf32>
    %36 = arith.addf %35, %34 : vector<8x128xf32>
    %37 = arith.divf %35, %36 : vector<8x128xf32>
    %38 = vector.extract_strided_slice %19 {offsets = [0, 256], sizes = [8, 128], strides = [1, 1]} : vector<8x384xf32> to vector<8x128xf32>
    %39 = vector.extract_strided_slice %21 {offsets = [0, 256], sizes = [8, 128], strides = [1, 1]} : vector<8x384xf32> to vector<8x128xf32>
    %40 = arith.addf %39, %15 : vector<8x128xf32>
    %41 = arith.mulf %29, %40 : vector<8x128xf32>
    %42 = arith.addf %38, %41 : vector<8x128xf32>
    %43 = math.tanh %42 : vector<8x128xf32>
    %cst_22 = arith.constant 1.000000e+00 : f32
    %44 = vector.broadcast %cst_22 : f32 to vector<8x128xf32>
    %45 = arith.subf %44, %37 : vector<8x128xf32>
    %46 = arith.mulf %45, %43 : vector<8x128xf32>
    %47 = arith.mulf %37, %16 : vector<8x128xf32>
    %48 = arith.addf %46, %47 : vector<8x128xf32>
    %c1_i32 = arith.constant 1 : i32
    %49 = arith.index_cast %c1_i32 : i32 to index
    %c0_23 = arith.constant 0 : index
    %c0_24 = arith.constant 0 : index
    %50 = vector.load %arg9[%49, %c0_23, %c0_24] : memref<8x8x384xf32, #tpu.memory_space<vmem>>, vector<1x8x384xf32>
    %51 = vector.shape_cast %50 : vector<1x8x384xf32> to vector<8x384xf32>
    %52 = arith.truncf %48 : vector<8x128xf32> to vector<8x128xbf16>
    %cst_25 = arith.constant dense<0.000000e+00> : vector<8x384xf32>
    %53 = tpu.matmul %52, %12, %cst_25 {dimension_numbers = #tpu.dot_dimension_numbers<[1], [0], [0], [1], [0, 0, 1, 1], [], []>} : vector<8x128xbf16>, vector<128x384xbf16>, vector<8x384xf32> -> vector<8x384xf32>
    %54 = vector.extract_strided_slice %51 {offsets = [0, 0], sizes = [8, 128], strides = [1, 1]} : vector<8x384xf32> to vector<8x128xf32>
    %55 = vector.extract_strided_slice %53 {offsets = [0, 0], sizes = [8, 128], strides = [1, 1]} : vector<8x384xf32> to vector<8x128xf32>
    %56 = arith.addf %54, %55 : vector<8x128xf32>
    %57 = arith.negf %56 : vector<8x128xf32>
    %58 = math.exp %57 : vector<8x128xf32>
    %cst_26 = arith.constant 1.000000e+00 : f32
    %59 = vector.broadcast %cst_26 : f32 to vector<8x128xf32>
    %60 = arith.addf %59, %58 : vector<8x128xf32>
    %61 = arith.divf %59, %60 : vector<8x128xf32>
    %62 = vector.extract_strided_slice %51 {offsets = [0, 128], sizes = [8, 128], strides = [1, 1]} : vector<8x384xf32> to vector<8x128xf32>
    %63 = vector.extract_strided_slice %53 {offsets = [0, 128], sizes = [8, 128], strides = [1, 1]} : vector<8x384xf32> to vector<8x128xf32>
    %64 = arith.addf %62, %63 : vector<8x128xf32>
    %65 = arith.negf %64 : vector<8x128xf32>
    %66 = math.exp %65 : vector<8x128xf32>
    %cst_27 = arith.constant 1.000000e+00 : f32
    %67 = vector.broadcast %cst_27 : f32 to vector<8x128xf32>
    %68 = arith.addf %67, %66 : vector<8x128xf32>
    %69 = arith.divf %67, %68 : vector<8x128xf32>
    %70 = vector.extract_strided_slice %51 {offsets = [0, 256], sizes = [8, 128], strides = [1, 1]} : vector<8x384xf32> to vector<8x128xf32>
    %71 = vector.extract_strided_slice %53 {offsets = [0, 256], sizes = [8, 128], strides = [1, 1]} : vector<8x384xf32> to vector<8x128xf32>
    %72 = arith.addf %71, %15 : vector<8x128xf32>
    %73 = arith.mulf %61, %72 : vector<8x128xf32>
    %74 = arith.addf %70, %73 : vector<8x128xf32>
    %75 = math.tanh %74 : vector<8x128xf32>
    %cst_28 = arith.constant 1.000000e+00 : f32
    %76 = vector.broadcast %cst_28 : f32 to vector<8x128xf32>
    %77 = arith.subf %76, %69 : vector<8x128xf32>
    %78 = arith.mulf %77, %75 : vector<8x128xf32>
    %79 = arith.mulf %69, %48 : vector<8x128xf32>
    %80 = arith.addf %78, %79 : vector<8x128xf32>
    %c2_i32 = arith.constant 2 : i32
    %81 = arith.index_cast %c2_i32 : i32 to index
    %c0_29 = arith.constant 0 : index
    %c0_30 = arith.constant 0 : index
    %82 = vector.load %arg9[%81, %c0_29, %c0_30] : memref<8x8x384xf32, #tpu.memory_space<vmem>>, vector<1x8x384xf32>
    %83 = vector.shape_cast %82 : vector<1x8x384xf32> to vector<8x384xf32>
    %84 = arith.truncf %80 : vector<8x128xf32> to vector<8x128xbf16>
    %cst_31 = arith.constant dense<0.000000e+00> : vector<8x384xf32>
    %85 = tpu.matmul %84, %12, %cst_31 {dimension_numbers = #tpu.dot_dimension_numbers<[1], [0], [0], [1], [0, 0, 1, 1], [], []>} : vector<8x128xbf16>, vector<128x384xbf16>, vector<8x384xf32> -> vector<8x384xf32>
    %86 = vector.extract_strided_slice %83 {offsets = [0, 0], sizes = [8, 128], strides = [1, 1]} : vector<8x384xf32> to vector<8x128xf32>
    %87 = vector.extract_strided_slice %85 {offsets = [0, 0], sizes = [8, 128], strides = [1, 1]} : vector<8x384xf32> to vector<8x128xf32>
    %88 = arith.addf %86, %87 : vector<8x128xf32>
    %89 = arith.negf %88 : vector<8x128xf32>
    %90 = math.exp %89 : vector<8x128xf32>
    %cst_32 = arith.constant 1.000000e+00 : f32
    %91 = vector.broadcast %cst_32 : f32 to vector<8x128xf32>
    %92 = arith.addf %91, %90 : vector<8x128xf32>
    %93 = arith.divf %91, %92 : vector<8x128xf32>
    %94 = vector.extract_strided_slice %83 {offsets = [0, 128], sizes = [8, 128], strides = [1, 1]} : vector<8x384xf32> to vector<8x128xf32>
    %95 = vector.extract_strided_slice %85 {offsets = [0, 128], sizes = [8, 128], strides = [1, 1]} : vector<8x384xf32> to vector<8x128xf32>
    %96 = arith.addf %94, %95 : vector<8x128xf32>
    %97 = arith.negf %96 : vector<8x128xf32>
    %98 = math.exp %97 : vector<8x128xf32>
    %cst_33 = arith.constant 1.000000e+00 : f32
    %99 = vector.broadcast %cst_33 : f32 to vector<8x128xf32>
    %100 = arith.addf %99, %98 : vector<8x128xf32>
    %101 = arith.divf %99, %100 : vector<8x128xf32>
    %102 = vector.extract_strided_slice %83 {offsets = [0, 256], sizes = [8, 128], strides = [1, 1]} : vector<8x384xf32> to vector<8x128xf32>
    %103 = vector.extract_strided_slice %85 {offsets = [0, 256], sizes = [8, 128], strides = [1, 1]} : vector<8x384xf32> to vector<8x128xf32>
    %104 = arith.addf %103, %15 : vector<8x128xf32>
    %105 = arith.mulf %93, %104 : vector<8x128xf32>
    %106 = arith.addf %102, %105 : vector<8x128xf32>
    %107 = math.tanh %106 : vector<8x128xf32>
    %cst_34 = arith.constant 1.000000e+00 : f32
    %108 = vector.broadcast %cst_34 : f32 to vector<8x128xf32>
    %109 = arith.subf %108, %101 : vector<8x128xf32>
    %110 = arith.mulf %109, %107 : vector<8x128xf32>
    %111 = arith.mulf %101, %80 : vector<8x128xf32>
    %112 = arith.addf %110, %111 : vector<8x128xf32>
    %c3_i32 = arith.constant 3 : i32
    %113 = arith.index_cast %c3_i32 : i32 to index
    %c0_35 = arith.constant 0 : index
    %c0_36 = arith.constant 0 : index
    %114 = vector.load %arg9[%113, %c0_35, %c0_36] : memref<8x8x384xf32, #tpu.memory_space<vmem>>, vector<1x8x384xf32>
    %115 = vector.shape_cast %114 : vector<1x8x384xf32> to vector<8x384xf32>
    %116 = arith.truncf %112 : vector<8x128xf32> to vector<8x128xbf16>
    %cst_37 = arith.constant dense<0.000000e+00> : vector<8x384xf32>
    %117 = tpu.matmul %116, %12, %cst_37 {dimension_numbers = #tpu.dot_dimension_numbers<[1], [0], [0], [1], [0, 0, 1, 1], [], []>} : vector<8x128xbf16>, vector<128x384xbf16>, vector<8x384xf32> -> vector<8x384xf32>
    %118 = vector.extract_strided_slice %115 {offsets = [0, 0], sizes = [8, 128], strides = [1, 1]} : vector<8x384xf32> to vector<8x128xf32>
    %119 = vector.extract_strided_slice %117 {offsets = [0, 0], sizes = [8, 128], strides = [1, 1]} : vector<8x384xf32> to vector<8x128xf32>
    %120 = arith.addf %118, %119 : vector<8x128xf32>
    %121 = arith.negf %120 : vector<8x128xf32>
    %122 = math.exp %121 : vector<8x128xf32>
    %cst_38 = arith.constant 1.000000e+00 : f32
    %123 = vector.broadcast %cst_38 : f32 to vector<8x128xf32>
    %124 = arith.addf %123, %122 : vector<8x128xf32>
    %125 = arith.divf %123, %124 : vector<8x128xf32>
    %126 = vector.extract_strided_slice %115 {offsets = [0, 128], sizes = [8, 128], strides = [1, 1]} : vector<8x384xf32> to vector<8x128xf32>
    %127 = vector.extract_strided_slice %117 {offsets = [0, 128], sizes = [8, 128], strides = [1, 1]} : vector<8x384xf32> to vector<8x128xf32>
    %128 = arith.addf %126, %127 : vector<8x128xf32>
    %129 = arith.negf %128 : vector<8x128xf32>
    %130 = math.exp %129 : vector<8x128xf32>
    %cst_39 = arith.constant 1.000000e+00 : f32
    %131 = vector.broadcast %cst_39 : f32 to vector<8x128xf32>
    %132 = arith.addf %131, %130 : vector<8x128xf32>
    %133 = arith.divf %131, %132 : vector<8x128xf32>
    %134 = vector.extract_strided_slice %115 {offsets = [0, 256], sizes = [8, 128], strides = [1, 1]} : vector<8x384xf32> to vector<8x128xf32>
    %135 = vector.extract_strided_slice %117 {offsets = [0, 256], sizes = [8, 128], strides = [1, 1]} : vector<8x384xf32> to vector<8x128xf32>
    %136 = arith.addf %135, %15 : vector<8x128xf32>
    %137 = arith.mulf %125, %136 : vector<8x128xf32>
    %138 = arith.addf %134, %137 : vector<8x128xf32>
    %139 = math.tanh %138 : vector<8x128xf32>
    %cst_40 = arith.constant 1.000000e+00 : f32
    %140 = vector.broadcast %cst_40 : f32 to vector<8x128xf32>
    %141 = arith.subf %140, %133 : vector<8x128xf32>
    %142 = arith.mulf %141, %139 : vector<8x128xf32>
    %143 = arith.mulf %133, %112 : vector<8x128xf32>
    %144 = arith.addf %142, %143 : vector<8x128xf32>
    %c4_i32 = arith.constant 4 : i32
    %145 = arith.index_cast %c4_i32 : i32 to index
    %c0_41 = arith.constant 0 : index
    %c0_42 = arith.constant 0 : index
    %146 = vector.load %arg9[%145, %c0_41, %c0_42] : memref<8x8x384xf32, #tpu.memory_space<vmem>>, vector<1x8x384xf32>
    %147 = vector.shape_cast %146 : vector<1x8x384xf32> to vector<8x384xf32>
    %148 = arith.truncf %144 : vector<8x128xf32> to vector<8x128xbf16>
    %cst_43 = arith.constant dense<0.000000e+00> : vector<8x384xf32>
    %149 = tpu.matmul %148, %12, %cst_43 {dimension_numbers = #tpu.dot_dimension_numbers<[1], [0], [0], [1], [0, 0, 1, 1], [], []>} : vector<8x128xbf16>, vector<128x384xbf16>, vector<8x384xf32> -> vector<8x384xf32>
    %150 = vector.extract_strided_slice %147 {offsets = [0, 0], sizes = [8, 128], strides = [1, 1]} : vector<8x384xf32> to vector<8x128xf32>
    %151 = vector.extract_strided_slice %149 {offsets = [0, 0], sizes = [8, 128], strides = [1, 1]} : vector<8x384xf32> to vector<8x128xf32>
    %152 = arith.addf %150, %151 : vector<8x128xf32>
    %153 = arith.negf %152 : vector<8x128xf32>
    %154 = math.exp %153 : vector<8x128xf32>
    %cst_44 = arith.constant 1.000000e+00 : f32
    %155 = vector.broadcast %cst_44 : f32 to vector<8x128xf32>
    %156 = arith.addf %155, %154 : vector<8x128xf32>
    %157 = arith.divf %155, %156 : vector<8x128xf32>
    %158 = vector.extract_strided_slice %147 {offsets = [0, 128], sizes = [8, 128], strides = [1, 1]} : vector<8x384xf32> to vector<8x128xf32>
    %159 = vector.extract_strided_slice %149 {offsets = [0, 128], sizes = [8, 128], strides = [1, 1]} : vector<8x384xf32> to vector<8x128xf32>
    %160 = arith.addf %158, %159 : vector<8x128xf32>
    %161 = arith.negf %160 : vector<8x128xf32>
    %162 = math.exp %161 : vector<8x128xf32>
    %cst_45 = arith.constant 1.000000e+00 : f32
    %163 = vector.broadcast %cst_45 : f32 to vector<8x128xf32>
    %164 = arith.addf %163, %162 : vector<8x128xf32>
    %165 = arith.divf %163, %164 : vector<8x128xf32>
    %166 = vector.extract_strided_slice %147 {offsets = [0, 256], sizes = [8, 128], strides = [1, 1]} : vector<8x384xf32> to vector<8x128xf32>
    %167 = vector.extract_strided_slice %149 {offsets = [0, 256], sizes = [8, 128], strides = [1, 1]} : vector<8x384xf32> to vector<8x128xf32>
    %168 = arith.addf %167, %15 : vector<8x128xf32>
    %169 = arith.mulf %157, %168 : vector<8x128xf32>
    %170 = arith.addf %166, %169 : vector<8x128xf32>
    %171 = math.tanh %170 : vector<8x128xf32>
    %cst_46 = arith.constant 1.000000e+00 : f32
    %172 = vector.broadcast %cst_46 : f32 to vector<8x128xf32>
    %173 = arith.subf %172, %165 : vector<8x128xf32>
    %174 = arith.mulf %173, %171 : vector<8x128xf32>
    %175 = arith.mulf %165, %144 : vector<8x128xf32>
    %176 = arith.addf %174, %175 : vector<8x128xf32>
    %c5_i32 = arith.constant 5 : i32
    %177 = arith.index_cast %c5_i32 : i32 to index
    %c0_47 = arith.constant 0 : index
    %c0_48 = arith.constant 0 : index
    %178 = vector.load %arg9[%177, %c0_47, %c0_48] : memref<8x8x384xf32, #tpu.memory_space<vmem>>, vector<1x8x384xf32>
    %179 = vector.shape_cast %178 : vector<1x8x384xf32> to vector<8x384xf32>
    %180 = arith.truncf %176 : vector<8x128xf32> to vector<8x128xbf16>
    %cst_49 = arith.constant dense<0.000000e+00> : vector<8x384xf32>
    %181 = tpu.matmul %180, %12, %cst_49 {dimension_numbers = #tpu.dot_dimension_numbers<[1], [0], [0], [1], [0, 0, 1, 1], [], []>} : vector<8x128xbf16>, vector<128x384xbf16>, vector<8x384xf32> -> vector<8x384xf32>
    %182 = vector.extract_strided_slice %179 {offsets = [0, 0], sizes = [8, 128], strides = [1, 1]} : vector<8x384xf32> to vector<8x128xf32>
    %183 = vector.extract_strided_slice %181 {offsets = [0, 0], sizes = [8, 128], strides = [1, 1]} : vector<8x384xf32> to vector<8x128xf32>
    %184 = arith.addf %182, %183 : vector<8x128xf32>
    %185 = arith.negf %184 : vector<8x128xf32>
    %186 = math.exp %185 : vector<8x128xf32>
    %cst_50 = arith.constant 1.000000e+00 : f32
    %187 = vector.broadcast %cst_50 : f32 to vector<8x128xf32>
    %188 = arith.addf %187, %186 : vector<8x128xf32>
    %189 = arith.divf %187, %188 : vector<8x128xf32>
    %190 = vector.extract_strided_slice %179 {offsets = [0, 128], sizes = [8, 128], strides = [1, 1]} : vector<8x384xf32> to vector<8x128xf32>
    %191 = vector.extract_strided_slice %181 {offsets = [0, 128], sizes = [8, 128], strides = [1, 1]} : vector<8x384xf32> to vector<8x128xf32>
    %192 = arith.addf %190, %191 : vector<8x128xf32>
    %193 = arith.negf %192 : vector<8x128xf32>
    %194 = math.exp %193 : vector<8x128xf32>
    %cst_51 = arith.constant 1.000000e+00 : f32
    %195 = vector.broadcast %cst_51 : f32 to vector<8x128xf32>
    %196 = arith.addf %195, %194 : vector<8x128xf32>
    %197 = arith.divf %195, %196 : vector<8x128xf32>
    %198 = vector.extract_strided_slice %179 {offsets = [0, 256], sizes = [8, 128], strides = [1, 1]} : vector<8x384xf32> to vector<8x128xf32>
    %199 = vector.extract_strided_slice %181 {offsets = [0, 256], sizes = [8, 128], strides = [1, 1]} : vector<8x384xf32> to vector<8x128xf32>
    %200 = arith.addf %199, %15 : vector<8x128xf32>
    %201 = arith.mulf %189, %200 : vector<8x128xf32>
    %202 = arith.addf %198, %201 : vector<8x128xf32>
    %203 = math.tanh %202 : vector<8x128xf32>
    %cst_52 = arith.constant 1.000000e+00 : f32
    %204 = vector.broadcast %cst_52 : f32 to vector<8x128xf32>
    %205 = arith.subf %204, %197 : vector<8x128xf32>
    %206 = arith.mulf %205, %203 : vector<8x128xf32>
    %207 = arith.mulf %197, %176 : vector<8x128xf32>
    %208 = arith.addf %206, %207 : vector<8x128xf32>
    %c6_i32 = arith.constant 6 : i32
    %209 = arith.index_cast %c6_i32 : i32 to index
    %c0_53 = arith.constant 0 : index
    %c0_54 = arith.constant 0 : index
    %210 = vector.load %arg9[%209, %c0_53, %c0_54] : memref<8x8x384xf32, #tpu.memory_space<vmem>>, vector<1x8x384xf32>
    %211 = vector.shape_cast %210 : vector<1x8x384xf32> to vector<8x384xf32>
    %212 = arith.truncf %208 : vector<8x128xf32> to vector<8x128xbf16>
    %cst_55 = arith.constant dense<0.000000e+00> : vector<8x384xf32>
    %213 = tpu.matmul %212, %12, %cst_55 {dimension_numbers = #tpu.dot_dimension_numbers<[1], [0], [0], [1], [0, 0, 1, 1], [], []>} : vector<8x128xbf16>, vector<128x384xbf16>, vector<8x384xf32> -> vector<8x384xf32>
    %214 = vector.extract_strided_slice %211 {offsets = [0, 0], sizes = [8, 128], strides = [1, 1]} : vector<8x384xf32> to vector<8x128xf32>
    %215 = vector.extract_strided_slice %213 {offsets = [0, 0], sizes = [8, 128], strides = [1, 1]} : vector<8x384xf32> to vector<8x128xf32>
    %216 = arith.addf %214, %215 : vector<8x128xf32>
    %217 = arith.negf %216 : vector<8x128xf32>
    %218 = math.exp %217 : vector<8x128xf32>
    %cst_56 = arith.constant 1.000000e+00 : f32
    %219 = vector.broadcast %cst_56 : f32 to vector<8x128xf32>
    %220 = arith.addf %219, %218 : vector<8x128xf32>
    %221 = arith.divf %219, %220 : vector<8x128xf32>
    %222 = vector.extract_strided_slice %211 {offsets = [0, 128], sizes = [8, 128], strides = [1, 1]} : vector<8x384xf32> to vector<8x128xf32>
    %223 = vector.extract_strided_slice %213 {offsets = [0, 128], sizes = [8, 128], strides = [1, 1]} : vector<8x384xf32> to vector<8x128xf32>
    %224 = arith.addf %222, %223 : vector<8x128xf32>
    %225 = arith.negf %224 : vector<8x128xf32>
    %226 = math.exp %225 : vector<8x128xf32>
    %cst_57 = arith.constant 1.000000e+00 : f32
    %227 = vector.broadcast %cst_57 : f32 to vector<8x128xf32>
    %228 = arith.addf %227, %226 : vector<8x128xf32>
    %229 = arith.divf %227, %228 : vector<8x128xf32>
    %230 = vector.extract_strided_slice %211 {offsets = [0, 256], sizes = [8, 128], strides = [1, 1]} : vector<8x384xf32> to vector<8x128xf32>
    %231 = vector.extract_strided_slice %213 {offsets = [0, 256], sizes = [8, 128], strides = [1, 1]} : vector<8x384xf32> to vector<8x128xf32>
    %232 = arith.addf %231, %15 : vector<8x128xf32>
    %233 = arith.mulf %221, %232 : vector<8x128xf32>
    %234 = arith.addf %230, %233 : vector<8x128xf32>
    %235 = math.tanh %234 : vector<8x128xf32>
    %cst_58 = arith.constant 1.000000e+00 : f32
    %236 = vector.broadcast %cst_58 : f32 to vector<8x128xf32>
    %237 = arith.subf %236, %229 : vector<8x128xf32>
    %238 = arith.mulf %237, %235 : vector<8x128xf32>
    %239 = arith.mulf %229, %208 : vector<8x128xf32>
    %240 = arith.addf %238, %239 : vector<8x128xf32>
    %c7_i32 = arith.constant 7 : i32
    %241 = arith.index_cast %c7_i32 : i32 to index
    %c0_59 = arith.constant 0 : index
    %c0_60 = arith.constant 0 : index
    %242 = vector.load %arg9[%241, %c0_59, %c0_60] : memref<8x8x384xf32, #tpu.memory_space<vmem>>, vector<1x8x384xf32>
    %243 = vector.shape_cast %242 : vector<1x8x384xf32> to vector<8x384xf32>
    %244 = arith.truncf %240 : vector<8x128xf32> to vector<8x128xbf16>
    %cst_61 = arith.constant dense<0.000000e+00> : vector<8x384xf32>
    %245 = tpu.matmul %244, %12, %cst_61 {dimension_numbers = #tpu.dot_dimension_numbers<[1], [0], [0], [1], [0, 0, 1, 1], [], []>} : vector<8x128xbf16>, vector<128x384xbf16>, vector<8x384xf32> -> vector<8x384xf32>
    %246 = vector.extract_strided_slice %243 {offsets = [0, 0], sizes = [8, 128], strides = [1, 1]} : vector<8x384xf32> to vector<8x128xf32>
    %247 = vector.extract_strided_slice %245 {offsets = [0, 0], sizes = [8, 128], strides = [1, 1]} : vector<8x384xf32> to vector<8x128xf32>
    %248 = arith.addf %246, %247 : vector<8x128xf32>
    %249 = arith.negf %248 : vector<8x128xf32>
    %250 = math.exp %249 : vector<8x128xf32>
    %cst_62 = arith.constant 1.000000e+00 : f32
    %251 = vector.broadcast %cst_62 : f32 to vector<8x128xf32>
    %252 = arith.addf %251, %250 : vector<8x128xf32>
    %253 = arith.divf %251, %252 : vector<8x128xf32>
    %254 = vector.extract_strided_slice %243 {offsets = [0, 128], sizes = [8, 128], strides = [1, 1]} : vector<8x384xf32> to vector<8x128xf32>
    %255 = vector.extract_strided_slice %245 {offsets = [0, 128], sizes = [8, 128], strides = [1, 1]} : vector<8x384xf32> to vector<8x128xf32>
    %256 = arith.addf %254, %255 : vector<8x128xf32>
    %257 = arith.negf %256 : vector<8x128xf32>
    %258 = math.exp %257 : vector<8x128xf32>
    %cst_63 = arith.constant 1.000000e+00 : f32
    %259 = vector.broadcast %cst_63 : f32 to vector<8x128xf32>
    %260 = arith.addf %259, %258 : vector<8x128xf32>
    %261 = arith.divf %259, %260 : vector<8x128xf32>
    %262 = vector.extract_strided_slice %243 {offsets = [0, 256], sizes = [8, 128], strides = [1, 1]} : vector<8x384xf32> to vector<8x128xf32>
    %263 = vector.extract_strided_slice %245 {offsets = [0, 256], sizes = [8, 128], strides = [1, 1]} : vector<8x384xf32> to vector<8x128xf32>
    %264 = arith.addf %263, %15 : vector<8x128xf32>
    %265 = arith.mulf %253, %264 : vector<8x128xf32>
    %266 = arith.addf %262, %265 : vector<8x128xf32>
    %267 = math.tanh %266 : vector<8x128xf32>
    %cst_64 = arith.constant 1.000000e+00 : f32
    %268 = vector.broadcast %cst_64 : f32 to vector<8x128xf32>
    %269 = arith.subf %268, %261 : vector<8x128xf32>
    %270 = arith.mulf %269, %267 : vector<8x128xf32>
    %271 = arith.mulf %261, %240 : vector<8x128xf32>
    %272 = arith.addf %270, %271 : vector<8x128xf32>
    %c8_i32 = arith.constant 8 : i32
    %c0_65 = arith.constant 0 : index
    %c0_66 = arith.constant 0 : index
    %273 = vector.load %arg10[%c0_65, %c0_66] : memref<8x128xf32, #tpu.memory_space<vmem>>, vector<8x128xf32>
    tpu.vector_store %arg10[%c0_65, %c0_66], %272 {strides = array<i32>} : memref<8x128xf32, #tpu.memory_space<vmem>>, vector<8x128xf32>,
    %c1_i32_67 = arith.constant 1 : i32
    %274 = arith.cmpi eq, %arg0, %c1_i32_67 : i32
    %275 = arith.extui %274 : i1 to i32
    %c0_i32_68 = arith.constant 0 : i32
    %276 = arith.cmpi ne, %275, %c0_i32_68 : i32
    scf.if %276 {
      %277 = arith.truncf %272 : vector<8x128xf32> to vector<8x128xbf16>
      %c0_69 = arith.constant 0 : index
      %c0_70 = arith.constant 0 : index
      %278 = vector.load %arg6[%c0_69, %c0_70] : memref<128x128xbf16, #tpu.memory_space<vmem>>, vector<128x128xbf16>
      %cst_71 = arith.constant dense<0.000000e+00> : vector<8x128xf32>
      %279 = tpu.matmul %277, %278, %cst_71 {dimension_numbers = #tpu.dot_dimension_numbers<[1], [0], [0], [1], [0, 0, 1, 1], [], []>} : vector<8x128xbf16>, vector<128x128xbf16>, vector<8x128xf32> -> vector<8x128xf32>
      %c0_72 = arith.constant 0 : index
      %c0_73 = arith.constant 0 : index
      %280 = vector.load %arg7[%c0_72, %c0_73] : memref<1x128xf32, #tpu.memory_space<vmem>>, vector<1x128xf32>
      %281 = vector.broadcast %280 : vector<1x128xf32> to vector<8x128xf32>
      %282 = arith.addf %279, %281 : vector<8x128xf32>
      %c0_74 = arith.constant 0 : index
      %c0_75 = arith.constant 0 : index
      %283 = vector.load %arg8[%c0_74, %c0_75] : memref<8x128xf32, #tpu.memory_space<vmem>>, vector<8x128xf32>
      tpu.vector_store %arg8[%c0_74, %c0_75], %282 {strides = array<i32>} : memref<8x128xf32, #tpu.memory_space<vmem>>, vector<8x128xf32>,
    } else {
    }
    return
  }
  func.func @transform_0(%arg0: i32) -> (i32, i32, i32) {
    %c0_i32 = arith.constant 0 : i32
    %c0_i32_0 = arith.constant 0 : i32
    %c0_i32_1 = arith.constant 0 : i32
    return %arg0, %c0_i32, %c0_i32_0 : i32, i32, i32
  }
  func.func @transform_1(%arg0: i32) -> (i32, i32) {
    %c0_i32 = arith.constant 0 : i32
    %c0_i32_0 = arith.constant 0 : i32
    %c0_i32_1 = arith.constant 0 : i32
    return %c0_i32, %c0_i32_0 : i32, i32
  }
  func.func @transform_2(%arg0: i32) -> (i32, i32) {
    %c0_i32 = arith.constant 0 : i32
    %c0_i32_0 = arith.constant 0 : i32
    %c0_i32_1 = arith.constant 0 : i32
    return %c0_i32, %c0_i32_0 : i32, i32
  }
  func.func @transform_3(%arg0: i32) -> (i32, i32) {
    %c0_i32 = arith.constant 0 : i32
    %c0_i32_0 = arith.constant 0 : i32
    %c0_i32_1 = arith.constant 0 : i32
    return %c0_i32, %c0_i32_0 : i32, i32
  }
  func.func @transform_4(%arg0: i32) -> (i32, i32) {
    %c0_i32 = arith.constant 0 : i32
    %c0_i32_0 = arith.constant 0 : i32
    %c0_i32_1 = arith.constant 0 : i32
    return %c0_i32, %c0_i32_0 : i32, i32
  }
  func.func @transform_5(%arg0: i32) -> (i32, i32) {
    %c0_i32 = arith.constant 0 : i32
    %c0_i32_0 = arith.constant 0 : i32
    %c0_i32_1 = arith.constant 0 : i32
    return %c0_i32, %c0_i32_0 : i32, i32
  }
  func.func @transform_6(%arg0: i32) -> (i32, i32) {
    %c0_i32 = arith.constant 0 : i32
    %c0_i32_0 = arith.constant 0 : i32
    %c0_i32_1 = arith.constant 0 : i32
    return %c0_i32, %c0_i32_0 : i32, i32
  }
  func.func @transform_7(%arg0: i32) -> (i32, i32) {
    %c0_i32 = arith.constant 0 : i32
    %c0_i32_0 = arith.constant 0 : i32
    %c0_i32_1 = arith.constant 0 : i32
    return %c0_i32, %c0_i32_0 : i32, i32
  }
}

</mosaic_0001>

<llo_original>
// kernel: gru_model_forward.3
$region0: #{gru_model_forward.3}
  #allocation0 [shape = 'u32[]', space=smem, size = 0x4, offset = 0x4, fixed_abs, tag = 'smem constant byte address 0x4 - core index']
  #allocation1 [shape = 'u32[144,128]{1,0:T(1,128)}', space=vmem, size = 0x12000, scoped, tag = 'internal scratch']
  #allocation2 [shape = 'f32[8,8,384]{2,1,0:T(8,128)}', space=vmem, size = 0x18000, scoped, tag = 'scratch operand']
  #allocation3 [shape = 'f32[8,128]{1,0:T(8,128)}', space=vmem, size = 0x1000, scoped, tag = 'scratch operand']
  %s0 = inlined_call_operand.vmem [shape: bf16[16,8,128], index: 0, kind: input, shape index: {}]
  %s1 = inlined_call_operand.vmem [shape: bf16[128,384], index: 1, kind: input, shape index: {}]
  %s2 = inlined_call_operand.vmem [shape: f32[1,384], index: 2, kind: input, shape index: {}]
  %s3 = inlined_call_operand.vmem [shape: bf16[128,384], index: 3, kind: input, shape index: {}]
  %s4 = inlined_call_operand.vmem [shape: f32[1,128], index: 4, kind: input, shape index: {}]
  %s5 = inlined_call_operand.vmem [shape: bf16[128,128], index: 5, kind: input, shape index: {}]
  %s6 = inlined_call_operand.vmem [shape: f32[1,128], index: 6, kind: input, shape index: {}]
  %s7 = inlined_call_operand.vmem [shape: f32[8,128], index: 7, kind: output, shape index: {}]
  %s8 = sld [smem:[#allocation0]]
  $region69: #{gru_model_forward.3} parent=0
    _
  %s10 = ssub.s32 1, %s8
  %s11 = scalar_select 0, %s10, %s8
  loop: start=0, step=1, limit=4
  $region2: #{gru_model_forward.3} parent=0 // loop_pre_header
    _
  $region3: #{gru_model_forward.3} parent=0 // loop_header
    %s13 = sphi 0, %s17
    %p14 = scmp.ge.s32.totalorder %s13, 4
    %s23 = sphi 0, %s25
    %s26 = sphi 0, %s23
    %s27 = sphi 0, %s26
    %s43 = sphi 0, %s27
    %s47 = sphi 0, %s47
    %s49 = sphi 0, %s47
    %s50 = sphi 0, %s49
    %s64 = sphi 0, %s50
    %s68 = sphi 0, %s68
    %s70 = sphi 0, %s68
    %s71 = sphi 0, %s70
    %s85 = sphi 0, %s71
    %s89 = sphi 0, %s89
    %s91 = sphi 0, %s89
    %s92 = sphi 0, %s91
    %s106 = sphi 0, %s92
    %s110 = sphi 0, %s110
    %s112 = sphi 0, %s110
    %s113 = sphi 0, %s112
    %s127 = sphi 0, %s113
    %s131 = sphi 0, %s131
    %s133 = sphi 0, %s131
    %s134 = sphi 0, %s133
    %s148 = sphi 0, %s134
    %s152 = sphi 0, %s152
    %s154 = sphi 0, %s152
    %s155 = sphi 0, %s154
    %s169 = sphi 0, %s155
    %s173 = sphi 0, %s173
    %s175 = sphi 0, %s173
    %s176 = sphi 0, %s175
    %s190 = sphi 0, %s176
  $region4: #{gru_model_forward.3} parent=0 // loop_header_branch
    %16 = sbr.rel (%p14) target = $region8
  $region5: #{gru_model_forward.3} parent=0 // loop_body
    %s18 = ssub.s32 %s13, 1
    %s19 = ssub.s32 %s13, 2
    %s20 = sadd.s32 %s13, 1
    %s21 = ssub.s32 %s13, %s20
    %p22 = scmp.eq.s32.totalorder %s21, 0
    %s24 = sadd.s32 %s23, 1
    %s25 = scalar_select %p22, %s23, %s24
    %p28 = pneg %p22
    %p29 = scmp.eq.s32.totalorder %s13, 1
    %p30 = por %p28, %p29
    %p31 = scmp.ne.s32.totalorder %s23, %s26
    %p32 = scmp.eq.s32.totalorder %s13, 0
    %p33 = por %p31, %p32
    %p34 = scmp.ne.s32.totalorder %s23, %s26
    %p35 = scmp.eq.s32.totalorder %s18, 1
    %p36 = por %p34, %p35
    %p37 = scmp.ne.s32.totalorder %s26, %s27
    %p38 = scmp.eq.s32.totalorder %s18, 0
    %p39 = por %p37, %p38
    %p40 = scmp.ne.s32.totalorder %s26, %s27
    %p41 = scmp.eq.s32.totalorder %s19, 1
    %p42 = por %p40, %p41
    %p44 = scmp.ne.s32.totalorder %s27, %s43
    %p45 = scmp.eq.s32.totalorder %s19, 0
    %p46 = por %p44, %p45
    %s48 = sadd.s32 %s47, 1
    %p51 = scmp.eq.s32.totalorder %s13, 1
    %p52 = scmp.ne.s32.totalorder %s47, %s49
    %p53 = scmp.eq.s32.totalorder %s13, 0
    %p54 = por %p52, %p53
    %p55 = scmp.ne.s32.totalorder %s47, %s49
    %p56 = scmp.eq.s32.totalorder %s18, 1
    %p57 = por %p55, %p56
    %p58 = scmp.ne.s32.totalorder %s49, %s50
    %p59 = scmp.eq.s32.totalorder %s18, 0
    %p60 = por %p58, %p59
    %p61 = scmp.ne.s32.totalorder %s49, %s50
    %p62 = scmp.eq.s32.totalorder %s19, 1
    %p63 = por %p61, %p62
    %p65 = scmp.ne.s32.totalorder %s50, %s64
    %p66 = scmp.eq.s32.totalorder %s19, 0
    %p67 = por %p65, %p66
    %s69 = sadd.s32 %s68, 1
    %p72 = scmp.eq.s32.totalorder %s13, 1
    %p73 = scmp.ne.s32.totalorder %s68, %s70
    %p74 = scmp.eq.s32.totalorder %s13, 0
    %p75 = por %p73, %p74
    %p76 = scmp.ne.s32.totalorder %s68, %s70
    %p77 = scmp.eq.s32.totalorder %s18, 1
    %p78 = por %p76, %p77
    %p79 = scmp.ne.s32.totalorder %s70, %s71
    %p80 = scmp.eq.s32.totalorder %s18, 0
    %p81 = por %p79, %p80
    %p82 = scmp.ne.s32.totalorder %s70, %s71
    %p83 = scmp.eq.s32.totalorder %s19, 1
    %p84 = por %p82, %p83
    %p86 = scmp.ne.s32.totalorder %s71, %s85
    %p87 = scmp.eq.s32.totalorder %s19, 0
    %p88 = por %p86, %p87
    %s90 = sadd.s32 %s89, 1
    %p93 = scmp.eq.s32.totalorder %s13, 1
    %p94 = scmp.ne.s32.totalorder %s89, %s91
    %p95 = scmp.eq.s32.totalorder %s13, 0
    %p96 = por %p94, %p95
    %p97 = scmp.ne.s32.totalorder %s89, %s91
    %p98 = scmp.eq.s32.totalorder %s18, 1
    %p99 = por %p97, %p98
    %p100 = scmp.ne.s32.totalorder %s91, %s92
    %p101 = scmp.eq.s32.totalorder %s18, 0
    %p102 = por %p100, %p101
    %p103 = scmp.ne.s32.totalorder %s91, %s92
    %p104 = scmp.eq.s32.totalorder %s19, 1
    %p105 = por %p103, %p104
    %p107 = scmp.ne.s32.totalorder %s92, %s106
    %p108 = scmp.eq.s32.totalorder %s19, 0
    %p109 = por %p107, %p108
    %s111 = sadd.s32 %s110, 1
    %p114 = scmp.eq.s32.totalorder %s13, 1
    %p115 = scmp.ne.s32.totalorder %s110, %s112
    %p116 = scmp.eq.s32.totalorder %s13, 0
    %p117 = por %p115, %p116
    %p118 = scmp.ne.s32.totalorder %s110, %s112
    %p119 = scmp.eq.s32.totalorder %s18, 1
    %p120 = por %p118, %p119
    %p121 = scmp.ne.s32.totalorder %s112, %s113
    %p122 = scmp.eq.s32.totalorder %s18, 0
    %p123 = por %p121, %p122
    %p124 = scmp.ne.s32.totalorder %s112, %s113
    %p125 = scmp.eq.s32.totalorder %s19, 1
    %p126 = por %p124, %p125
    %p128 = scmp.ne.s32.totalorder %s113, %s127
    %p129 = scmp.eq.s32.totalorder %s19, 0
    %p130 = por %p128, %p129
    %s132 = sadd.s32 %s131, 1
    %p135 = scmp.eq.s32.totalorder %s13, 1
    %p136 = scmp.ne.s32.totalorder %s131, %s133
    %p137 = scmp.eq.s32.totalorder %s13, 0
    %p138 = por %p136, %p137
    %p139 = scmp.ne.s32.totalorder %s131, %s133
    %p140 = scmp.eq.s32.totalorder %s18, 1
    %p141 = por %p139, %p140
    %p142 = scmp.ne.s32.totalorder %s133, %s134
    %p143 = scmp.eq.s32.totalorder %s18, 0
    %p144 = por %p142, %p143
    %p145 = scmp.ne.s32.totalorder %s133, %s134
    %p146 = scmp.eq.s32.totalorder %s19, 1
    %p147 = por %p145, %p146
    %p149 = scmp.ne.s32.totalorder %s134, %s148
    %p150 = scmp.eq.s32.totalorder %s19, 0
    %p151 = por %p149, %p150
    %s153 = sadd.s32 %s152, 1
    %p156 = scmp.eq.s32.totalorder %s13, 1
    %p157 = scmp.ne.s32.totalorder %s152, %s154
    %p158 = scmp.eq.s32.totalorder %s13, 0
    %p159 = por %p157, %p158
    %p160 = scmp.ne.s32.totalorder %s152, %s154
    %p161 = scmp.eq.s32.totalorder %s18, 1
    %p162 = por %p160, %p161
    %p163 = scmp.ne.s32.totalorder %s154, %s155
    %p164 = scmp.eq.s32.totalorder %s18, 0
    %p165 = por %p163, %p164
    %p166 = scmp.ne.s32.totalorder %s154, %s155
    %p167 = scmp.eq.s32.totalorder %s19, 1
    %p168 = por %p166, %p167
    %p170 = scmp.ne.s32.totalorder %s155, %s169
    %p171 = scmp.eq.s32.totalorder %s19, 0
    %p172 = por %p170, %p171
    %s174 = sadd.s32 %s173, 1
    %p177 = scmp.eq.s32.totalorder %s13, 1
    %p178 = scmp.ne.s32.totalorder %s173, %s175
    %p179 = scmp.eq.s32.totalorder %s13, 0
    %p180 = por %p178, %p179
    %p181 = scmp.ne.s32.totalorder %s173, %s175
    %p182 = scmp.eq.s32.totalorder %s18, 1
    %p183 = por %p181, %p182
    %p184 = scmp.ne.s32.totalorder %s175, %s176
    %p185 = scmp.eq.s32.totalorder %s18, 0
    %p186 = por %p184, %p185
    %p187 = scmp.ne.s32.totalorder %s175, %s176
    %p188 = scmp.eq.s32.totalorder %s19, 1
    %p189 = por %p187, %p188
    %p191 = scmp.ne.s32.totalorder %s176, %s190
    %p192 = scmp.eq.s32.totalorder %s19, 0
    %p193 = por %p191, %p192
    %p194 = scmp.le.s32.totalorder 1, %s13
    %p195 = scmp.lt.s32.totalorder %s13, 3
    %p196 = pnand %p194, %p195
    %p197 = pneg %p196
    // Predicated region
    $region9: #{gru_model_forward.3} parent=5 // pred_check
      _
    $region10: #{gru_model_forward.3} parent=5 // pred_check_branch
      %199 = sbr.rel (%p196) target = $region12
    $region11: #{gru_model_forward.3} parent=5 // pred_region
      %s200 = ssub.s32 %s13, 1
      // Predicated region
      $region13: #{gru_model_forward.3} parent=11 // pred_check
        %p201 = pneg %p60
      $region14: #{gru_model_forward.3} parent=11 // pred_check_branch
        %203 = sbr.rel (%p201) target = $region16
      $region15: #{gru_model_forward.3} parent=11 // pred_region
        _
      $region16: #{gru_model_forward.3} parent=11 // pred_fallthru
        _
      // Predicated region
      $region17: #{gru_model_forward.3} parent=11 // pred_check
        %p204 = pneg %p81
      $region18: #{gru_model_forward.3} parent=11 // pred_check_branch
        %206 = sbr.rel (%p204) target = $region20
      $region19: #{gru_model_forward.3} parent=11 // pred_region
        _
      $region20: #{gru_model_forward.3} parent=11 // pred_fallthru
        _
      // Predicated region
      $region21: #{gru_model_forward.3} parent=11 // pred_check
        %p207 = pneg %p102
      $region22: #{gru_model_forward.3} parent=11 // pred_check_branch
        %209 = sbr.rel (%p207) target = $region24
      $region23: #{gru_model_forward.3} parent=11 // pred_region
        _
      $region24: #{gru_model_forward.3} parent=11 // pred_fallthru
        _
      // Predicated region
      $region25: #{gru_model_forward.3} parent=11 // pred_check
        %p210 = pneg %p123
      $region26: #{gru_model_forward.3} parent=11 // pred_check_branch
        %212 = sbr.rel (%p210) target = $region28
      $region27: #{gru_model_forward.3} parent=11 // pred_region
        _
      $region28: #{gru_model_forward.3} parent=11 // pred_fallthru
        _
      // Predicated region
      $region29: #{gru_model_forward.3} parent=11 // pred_check
        %p213 = pneg %p144
      $region30: #{gru_model_forward.3} parent=11 // pred_check_branch
        %215 = sbr.rel (%p213) target = $region32
      $region31: #{gru_model_forward.3} parent=11 // pred_region
        _
      $region32: #{gru_model_forward.3} parent=11 // pred_fallthru
        _
      // Predicated region
      $region33: #{gru_model_forward.3} parent=11 // pred_check
        %p216 = pneg %p165
      $region34: #{gru_model_forward.3} parent=11 // pred_check_branch
        %218 = sbr.rel (%p216) target = $region36
      $region35: #{gru_model_forward.3} parent=11 // pred_region
        _
      $region36: #{gru_model_forward.3} parent=11 // pred_fallthru
        _
    $region12: #{gru_model_forward.3} parent=5 // pred_fallthru
      _
    %p219 = scmp.lt.s32.totalorder %s13, 2
    // Predicated region
    $region37: #{gru_model_forward.3} parent=5 // pred_check
      %p220 = pneg %p219
    $region38: #{gru_model_forward.3} parent=5 // pred_check_branch
      %222 = sbr.rel (%p220) target = $region40
    $region39: #{gru_model_forward.3} parent=5 // pred_region
      // Predicated region
      $region41: #{gru_model_forward.3} parent=39 // pred_check
        %p223 = pneg %p33
      $region42: #{gru_model_forward.3} parent=39 // pred_check_branch
        %225 = sbr.rel (%p223) target = $region44
      $region43: #{gru_model_forward.3} parent=39 // pred_region
        %s226 = smul.u32 8, %s13
        %p227 = scmp.lt.s32.totalorder %s226, 15
        %s228 = scalar_select %p227, %s226, 15
        %s229 = smul.addr %s228, 4
        %s230 = scalar_lea.vmem %s0, %s229
        %s231 = smul.u32 8, %s13
      $region44: #{gru_model_forward.3} parent=39 // pred_fallthru
        _
    $region40: #{gru_model_forward.3} parent=5 // pred_fallthru
      _
    %p232 = scmp.le.s32.totalorder 1, %s13
    %p233 = scmp.lt.s32.totalorder %s13, 3
    %p234 = pnand %p232, %p233
    %p235 = pneg %p234
    // Predicated region
    $region45: #{gru_model_forward.3} parent=5 // pred_check
      _
    $region46: #{gru_model_forward.3} parent=5 // pred_check_branch
      %237 = sbr.rel (%p234) target = $region48
    $region47: #{gru_model_forward.3} parent=5 // pred_region
      %s238 = ssub.s32 %s13, 1
      %s239 = smul.u32 8, %s18
      %p240 = scmp.lt.s32.totalorder %s239, 15
      %s241 = scalar_select %p240, %s239, 15
      %s242 = smul.addr %s241, 4
      %s243 = scalar_lea.vmem %s0, %s242
      %p244 = pneg %p39
      %p245 = pneg %p36
      %p246 = pneg %p60
      %p247 = pneg %p57
      %p248 = pneg %p81
      %p249 = pneg %p78
      %p250 = pneg %p102
      %p251 = pneg %p99
      %p252 = pneg %p123
      %p253 = pneg %p120
      %p254 = pneg %p144
      %p255 = pneg %p141
      %p256 = pneg %p165
      %p257 = pneg %p162
      %p258 = pneg %p186
      %p259 = pneg %p183
      %s260 = smul.u32 8, %s18
      %p261 = scmp.lt.s32.totalorder %s260, 15
      %s262 = scalar_select %p261, %s260, 15
      %s263 = smul.addr %s262, 4
      %s264 = scalar_lea.vmem %s0, %s263
      %s265 = smul.u32 8, %s18
      %p267 = scmp.eq.s32.totalorder %s18, 0
      // Predicated region
      $region49: #{gru_model_forward.3} parent=47 // pred_check
        %p268 = pneg %p267
      $region50: #{gru_model_forward.3} parent=47 // pred_check_branch
        %270 = sbr.rel (%p268) target = $region52
      $region51: #{gru_model_forward.3} parent=47 // pred_region
        %271 = vst [vmem:[#allocation3] sm:$0xff] 0.0
      $region52: #{gru_model_forward.3} parent=47 // pred_fallthru
        _
      %v272 = vld [vmem:[%s264] sm:$0xf]
      %v273 = vld [vmem:[%s264 + $0x4] sm:$0xf]
      %v274 = vld [vmem:[%s264 + $0x8] sm:$0xf]
      %v275 = vld [vmem:[%s264 + $0xc] sm:$0xf]
      %v276 = vld [vmem:[%s264 + $0x10] sm:$0xf]
      %v277 = vld [vmem:[%s264 + $0x14] sm:$0xf]
      %v278 = vld [vmem:[%s264 + $0x18] sm:$0xf]
      %v279 = vld [vmem:[%s264 + $0x1c] sm:$0xf]
      %v280 = vld [vmem:[%s1] sm:$0xff]
      %v281 = vld [vmem:[%s1 + $0x8] sm:$0xf]
      %v282 = vld [vmem:[%s1 + $0xc] sm:$0xff]
      %v283 = vld [vmem:[%s1 + $0x14] sm:$0xf]
      %v284 = vld [vmem:[%s1 + $0x18] sm:$0xff]
      %v285 = vld [vmem:[%s1 + $0x20] sm:$0xf]
      %v286 = vld [vmem:[%s1 + $0x24] sm:$0xff]
      %v287 = vld [vmem:[%s1 + $0x2c] sm:$0xf]
      %v288 = vld [vmem:[%s1 + $0x30] sm:$0xff]
      %v289 = vld [vmem:[%s1 + $0x38] sm:$0xf]
      %v290 = vld [vmem:[%s1 + $0x3c] sm:$0xff]
      %v291 = vld [vmem:[%s1 + $0x44] sm:$0xf]
      %v292 = vld [vmem:[%s1 + $0x48] sm:$0xff]
      %v293 = vld [vmem:[%s1 + $0x50] sm:$0xf]
      %v294 = vld [vmem:[%s1 + $0x54] sm:$0xff]
      %v295 = vld [vmem:[%s1 + $0x5c] sm:$0xf]
      %v296 = vld [vmem:[%s1 + $0x60] sm:$0xff]
      %v297 = vld [vmem:[%s1 + $0x68] sm:$0xf]
      %v298 = vld [vmem:[%s1 + $0x6c] sm:$0xff]
      %v299 = vld [vmem:[%s1 + $0x74] sm:$0xf]
      %v300 = vld [vmem:[%s1 + $0x78] sm:$0xff]
      %v301 = vld [vmem:[%s1 + $0x80] sm:$0xf]
      %v302 = vld [vmem:[%s1 + $0x84] sm:$0xff]
      %v303 = vld [vmem:[%s1 + $0x8c] sm:$0xf]
      %v304 = vld [vmem:[%s1 + $0x90] sm:$0xff]
      %v305 = vld [vmem:[%s1 + $0x98] sm:$0xf]
      %v306 = vld [vmem:[%s1 + $0x9c] sm:$0xff]
      %v307 = vld [vmem:[%s1 + $0xa4] sm:$0xf]
      %v308 = vld [vmem:[%s1 + $0xa8] sm:$0xff]
      %v309 = vld [vmem:[%s1 + $0xb0] sm:$0xf]
      %v310 = vld [vmem:[%s1 + $0xb4] sm:$0xff]
      %v311 = vld [vmem:[%s1 + $0xbc] sm:$0xf]
      %v312 = vld [vmem:[%s2] sm:$0x7]
      %v314 = vlaneseq
      %v315 = vshrl.u32 %v314, 7
      %v316 = vsub.s32 0, %v315
      %v317 = vrot.slane %v312, %v316
      %v318 = vlaneseq
      %v319 = vshrl.u32 %v318, 7
      %v320 = vsub.s32 1, %v319
      %v321 = vrot.slane %v312, %v320
      %v322 = vlaneseq
      %v323 = vshrl.u32 %v322, 7
      %v324 = vsub.s32 2, %v323
      %v325 = vrot.slane %v312, %v324
      %v337 = vunpack.c.l.b16 %v272
      %v338 = vunpack.c.l.b16 %v273
      %v339 = vunpack.c.l.b16 %v274
      %v340 = vunpack.c.l.b16 %v275
      %v341 = vunpack.c.l.b16 %v276
      %v342 = vunpack.c.l.b16 %v277
      %v343 = vunpack.c.l.b16 %v278
      %v344 = vunpack.c.l.b16 %v279
      %v345 = vpack.c.b16 %v338, %v337
      %v346 = vpack.c.b16 %v340, %v339
      %v347 = vpack.c.b16 %v342, %v341
      %v348 = vpack.c.b16 %v344, %v343
      %v385 = vunpack.c.l.b16 %v280
      %v386 = vunpack.c.h.b16 %v280
      %v387 = vunpack.c.l.b16 %v281
      %v388 = vunpack.c.l.b16 %v282
      %v389 = vunpack.c.h.b16 %v282
      %v390 = vunpack.c.l.b16 %v283
      %v391 = vunpack.c.l.b16 %v284
      %v392 = vunpack.c.h.b16 %v284
      %v393 = vunpack.c.l.b16 %v285
      %v394 = vunpack.c.l.b16 %v286
      %v395 = vunpack.c.h.b16 %v286
      %v396 = vunpack.c.l.b16 %v287
      %v397 = vunpack.c.l.b16 %v288
      %v398 = vunpack.c.h.b16 %v288
      %v399 = vunpack.c.l.b16 %v289
      %v400 = vunpack.c.l.b16 %v290
      %v401 = vunpack.c.h.b16 %v290
      %v402 = vunpack.c.l.b16 %v291
      %v403 = vunpack.c.l.b16 %v292
      %v404 = vunpack.c.h.b16 %v292
      %v405 = vunpack.c.l.b16 %v293
      %v406 = vunpack.c.l.b16 %v294
      %v407 = vunpack.c.h.b16 %v294
      %v408 = vunpack.c.l.b16 %v295
      %v409 = vunpack.c.l.b16 %v296
      %v410 = vunpack.c.h.b16 %v296
      %v411 = vunpack.c.l.b16 %v297
      %v412 = vunpack.c.l.b16 %v298
      %v413 = vunpack.c.h.b16 %v298
      %v414 = vunpack.c.l.b16 %v299
      %v415 = vunpack.c.l.b16 %v300
      %v416 = vunpack.c.h.b16 %v300
      %v417 = vunpack.c.l.b16 %v301
      %v418 = vunpack.c.l.b16 %v302
      %v419 = vunpack.c.h.b16 %v302
      %v420 = vunpack.c.l.b16 %v303
      %v421 = vunpack.c.l.b16 %v304
      %v422 = vunpack.c.h.b16 %v304
      %v423 = vunpack.c.l.b16 %v305
      %v424 = vunpack.c.l.b16 %v306
      %v425 = vunpack.c.h.b16 %v306
      %v426 = vunpack.c.l.b16 %v307
      %v427 = vunpack.c.l.b16 %v308
      %v428 = vunpack.c.h.b16 %v308
      %v429 = vunpack.c.l.b16 %v309
      %v430 = vunpack.c.l.b16 %v310
      %v431 = vunpack.c.h.b16 %v310
      %v432 = vunpack.c.l.b16 %v311
      %v433 = vpack.c.b16 %v388, %v385
      %v434 = vpack.c.b16 %v389, %v386
      %v435 = vpack.c.b16 %v390, %v387
      %v436 = vpack.c.b16 %v394, %v391
      %v437 = vpack.c.b16 %v395, %v392
      %v438 = vpack.c.b16 %v396, %v393
      %v439 = vpack.c.b16 %v400, %v397
      %v440 = vpack.c.b16 %v401, %v398
      %v441 = vpack.c.b16 %v402, %v399
      %v442 = vpack.c.b16 %v406, %v403
      %v443 = vpack.c.b16 %v407, %v404
      %v444 = vpack.c.b16 %v408, %v405
      %v445 = vpack.c.b16 %v412, %v409
      %v446 = vpack.c.b16 %v413, %v410
      %v447 = vpack.c.b16 %v414, %v411
      %v448 = vpack.c.b16 %v418, %v415
      %v449 = vpack.c.b16 %v419, %v416
      %v450 = vpack.c.b16 %v420, %v417
      %v451 = vpack.c.b16 %v424, %v421
      %v452 = vpack.c.b16 %v425, %v422
      %v453 = vpack.c.b16 %v426, %v423
      %v454 = vpack.c.b16 %v430, %v427
      %v455 = vpack.c.b16 %v431, %v428
      %v456 = vpack.c.b16 %v432, %v429
      %481 = vmatprep.subr.bf16.mxu0 %v455
      %482 = vmatpush1.bf16.msra.mxu0 %v454
      %483 = vmatprep.subr.bf16.mxu0 %v452
      %484 = vmatpush1.bf16.msra.mxu0 %v451
      %485 = vmatprep.subr.bf16.mxu0 %v449
      %486 = vmatpush1.bf16.msra.mxu0 %v448
      %487 = vmatprep.subr.bf16.mxu0 %v446
      %488 = vmatpush1.bf16.msra.mxu0 %v445
      %489 = vmatprep.subr.bf16.mxu0 %v443
      %490 = vmatpush1.bf16.msra.mxu0 %v442
      %491 = vmatprep.subr.bf16.mxu0 %v440
      %492 = vmatpush1.bf16.msra.mxu0 %v439
      %493 = vmatprep.subr.bf16.mxu0 %v437
      %494 = vmatpush1.bf16.msra.mxu0 %v436
      %495 = vmatprep.subr.bf16.mxu0 %v434
      %496 = vmatpush1.bf16.msra.mxu0 %v433
      %497 = vmatprep.subr.bf16.mxu0 0
      %498 = vmatpush2.bf16.msra.mxu0 0
      %499 = vmatprep.subr.bf16.mxu0 0
      %500 = vmatpush2.bf16.msra.mxu0 0
      %501 = vmatprep.subr.bf16.mxu0 0
      %502 = vmatpush2.bf16.msra.mxu0 0
      %503 = vmatprep.subr.bf16.mxu0 0
      %504 = vmatpush2.bf16.msra.mxu0 0
      %505 = vmatprep.subr.bf16.mxu0 0
      %506 = vmatpush2.bf16.msra.mxu0 0
      %507 = vmatprep.subr.bf16.mxu0 0
      %508 = vmatpush2.bf16.msra.mxu0 0
      %509 = vmatprep.subr.bf16.mxu0 0
      %510 = vmatpush2.bf16.msra.mxu0 0
      %511 = vmatprep.subr.bf16.mxu0 0
      %512 = vmatpush2.bf16.msra.mxu0 0
      %513 = vmatprep.mubr.bf16.mxu0 0
      %514 = vmatmul.mubr.bf16.gmra.mxu0 %v345
      %v515 = vpop.f32.mrf.mxu0
      %v516 = vadd.f32 %v317, %v515
      %v517 = vpop.f32.mrf.mxu0
      %v518 = vadd.f32 %v321, %v517
      %v519 = vpop.f32.mrf.mxu0
      %v520 = vadd.f32 %v317, %v519
      %v521 = vpop.f32.mrf.mxu0
      %v522 = vadd.f32 %v321, %v521
      %523 = vmatprep.mubr.bf16.mxu0 0
      %524 = vmatmul.mubr.bf16.gmra.mxu0 %v346
      %v525 = vpop.f32.mrf.mxu0
      %v526 = vadd.f32 %v317, %v525
      %v527 = vpop.f32.mrf.mxu0
      %v528 = vadd.f32 %v321, %v527
      %v529 = vpop.f32.mrf.mxu0
      %v530 = vadd.f32 %v317, %v529
      %v531 = vpop.f32.mrf.mxu0
      %v532 = vadd.f32 %v321, %v531
      %533 = vmatprep.mubr.bf16.mxu0 0
      %534 = vmatmul.mubr.bf16.gmra.mxu0 %v347
      %v535 = vpop.f32.mrf.mxu0
      %v536 = vadd.f32 %v317, %v535
      %v537 = vpop.f32.mrf.mxu0
      %v538 = vadd.f32 %v321, %v537
      %v539 = vpop.f32.mrf.mxu0
      %v540 = vadd.f32 %v317, %v539
      %v541 = vpop.f32.mrf.mxu0
      %v542 = vadd.f32 %v321, %v541
      %543 = vmatprep.mubr.bf16.mxu0 0
      %544 = vmatmul.mubr.bf16.gmra.mxu0 %v348
      %v545 = vpop.f32.mrf.mxu0
      %v546 = vadd.f32 %v317, %v545
      %v547 = vpop.f32.mrf.mxu0
      %v548 = vadd.f32 %v321, %v547
      %v549 = vpop.f32.mrf.mxu0
      %v550 = vadd.f32 %v317, %v549
      %v551 = vpop.f32.mrf.mxu0
      %v552 = vadd.f32 %v321, %v551
      %553 = vdwg.mxu0
      %554 = vmatprep.subr.bf16.mxu0 0
      %555 = vmatpush1.bf16.msra.mxu0 %v456
      %556 = vmatprep.subr.bf16.mxu0 0
      %557 = vmatpush1.bf16.msra.mxu0 %v453
      %558 = vmatprep.subr.bf16.mxu0 0
      %559 = vmatpush1.bf16.msra.mxu0 %v450
      %560 = vmatprep.subr.bf16.mxu0 0
      %561 = vmatpush1.bf16.msra.mxu0 %v447
      %562 = vmatprep.subr.bf16.mxu0 0
      %563 = vmatpush1.bf16.msra.mxu0 %v444
      %564 = vmatprep.subr.bf16.mxu0 0
      %565 = vmatpush1.bf16.msra.mxu0 %v441
      %566 = vmatprep.subr.bf16.mxu0 0
      %567 = vmatpush1.bf16.msra.mxu0 %v438
      %568 = vmatprep.subr.bf16.mxu0 0
      %569 = vmatpush1.bf16.msra.mxu0 %v435
      %570 = vmatprep.subr.bf16.mxu0 0
      %571 = vmatpush2.bf16.msra.mxu0 0
      %572 = vmatprep.subr.bf16.mxu0 0
      %573 = vmatpush2.bf16.msra.mxu0 0
      %574 = vmatprep.subr.bf16.mxu0 0
      %575 = vmatpush2.bf16.msra.mxu0 0
      %576 = vmatprep.subr.bf16.mxu0 0
      %577 = vmatpush2.bf16.msra.mxu0 0
      %578 = vmatprep.subr.bf16.mxu0 0
      %579 = vmatpush2.bf16.msra.mxu0 0
      %580 = vmatprep.subr.bf16.mxu0 0
      %581 = vmatpush2.bf16.msra.mxu0 0
      %582 = vmatprep.subr.bf16.mxu0 0
      %583 = vmatpush2.bf16.msra.mxu0 0
      %584 = vmatprep.subr.bf16.mxu0 0
      %585 = vmatpush2.bf16.msra.mxu0 0
      %586 = vmatprep.mubr.bf16.mxu0 0
      %587 = vmatmul.mubr.bf16.gmra.mxu0 %v345
      %v588 = vpop.f32.mrf.mxu0
      %v589 = vadd.f32 %v325, %v588
      %v590 = vpop.f32.mrf.mxu0
      %v591 = vpop.f32.mrf.mxu0
      %v592 = vadd.f32 %v325, %v591
      %v593 = vpop.f32.mrf.mxu0
      %594 = vmatprep.mubr.bf16.mxu0 0
      %595 = vmatmul.mubr.bf16.gmra.mxu0 %v346
      %v596 = vpop.f32.mrf.mxu0
      %v597 = vadd.f32 %v325, %v596
      %v598 = vpop.f32.mrf.mxu0
      %v599 = vpop.f32.mrf.mxu0
      %v600 = vadd.f32 %v325, %v599
      %v601 = vpop.f32.mrf.mxu0
      %602 = vmatprep.mubr.bf16.mxu0 0
      %603 = vmatmul.mubr.bf16.gmra.mxu0 %v347
      %v604 = vpop.f32.mrf.mxu0
      %v605 = vadd.f32 %v325, %v604
      %v606 = vpop.f32.mrf.mxu0
      %v607 = vpop.f32.mrf.mxu0
      %v608 = vadd.f32 %v325, %v607
      %v609 = vpop.f32.mrf.mxu0
      %610 = vmatprep.mubr.bf16.mxu0 0
      %611 = vmatmul.mubr.bf16.gmra.mxu0 %v348
      %v612 = vpop.f32.mrf.mxu0
      %v613 = vadd.f32 %v325, %v612
      %v614 = vpop.f32.mrf.mxu0
      %v615 = vpop.f32.mrf.mxu0
      %v616 = vadd.f32 %v325, %v615
      %v617 = vpop.f32.mrf.mxu0
      %618 = vdwg.mxu0
      %619 = vst [vmem:[#allocation2] sm:$0xff] %v516
      %620 = vst [vmem:[#allocation2 + $0x8] sm:$0xff] %v518
      %621 = vst [vmem:[#allocation2 + $0x10] sm:$0xff] %v589
      %622 = vst [vmem:[#allocation2 + $0x18] sm:$0xff] %v520
      %623 = vst [vmem:[#allocation2 + $0x20] sm:$0xff] %v522
      %624 = vst [vmem:[#allocation2 + $0x28] sm:$0xff] %v592
      %625 = vst [vmem:[#allocation2 + $0x30] sm:$0xff] %v526
      %626 = vst [vmem:[#allocation2 + $0x38] sm:$0xff] %v528
      %627 = vst [vmem:[#allocation2 + $0x40] sm:$0xff] %v597
      %628 = vst [vmem:[#allocation2 + $0x48] sm:$0xff] %v530
      %629 = vst [vmem:[#allocation2 + $0x50] sm:$0xff] %v532
      %630 = vst [vmem:[#allocation2 + $0x58] sm:$0xff] %v600
      %631 = vst [vmem:[#allocation2 + $0x60] sm:$0xff] %v536
      %632 = vst [vmem:[#allocation2 + $0x68] sm:$0xff] %v538
      %633 = vst [vmem:[#allocation2 + $0x70] sm:$0xff] %v605
      %634 = vst [vmem:[#allocation2 + $0x78] sm:$0xff] %v540
      %635 = vst [vmem:[#allocation2 + $0x80] sm:$0xff] %v542
      %636 = vst [vmem:[#allocation2 + $0x88] sm:$0xff] %v608
      %637 = vst [vmem:[#allocation2 + $0x90] sm:$0xff] %v546
      %638 = vst [vmem:[#allocation2 + $0x98] sm:$0xff] %v548
      %639 = vst [vmem:[#allocation2 + $0xa0] sm:$0xff] %v613
      %640 = vst [vmem:[#allocation2 + $0xa8] sm:$0xff] %v550
      %641 = vst [vmem:[#allocation2 + $0xb0] sm:$0xff] %v552
      %642 = vst [vmem:[#allocation2 + $0xb8] sm:$0xff] %v616
      %v643 = vld [vmem:[%s3] sm:$0xff]
      %v644 = vld [vmem:[%s3 + $0x8] sm:$0xf]
      %v645 = vld [vmem:[%s3 + $0xc] sm:$0xff]
      %v646 = vld [vmem:[%s3 + $0x14] sm:$0xf]
      %v647 = vld [vmem:[%s3 + $0x18] sm:$0xff]
      %v648 = vld [vmem:[%s3 + $0x20] sm:$0xf]
      %v649 = vld [vmem:[%s3 + $0x24] sm:$0xff]
      %v650 = vld [vmem:[%s3 + $0x2c] sm:$0xf]
      %v651 = vld [vmem:[%s3 + $0x30] sm:$0xff]
      %v652 = vld [vmem:[%s3 + $0x38] sm:$0xf]
      %v653 = vld [vmem:[%s3 + $0x3c] sm:$0xff]
      %v654 = vld [vmem:[%s3 + $0x44] sm:$0xf]
      %v655 = vld [vmem:[%s3 + $0x48] sm:$0xff]
      %v656 = vld [vmem:[%s3 + $0x50] sm:$0xf]
      %v657 = vld [vmem:[%s3 + $0x54] sm:$0xff]
      %v658 = vld [vmem:[%s3 + $0x5c] sm:$0xf]
      %v659 = vld [vmem:[%s3 + $0x60] sm:$0xff]
      %v660 = vld [vmem:[%s3 + $0x68] sm:$0xf]
      %v661 = vld [vmem:[%s3 + $0x6c] sm:$0xff]
      %v662 = vld [vmem:[%s3 + $0x74] sm:$0xf]
      %v663 = vld [vmem:[%s3 + $0x78] sm:$0xff]
      %v664 = vld [vmem:[%s3 + $0x80] sm:$0xf]
      %v665 = vld [vmem:[%s3 + $0x84] sm:$0xff]
      %v666 = vld [vmem:[%s3 + $0x8c] sm:$0xf]
      %v667 = vld [vmem:[%s3 + $0x90] sm:$0xff]
      %v668 = vld [vmem:[%s3 + $0x98] sm:$0xf]
      %v669 = vld [vmem:[%s3 + $0x9c] sm:$0xff]
      %v670 = vld [vmem:[%s3 + $0xa4] sm:$0xf]
      %v671 = vld [vmem:[%s3 + $0xa8] sm:$0xff]
      %v672 = vld [vmem:[%s3 + $0xb0] sm:$0xf]
      %v673 = vld [vmem:[%s3 + $0xb4] sm:$0xff]
      %v674 = vld [vmem:[%s3 + $0xbc] sm:$0xf]
      %v675 = vld [vmem:[%s4] sm:$0x1]
      %v677 = vlaneseq
      %v678 = vshrl.u32 %v677, 7
      %v679 = vsub.s32 0, %v678
      %v680 = vrot.slane %v675, %v679
      %v682 = vld [vmem:[#allocation3] sm:$0xff]
      %v683 = vld [vmem:[#allocation2] sm:$0xff]
      %v684 = vld [vmem:[#allocation2 + $0x8] sm:$0xff]
      %v685 = vld [vmem:[#allocation2 + $0x10] sm:$0xff]
      %v686 = vpack.c.bf16 %v682, %v682
      %v719 = vunpack.c.l.b16 %v643
      %v720 = vunpack.c.h.b16 %v643
      %v721 = vunpack.c.l.b16 %v644
      %v722 = vunpack.c.l.b16 %v645
      %v723 = vunpack.c.h.b16 %v645
      %v724 = vunpack.c.l.b16 %v646
      %v725 = vunpack.c.l.b16 %v647
      %v726 = vunpack.c.h.b16 %v647
      %v727 = vunpack.c.l.b16 %v648
      %v728 = vunpack.c.l.b16 %v649
      %v729 = vunpack.c.h.b16 %v649
      %v730 = vunpack.c.l.b16 %v650
      %v731 = vunpack.c.l.b16 %v651
      %v732 = vunpack.c.h.b16 %v651
      %v733 = vunpack.c.l.b16 %v652
      %v734 = vunpack.c.l.b16 %v653
      %v735 = vunpack.c.h.b16 %v653
      %v736 = vunpack.c.l.b16 %v654
      %v737 = vunpack.c.l.b16 %v655
      %v738 = vunpack.c.h.b16 %v655
      %v739 = vunpack.c.l.b16 %v656
      %v740 = vunpack.c.l.b16 %v657
      %v741 = vunpack.c.h.b16 %v657
      %v742 = vunpack.c.l.b16 %v658
      %v743 = vunpack.c.l.b16 %v659
      %v744 = vunpack.c.h.b16 %v659
      %v745 = vunpack.c.l.b16 %v660
      %v746 = vunpack.c.l.b16 %v661
      %v747 = vunpack.c.h.b16 %v661
      %v748 = vunpack.c.l.b16 %v662
      %v749 = vunpack.c.l.b16 %v663
      %v750 = vunpack.c.h.b16 %v663
      %v751 = vunpack.c.l.b16 %v664
      %v752 = vunpack.c.l.b16 %v665
      %v753 = vunpack.c.h.b16 %v665
      %v754 = vunpack.c.l.b16 %v666
      %v755 = vunpack.c.l.b16 %v667
      %v756 = vunpack.c.h.b16 %v667
      %v757 = vunpack.c.l.b16 %v668
      %v758 = vunpack.c.l.b16 %v669
      %v759 = vunpack.c.h.b16 %v669
      %v760 = vunpack.c.l.b16 %v670
      %v761 = vunpack.c.l.b16 %v671
      %v762 = vunpack.c.h.b16 %v671
      %v763 = vunpack.c.l.b16 %v672
      %v764 = vunpack.c.l.b16 %v673
      %v765 = vunpack.c.h.b16 %v673
      %v766 = vunpack.c.l.b16 %v674
      %v767 = vpack.c.b16 %v722, %v719
      %v768 = vpack.c.b16 %v723, %v720
      %v769 = vpack.c.b16 %v724, %v721
      %v770 = vpack.c.b16 %v728, %v725
      %v771 = vpack.c.b16 %v729, %v726
      %v772 = vpack.c.b16 %v730, %v727
      %v773 = vpack.c.b16 %v734, %v731
      %v774 = vpack.c.b16 %v735, %v732
      %v775 = vpack.c.b16 %v736, %v733
      %v776 = vpack.c.b16 %v740, %v737
      %v777 = vpack.c.b16 %v741, %v738
      %v778 = vpack.c.b16 %v742, %v739
      %v779 = vpack.c.b16 %v746, %v743
      %v780 = vpack.c.b16 %v747, %v744
      %v781 = vpack.c.b16 %v748, %v745
      %v782 = vpack.c.b16 %v752, %v749
      %v783 = vpack.c.b16 %v753, %v750
      %v784 = vpack.c.b16 %v754, %v751
      %v785 = vpack.c.b16 %v758, %v755
      %v786 = vpack.c.b16 %v759, %v756
      %v787 = vpack.c.b16 %v760, %v757
      %v788 = vpack.c.b16 %v764, %v761
      %v789 = vpack.c.b16 %v765, %v762
      %v790 = vpack.c.b16 %v766, %v763
      %815 = vmatprep.subr.bf16.mxu0 %v789
      %816 = vmatpush1.bf16.msra.mxu0 %v788
      %817 = vmatprep.subr.bf16.mxu0 %v786
      %818 = vmatpush1.bf16.msra.mxu0 %v785
      %819 = vmatprep.subr.bf16.mxu0 %v783
      %820 = vmatpush1.bf16.msra.mxu0 %v782
      %821 = vmatprep.subr.bf16.mxu0 %v780
      %822 = vmatpush1.bf16.msra.mxu0 %v779
      %823 = vmatprep.subr.bf16.mxu0 %v777
      %824 = vmatpush1.bf16.msra.mxu0 %v776
      %825 = vmatprep.subr.bf16.mxu0 %v774
      %826 = vmatpush1.bf16.msra.mxu0 %v773
      %827 = vmatprep.subr.bf16.mxu0 %v771
      %828 = vmatpush1.bf16.msra.mxu0 %v770
      %829 = vmatprep.subr.bf16.mxu0 %v768
      %830 = vmatpush1.bf16.msra.mxu0 %v767
      %831 = vmatprep.subr.bf16.mxu0 0
      %832 = vmatpush2.bf16.msra.mxu0 0
      %833 = vmatprep.subr.bf16.mxu0 0
      %834 = vmatpush2.bf16.msra.mxu0 0
      %835 = vmatprep.subr.bf16.mxu0 0
      %836 = vmatpush2.bf16.msra.mxu0 0
      %837 = vmatprep.subr.bf16.mxu0 0
      %838 = vmatpush2.bf16.msra.mxu0 0
      %839 = vmatprep.subr.bf16.mxu0 0
      %840 = vmatpush2.bf16.msra.mxu0 0
      %841 = vmatprep.subr.bf16.mxu0 0
      %842 = vmatpush2.bf16.msra.mxu0 0
      %843 = vmatprep.subr.bf16.mxu0 0
      %844 = vmatpush2.bf16.msra.mxu0 0
      %845 = vmatprep.subr.bf16.mxu0 0
      %846 = vmatpush2.bf16.msra.mxu0 0
      %847 = vmatprep.mubr.bf16.mxu0 0
      %848 = vmatmul.mubr.bf16.gmra.mxu0 %v686
      %v849 = vpop.f32.mrf.mxu0
      %v850 = vadd.f32 0.0, %v849
      %v851 = vpop.f32.mrf.mxu0
      %v852 = vadd.f32 0.0, %v851
      %v853 = vpop.f32.mrf.mxu0
      %v854 = vpop.f32.mrf.mxu0
      %855 = vdwg.mxu0
      %856 = vmatprep.subr.bf16.mxu0 0
      %857 = vmatpush1.bf16.msra.mxu0 %v790
      %858 = vmatprep.subr.bf16.mxu0 0
      %859 = vmatpush1.bf16.msra.mxu0 %v787
      %860 = vmatprep.subr.bf16.mxu0 0
      %861 = vmatpush1.bf16.msra.mxu0 %v784
      %862 = vmatprep.subr.bf16.mxu0 0
      %863 = vmatpush1.bf16.msra.mxu0 %v781
      %864 = vmatprep.subr.bf16.mxu0 0
      %865 = vmatpush1.bf16.msra.mxu0 %v778
      %866 = vmatprep.subr.bf16.mxu0 0
      %867 = vmatpush1.bf16.msra.mxu0 %v775
      %868 = vmatprep.subr.bf16.mxu0 0
      %869 = vmatpush1.bf16.msra.mxu0 %v772
      %870 = vmatprep.subr.bf16.mxu0 0
      %871 = vmatpush1.bf16.msra.mxu0 %v769
      %872 = vmatprep.subr.bf16.mxu0 0
      %873 = vmatpush2.bf16.msra.mxu0 0
      %874 = vmatprep.subr.bf16.mxu0 0
      %875 = vmatpush2.bf16.msra.mxu0 0
      %876 = vmatprep.subr.bf16.mxu0 0
      %877 = vmatpush2.bf16.msra.mxu0 0
      %878 = vmatprep.subr.bf16.mxu0 0
      %879 = vmatpush2.bf16.msra.mxu0 0
      %880 = vmatprep.subr.bf16.mxu0 0
      %881 = vmatpush2.bf16.msra.mxu0 0
      %882 = vmatprep.subr.bf16.mxu0 0
      %883 = vmatpush2.bf16.msra.mxu0 0
      %884 = vmatprep.subr.bf16.mxu0 0
      %885 = vmatpush2.bf16.msra.mxu0 0
      %886 = vmatprep.subr.bf16.mxu0 0
      %887 = vmatpush2.bf16.msra.mxu0 0
      %888 = vmatprep.mubr.bf16.mxu0 0
      %889 = vmatmul.mubr.bf16.gmra.mxu0 %v686
      %v890 = vpop.f32.mrf.mxu0
      %v891 = vadd.f32 0.0, %v890
      %v892 = vpop.f32.mrf.mxu0
      %v893 = vpop.f32.mrf.mxu0
      %v894 = vpop.f32.mrf.mxu0
      %895 = vdwg.mxu0
      %v896 = vadd.f32 %v683, %v850
      %v897 = vxor.u32 %v896, 2147483648
      %v898 = vmul.f32 %v897, 1.442695
      %v899 = vpow.pop %v898
      %v900 = vadd.f32 %v899, 1.0
      %v901 = vrcp.pop %v900
      %v902 = vmul.f32 1.0, %v901
      %v903 = vadd.f32 %v684, %v852
      %v904 = vxor.u32 %v903, 2147483648
      %v905 = vmul.f32 %v904, 1.442695
      %v906 = vpow.pop %v905
      %v907 = vadd.f32 %v906, 1.0
      %v908 = vrcp.pop %v907
      %v909 = vmul.f32 1.0, %v908
      %v910 = vadd.f32 %v891, %v680
      %v911 = vmul.f32 %v902, %v910
      %v912 = vadd.f32 %v685, %v911
      %v913 = vtanh.pop %v912
      %v914 = vsub.f32 1.0, %v909
      %v915 = vmul.f32 %v914, %v913
      %v916 = vmul.f32 %v909, %v682
      %v917 = vadd.f32 %v915, %v916
      %s918 = scalar_lea.vmem [#allocation2], 24
      %v919 = vld [vmem:[%s918] sm:$0xff]
      %v920 = vld [vmem:[%s918 + $0x8] sm:$0xff]
      %v921 = vld [vmem:[%s918 + $0x10] sm:$0xff]
      %v922 = vpack.c.bf16 %v917, %v917
      %923 = vmatprep.subr.bf16.mxu0 %v789
      %924 = vmatpush1.bf16.msra.mxu0 %v788
      %925 = vmatprep.subr.bf16.mxu0 %v786
      %926 = vmatpush1.bf16.msra.mxu0 %v785
      %927 = vmatprep.subr.bf16.mxu0 %v783
      %928 = vmatpush1.bf16.msra.mxu0 %v782
      %929 = vmatprep.subr.bf16.mxu0 %v780
      %930 = vmatpush1.bf16.msra.mxu0 %v779
      %931 = vmatprep.subr.bf16.mxu0 %v777
      %932 = vmatpush1.bf16.msra.mxu0 %v776
      %933 = vmatprep.subr.bf16.mxu0 %v774
      %934 = vmatpush1.bf16.msra.mxu0 %v773
      %935 = vmatprep.subr.bf16.mxu0 %v771
      %936 = vmatpush1.bf16.msra.mxu0 %v770
      %937 = vmatprep.subr.bf16.mxu0 %v768
      %938 = vmatpush1.bf16.msra.mxu0 %v767
      %939 = vmatprep.subr.bf16.mxu0 0
      %940 = vmatpush2.bf16.msra.mxu0 0
      %941 = vmatprep.subr.bf16.mxu0 0
      %942 = vmatpush2.bf16.msra.mxu0 0
      %943 = vmatprep.subr.bf16.mxu0 0
      %944 = vmatpush2.bf16.msra.mxu0 0
      %945 = vmatprep.subr.bf16.mxu0 0
      %946 = vmatpush2.bf16.msra.mxu0 0
      %947 = vmatprep.subr.bf16.mxu0 0
      %948 = vmatpush2.bf16.msra.mxu0 0
      %949 = vmatprep.subr.bf16.mxu0 0
      %950 = vmatpush2.bf16.msra.mxu0 0
      %951 = vmatprep.subr.bf16.mxu0 0
      %952 = vmatpush2.bf16.msra.mxu0 0
      %953 = vmatprep.subr.bf16.mxu0 0
      %954 = vmatpush2.bf16.msra.mxu0 0
      %955 = vmatprep.mubr.bf16.mxu0 0
      %956 = vmatmul.mubr.bf16.gmra.mxu0 %v922
      %v957 = vpop.f32.mrf.mxu0
      %v958 = vadd.f32 0.0, %v957
      %v959 = vpop.f32.mrf.mxu0
      %v960 = vadd.f32 0.0, %v959
      %v961 = vpop.f32.mrf.mxu0
      %v962 = vpop.f32.mrf.mxu0
      %963 = vdwg.mxu0
      %964 = vmatprep.subr.bf16.mxu0 0
      %965 = vmatpush1.bf16.msra.mxu0 %v790
      %966 = vmatprep.subr.bf16.mxu0 0
      %967 = vmatpush1.bf16.msra.mxu0 %v787
      %968 = vmatprep.subr.bf16.mxu0 0
      %969 = vmatpush1.bf16.msra.mxu0 %v784
      %970 = vmatprep.subr.bf16.mxu0 0
      %971 = vmatpush1.bf16.msra.mxu0 %v781
      %972 = vmatprep.subr.bf16.mxu0 0
      %973 = vmatpush1.bf16.msra.mxu0 %v778
      %974 = vmatprep.subr.bf16.mxu0 0
      %975 = vmatpush1.bf16.msra.mxu0 %v775
      %976 = vmatprep.subr.bf16.mxu0 0
      %977 = vmatpush1.bf16.msra.mxu0 %v772
      %978 = vmatprep.subr.bf16.mxu0 0
      %979 = vmatpush1.bf16.msra.mxu0 %v769
      %980 = vmatprep.subr.bf16.mxu0 0
      %981 = vmatpush2.bf16.msra.mxu0 0
      %982 = vmatprep.subr.bf16.mxu0 0
      %983 = vmatpush2.bf16.msra.mxu0 0
      %984 = vmatprep.subr.bf16.mxu0 0
      %985 = vmatpush2.bf16.msra.mxu0 0
      %986 = vmatprep.subr.bf16.mxu0 0
      %987 = vmatpush2.bf16.msra.mxu0 0
      %988 = vmatprep.subr.bf16.mxu0 0
      %989 = vmatpush2.bf16.msra.mxu0 0
      %990 = vmatprep.subr.bf16.mxu0 0
      %991 = vmatpush2.bf16.msra.mxu0 0
      %992 = vmatprep.subr.bf16.mxu0 0
      %993 = vmatpush2.bf16.msra.mxu0 0
      %994 = vmatprep.subr.bf16.mxu0 0
      %995 = vmatpush2.bf16.msra.mxu0 0
      %996 = vmatprep.mubr.bf16.mxu0 0
      %997 = vmatmul.mubr.bf16.gmra.mxu0 %v922
      %v998 = vpop.f32.mrf.mxu0
      %v999 = vadd.f32 0.0, %v998
      %v1000 = vpop.f32.mrf.mxu0
      %v1001 = vpop.f32.mrf.mxu0
      %v1002 = vpop.f32.mrf.mxu0
      %1003 = vdwg.mxu0
      %v1004 = vadd.f32 %v919, %v958
      %v1005 = vxor.u32 %v1004, 2147483648
      %v1006 = vmul.f32 %v1005, 1.442695
      %v1007 = vpow.pop %v1006
      %v1008 = vadd.f32 %v1007, 1.0
      %v1009 = vrcp.pop %v1008
      %v1010 = vmul.f32 1.0, %v1009
      %v1011 = vadd.f32 %v920, %v960
      %v1012 = vxor.u32 %v1011, 2147483648
      %v1013 = vmul.f32 %v1012, 1.442695
      %v1014 = vpow.pop %v1013
      %v1015 = vadd.f32 %v1014, 1.0
      %v1016 = vrcp.pop %v1015
      %v1017 = vmul.f32 1.0, %v1016
      %v1018 = vadd.f32 %v999, %v680
      %v1019 = vmul.f32 %v1010, %v1018
      %v1020 = vadd.f32 %v921, %v1019
      %v1021 = vtanh.pop %v1020
      %v1022 = vsub.f32 1.0, %v1017
      %v1023 = vmul.f32 %v1022, %v1021
      %v1024 = vmul.f32 %v1017, %v917
      %v1025 = vadd.f32 %v1023, %v1024
      %s1026 = scalar_lea.vmem [#allocation2], 48
      %v1027 = vld [vmem:[%s1026] sm:$0xff]
      %v1028 = vld [vmem:[%s1026 + $0x8] sm:$0xff]
      %v1029 = vld [vmem:[%s1026 + $0x10] sm:$0xff]
      %v1030 = vpack.c.bf16 %v1025, %v1025
      %1031 = vmatprep.subr.bf16.mxu0 %v789
      %1032 = vmatpush1.bf16.msra.mxu0 %v788
      %1033 = vmatprep.subr.bf16.mxu0 %v786
      %1034 = vmatpush1.bf16.msra.mxu0 %v785
      %1035 = vmatprep.subr.bf16.mxu0 %v783
      %1036 = vmatpush1.bf16.msra.mxu0 %v782
      %1037 = vmatprep.subr.bf16.mxu0 %v780
      %1038 = vmatpush1.bf16.msra.mxu0 %v779
      %1039 = vmatprep.subr.bf16.mxu0 %v777
      %1040 = vmatpush1.bf16.msra.mxu0 %v776
      %1041 = vmatprep.subr.bf16.mxu0 %v774
      %1042 = vmatpush1.bf16.msra.mxu0 %v773
      %1043 = vmatprep.subr.bf16.mxu0 %v771
      %1044 = vmatpush1.bf16.msra.mxu0 %v770
      %1045 = vmatprep.subr.bf16.mxu0 %v768
      %1046 = vmatpush1.bf16.msra.mxu0 %v767
      %1047 = vmatprep.subr.bf16.mxu0 0
      %1048 = vmatpush2.bf16.msra.mxu0 0
      %1049 = vmatprep.subr.bf16.mxu0 0
      %1050 = vmatpush2.bf16.msra.mxu0 0
      %1051 = vmatprep.subr.bf16.mxu0 0
      %1052 = vmatpush2.bf16.msra.mxu0 0
      %1053 = vmatprep.subr.bf16.mxu0 0
      %1054 = vmatpush2.bf16.msra.mxu0 0
      %1055 = vmatprep.subr.bf16.mxu0 0
      %1056 = vmatpush2.bf16.msra.mxu0 0
      %1057 = vmatprep.subr.bf16.mxu0 0
      %1058 = vmatpush2.bf16.msra.mxu0 0
      %1059 = vmatprep.subr.bf16.mxu0 0
      %1060 = vmatpush2.bf16.msra.mxu0 0
      %1061 = vmatprep.subr.bf16.mxu0 0
      %1062 = vmatpush2.bf16.msra.mxu0 0
      %1063 = vmatprep.mubr.bf16.mxu0 0
      %1064 = vmatmul.mubr.bf16.gmra.mxu0 %v1030
      %v1065 = vpop.f32.mrf.mxu0
      %v1066 = vadd.f32 0.0, %v1065
      %v1067 = vpop.f32.mrf.mxu0
      %v1068 = vadd.f32 0.0, %v1067
      %v1069 = vpop.f32.mrf.mxu0
      %v1070 = vpop.f32.mrf.mxu0
      %1071 = vdwg.mxu0
      %1072 = vmatprep.subr.bf16.mxu0 0
      %1073 = vmatpush1.bf16.msra.mxu0 %v790
      %1074 = vmatprep.subr.bf16.mxu0 0
      %1075 = vmatpush1.bf16.msra.mxu0 %v787
      %1076 = vmatprep.subr.bf16.mxu0 0
      %1077 = vmatpush1.bf16.msra.mxu0 %v784
      %1078 = vmatprep.subr.bf16.mxu0 0
      %1079 = vmatpush1.bf16.msra.mxu0 %v781
      %1080 = vmatprep.subr.bf16.mxu0 0
      %1081 = vmatpush1.bf16.msra.mxu0 %v778
      %1082 = vmatprep.subr.bf16.mxu0 0
      %1083 = vmatpush1.bf16.msra.mxu0 %v775
      %1084 = vmatprep.subr.bf16.mxu0 0
      %1085 = vmatpush1.bf16.msra.mxu0 %v772
      %1086 = vmatprep.subr.bf16.mxu0 0
      %1087 = vmatpush1.bf16.msra.mxu0 %v769
      %1088 = vmatprep.subr.bf16.mxu0 0
      %1089 = vmatpush2.bf16.msra.mxu0 0
      %1090 = vmatprep.subr.bf16.mxu0 0
      %1091 = vmatpush2.bf16.msra.mxu0 0
      %1092 = vmatprep.subr.bf16.mxu0 0
      %1093 = vmatpush2.bf16.msra.mxu0 0
      %1094 = vmatprep.subr.bf16.mxu0 0
      %1095 = vmatpush2.bf16.msra.mxu0 0
      %1096 = vmatprep.subr.bf16.mxu0 0
      %1097 = vmatpush2.bf16.msra.mxu0 0
      %1098 = vmatprep.subr.bf16.mxu0 0
      %1099 = vmatpush2.bf16.msra.mxu0 0
      %1100 = vmatprep.subr.bf16.mxu0 0
      %1101 = vmatpush2.bf16.msra.mxu0 0
      %1102 = vmatprep.subr.bf16.mxu0 0
      %1103 = vmatpush2.bf16.msra.mxu0 0
      %1104 = vmatprep.mubr.bf16.mxu0 0
      %1105 = vmatmul.mubr.bf16.gmra.mxu0 %v1030
      %v1106 = vpop.f32.mrf.mxu0
      %v1107 = vadd.f32 0.0, %v1106
      %v1108 = vpop.f32.mrf.mxu0
      %v1109 = vpop.f32.mrf.mxu0
      %v1110 = vpop.f32.mrf.mxu0
      %1111 = vdwg.mxu0
      %v1112 = vadd.f32 %v1027, %v1066
      %v1113 = vxor.u32 %v1112, 2147483648
      %v1114 = vmul.f32 %v1113, 1.442695
      %v1115 = vpow.pop %v1114
      %v1116 = vadd.f32 %v1115, 1.0
      %v1117 = vrcp.pop %v1116
      %v1118 = vmul.f32 1.0, %v1117
      %v1119 = vadd.f32 %v1028, %v1068
      %v1120 = vxor.u32 %v1119, 2147483648
      %v1121 = vmul.f32 %v1120, 1.442695
      %v1122 = vpow.pop %v1121
      %v1123 = vadd.f32 %v1122, 1.0
      %v1124 = vrcp.pop %v1123
      %v1125 = vmul.f32 1.0, %v1124
      %v1126 = vadd.f32 %v1107, %v680
      %v1127 = vmul.f32 %v1118, %v1126
      %v1128 = vadd.f32 %v1029, %v1127
      %v1129 = vtanh.pop %v1128
      %v1130 = vsub.f32 1.0, %v1125
      %v1131 = vmul.f32 %v1130, %v1129
      %v1132 = vmul.f32 %v1125, %v1025
      %v1133 = vadd.f32 %v1131, %v1132
      %s1134 = scalar_lea.vmem [#allocation2], 72
      %v1135 = vld [vmem:[%s1134] sm:$0xff]
      %v1136 = vld [vmem:[%s1134 + $0x8] sm:$0xff]
      %v1137 = vld [vmem:[%s1134 + $0x10] sm:$0xff]
      %v1138 = vpack.c.bf16 %v1133, %v1133
      %1139 = vmatprep.subr.bf16.mxu0 %v789
      %1140 = vmatpush1.bf16.msra.mxu0 %v788
      %1141 = vmatprep.subr.bf16.mxu0 %v786
      %1142 = vmatpush1.bf16.msra.mxu0 %v785
      %1143 = vmatprep.subr.bf16.mxu0 %v783
      %1144 = vmatpush1.bf16.msra.mxu0 %v782
      %1145 = vmatprep.subr.bf16.mxu0 %v780
      %1146 = vmatpush1.bf16.msra.mxu0 %v779
      %1147 = vmatprep.subr.bf16.mxu0 %v777
      %1148 = vmatpush1.bf16.msra.mxu0 %v776
      %1149 = vmatprep.subr.bf16.mxu0 %v774
      %1150 = vmatpush1.bf16.msra.mxu0 %v773
      %1151 = vmatprep.subr.bf16.mxu0 %v771
      %1152 = vmatpush1.bf16.msra.mxu0 %v770
      %1153 = vmatprep.subr.bf16.mxu0 %v768
      %1154 = vmatpush1.bf16.msra.mxu0 %v767
      %1155 = vmatprep.subr.bf16.mxu0 0
      %1156 = vmatpush2.bf16.msra.mxu0 0
      %1157 = vmatprep.subr.bf16.mxu0 0
      %1158 = vmatpush2.bf16.msra.mxu0 0
      %1159 = vmatprep.subr.bf16.mxu0 0
      %1160 = vmatpush2.bf16.msra.mxu0 0
      %1161 = vmatprep.subr.bf16.mxu0 0
      %1162 = vmatpush2.bf16.msra.mxu0 0
      %1163 = vmatprep.subr.bf16.mxu0 0
      %1164 = vmatpush2.bf16.msra.mxu0 0
      %1165 = vmatprep.subr.bf16.mxu0 0
      %1166 = vmatpush2.bf16.msra.mxu0 0
      %1167 = vmatprep.subr.bf16.mxu0 0
      %1168 = vmatpush2.bf16.msra.mxu0 0
      %1169 = vmatprep.subr.bf16.mxu0 0
      %1170 = vmatpush2.bf16.msra.mxu0 0
      %1171 = vmatprep.mubr.bf16.mxu0 0
      %1172 = vmatmul.mubr.bf16.gmra.mxu0 %v1138
      %v1173 = vpop.f32.mrf.mxu0
      %v1174 = vadd.f32 0.0, %v1173
      %v1175 = vpop.f32.mrf.mxu0
      %v1176 = vadd.f32 0.0, %v1175
      %v1177 = vpop.f32.mrf.mxu0
      %v1178 = vpop.f32.mrf.mxu0
      %1179 = vdwg.mxu0
      %1180 = vmatprep.subr.bf16.mxu0 0
      %1181 = vmatpush1.bf16.msra.mxu0 %v790
      %1182 = vmatprep.subr.bf16.mxu0 0
      %1183 = vmatpush1.bf16.msra.mxu0 %v787
      %1184 = vmatprep.subr.bf16.mxu0 0
      %1185 = vmatpush1.bf16.msra.mxu0 %v784
      %1186 = vmatprep.subr.bf16.mxu0 0
      %1187 = vmatpush1.bf16.msra.mxu0 %v781
      %1188 = vmatprep.subr.bf16.mxu0 0
      %1189 = vmatpush1.bf16.msra.mxu0 %v778
      %1190 = vmatprep.subr.bf16.mxu0 0
      %1191 = vmatpush1.bf16.msra.mxu0 %v775
      %1192 = vmatprep.subr.bf16.mxu0 0
      %1193 = vmatpush1.bf16.msra.mxu0 %v772
      %1194 = vmatprep.subr.bf16.mxu0 0
      %1195 = vmatpush1.bf16.msra.mxu0 %v769
      %1196 = vmatprep.subr.bf16.mxu0 0
      %1197 = vmatpush2.bf16.msra.mxu0 0
      %1198 = vmatprep.subr.bf16.mxu0 0
      %1199 = vmatpush2.bf16.msra.mxu0 0
      %1200 = vmatprep.subr.bf16.mxu0 0
      %1201 = vmatpush2.bf16.msra.mxu0 0
      %1202 = vmatprep.subr.bf16.mxu0 0
      %1203 = vmatpush2.bf16.msra.mxu0 0
      %1204 = vmatprep.subr.bf16.mxu0 0
      %1205 = vmatpush2.bf16.msra.mxu0 0
      %1206 = vmatprep.subr.bf16.mxu0 0
      %1207 = vmatpush2.bf16.msra.mxu0 0
      %1208 = vmatprep.subr.bf16.mxu0 0
      %1209 = vmatpush2.bf16.msra.mxu0 0
      %1210 = vmatprep.subr.bf16.mxu0 0
      %1211 = vmatpush2.bf16.msra.mxu0 0
      %1212 = vmatprep.mubr.bf16.mxu0 0
      %1213 = vmatmul.mubr.bf16.gmra.mxu0 %v1138
      %v1214 = vpop.f32.mrf.mxu0
      %v1215 = vadd.f32 0.0, %v1214
      %v1216 = vpop.f32.mrf.mxu0
      %v1217 = vpop.f32.mrf.mxu0
      %v1218 = vpop.f32.mrf.mxu0
      %1219 = vdwg.mxu0
      %v1220 = vadd.f32 %v1135, %v1174
      %v1221 = vxor.u32 %v1220, 2147483648
      %v1222 = vmul.f32 %v1221, 1.442695
      %v1223 = vpow.pop %v1222
      %v1224 = vadd.f32 %v1223, 1.0
      %v1225 = vrcp.pop %v1224
      %v1226 = vmul.f32 1.0, %v1225
      %v1227 = vadd.f32 %v1136, %v1176
      %v1228 = vxor.u32 %v1227, 2147483648
      %v1229 = vmul.f32 %v1228, 1.442695
      %v1230 = vpow.pop %v1229
      %v1231 = vadd.f32 %v1230, 1.0
      %v1232 = vrcp.pop %v1231
      %v1233 = vmul.f32 1.0, %v1232
      %v1234 = vadd.f32 %v1215, %v680
      %v1235 = vmul.f32 %v1226, %v1234
      %v1236 = vadd.f32 %v1137, %v1235
      %v1237 = vtanh.pop %v1236
      %v1238 = vsub.f32 1.0, %v1233
      %v1239 = vmul.f32 %v1238, %v1237
      %v1240 = vmul.f32 %v1233, %v1133
      %v1241 = vadd.f32 %v1239, %v1240
      %s1242 = scalar_lea.vmem [#allocation2], 96
      %v1243 = vld [vmem:[%s1242] sm:$0xff]
      %v1244 = vld [vmem:[%s1242 + $0x8] sm:$0xff]
      %v1245 = vld [vmem:[%s1242 + $0x10] sm:$0xff]
      %v1246 = vpack.c.bf16 %v1241, %v1241
      %1247 = vmatprep.subr.bf16.mxu0 %v789
      %1248 = vmatpush1.bf16.msra.mxu0 %v788
      %1249 = vmatprep.subr.bf16.mxu0 %v786
      %1250 = vmatpush1.bf16.msra.mxu0 %v785
      %1251 = vmatprep.subr.bf16.mxu0 %v783
      %1252 = vmatpush1.bf16.msra.mxu0 %v782
      %1253 = vmatprep.subr.bf16.mxu0 %v780
      %1254 = vmatpush1.bf16.msra.mxu0 %v779
      %1255 = vmatprep.subr.bf16.mxu0 %v777
      %1256 = vmatpush1.bf16.msra.mxu0 %v776
      %1257 = vmatprep.subr.bf16.mxu0 %v774
      %1258 = vmatpush1.bf16.msra.mxu0 %v773
      %1259 = vmatprep.subr.bf16.mxu0 %v771
      %1260 = vmatpush1.bf16.msra.mxu0 %v770
      %1261 = vmatprep.subr.bf16.mxu0 %v768
      %1262 = vmatpush1.bf16.msra.mxu0 %v767
      %1263 = vmatprep.subr.bf16.mxu0 0
      %1264 = vmatpush2.bf16.msra.mxu0 0
      %1265 = vmatprep.subr.bf16.mxu0 0
      %1266 = vmatpush2.bf16.msra.mxu0 0
      %1267 = vmatprep.subr.bf16.mxu0 0
      %1268 = vmatpush2.bf16.msra.mxu0 0
      %1269 = vmatprep.subr.bf16.mxu0 0
      %1270 = vmatpush2.bf16.msra.mxu0 0
      %1271 = vmatprep.subr.bf16.mxu0 0
      %1272 = vmatpush2.bf16.msra.mxu0 0
      %1273 = vmatprep.subr.bf16.mxu0 0
      %1274 = vmatpush2.bf16.msra.mxu0 0
      %1275 = vmatprep.subr.bf16.mxu0 0
      %1276 = vmatpush2.bf16.msra.mxu0 0
      %1277 = vmatprep.subr.bf16.mxu0 0
      %1278 = vmatpush2.bf16.msra.mxu0 0
      %1279 = vmatprep.mubr.bf16.mxu0 0
      %1280 = vmatmul.mubr.bf16.gmra.mxu0 %v1246
      %v1281 = vpop.f32.mrf.mxu0
      %v1282 = vadd.f32 0.0, %v1281
      %v1283 = vpop.f32.mrf.mxu0
      %v1284 = vadd.f32 0.0, %v1283
      %v1285 = vpop.f32.mrf.mxu0
      %v1286 = vpop.f32.mrf.mxu0
      %1287 = vdwg.mxu0
      %1288 = vmatprep.subr.bf16.mxu0 0
      %1289 = vmatpush1.bf16.msra.mxu0 %v790
      %1290 = vmatprep.subr.bf16.mxu0 0
      %1291 = vmatpush1.bf16.msra.mxu0 %v787
      %1292 = vmatprep.subr.bf16.mxu0 0
      %1293 = vmatpush1.bf16.msra.mxu0 %v784
      %1294 = vmatprep.subr.bf16.mxu0 0
      %1295 = vmatpush1.bf16.msra.mxu0 %v781
      %1296 = vmatprep.subr.bf16.mxu0 0
      %1297 = vmatpush1.bf16.msra.mxu0 %v778
      %1298 = vmatprep.subr.bf16.mxu0 0
      %1299 = vmatpush1.bf16.msra.mxu0 %v775
      %1300 = vmatprep.subr.bf16.mxu0 0
      %1301 = vmatpush1.bf16.msra.mxu0 %v772
      %1302 = vmatprep.subr.bf16.mxu0 0
      %1303 = vmatpush1.bf16.msra.mxu0 %v769
      %1304 = vmatprep.subr.bf16.mxu0 0
      %1305 = vmatpush2.bf16.msra.mxu0 0
      %1306 = vmatprep.subr.bf16.mxu0 0
      %1307 = vmatpush2.bf16.msra.mxu0 0
      %1308 = vmatprep.subr.bf16.mxu0 0
      %1309 = vmatpush2.bf16.msra.mxu0 0
      %1310 = vmatprep.subr.bf16.mxu0 0
      %1311 = vmatpush2.bf16.msra.mxu0 0
      %1312 = vmatprep.subr.bf16.mxu0 0
      %1313 = vmatpush2.bf16.msra.mxu0 0
      %1314 = vmatprep.subr.bf16.mxu0 0
      %1315 = vmatpush2.bf16.msra.mxu0 0
      %1316 = vmatprep.subr.bf16.mxu0 0
      %1317 = vmatpush2.bf16.msra.mxu0 0
      %1318 = vmatprep.subr.bf16.mxu0 0
      %1319 = vmatpush2.bf16.msra.mxu0 0
      %1320 = vmatprep.mubr.bf16.mxu0 0
      %1321 = vmatmul.mubr.bf16.gmra.mxu0 %v1246
      %v1322 = vpop.f32.mrf.mxu0
      %v1323 = vadd.f32 0.0, %v1322
      %v1324 = vpop.f32.mrf.mxu0
      %v1325 = vpop.f32.mrf.mxu0
      %v1326 = vpop.f32.mrf.mxu0
      %1327 = vdwg.mxu0
      %v1328 = vadd.f32 %v1243, %v1282
      %v1329 = vxor.u32 %v1328, 2147483648
      %v1330 = vmul.f32 %v1329, 1.442695
      %v1331 = vpow.pop %v1330
      %v1332 = vadd.f32 %v1331, 1.0
      %v1333 = vrcp.pop %v1332
      %v1334 = vmul.f32 1.0, %v1333
      %v1335 = vadd.f32 %v1244, %v1284
      %v1336 = vxor.u32 %v1335, 2147483648
      %v1337 = vmul.f32 %v1336, 1.442695
      %v1338 = vpow.pop %v1337
      %v1339 = vadd.f32 %v1338, 1.0
      %v1340 = vrcp.pop %v1339
      %v1341 = vmul.f32 1.0, %v1340
      %v1342 = vadd.f32 %v1323, %v680
      %v1343 = vmul.f32 %v1334, %v1342
      %v1344 = vadd.f32 %v1245, %v1343
      %v1345 = vtanh.pop %v1344
      %v1346 = vsub.f32 1.0, %v1341
      %v1347 = vmul.f32 %v1346, %v1345
      %v1348 = vmul.f32 %v1341, %v1241
      %v1349 = vadd.f32 %v1347, %v1348
      %s1350 = scalar_lea.vmem [#allocation2], 120
      %v1351 = vld [vmem:[%s1350] sm:$0xff]
      %v1352 = vld [vmem:[%s1350 + $0x8] sm:$0xff]
      %v1353 = vld [vmem:[%s1350 + $0x10] sm:$0xff]
      %v1354 = vpack.c.bf16 %v1349, %v1349
      %1355 = vmatprep.subr.bf16.mxu0 %v789
      %1356 = vmatpush1.bf16.msra.mxu0 %v788
      %1357 = vmatprep.subr.bf16.mxu0 %v786
      %1358 = vmatpush1.bf16.msra.mxu0 %v785
      %1359 = vmatprep.subr.bf16.mxu0 %v783
      %1360 = vmatpush1.bf16.msra.mxu0 %v782
      %1361 = vmatprep.subr.bf16.mxu0 %v780
      %1362 = vmatpush1.bf16.msra.mxu0 %v779
      %1363 = vmatprep.subr.bf16.mxu0 %v777
      %1364 = vmatpush1.bf16.msra.mxu0 %v776
      %1365 = vmatprep.subr.bf16.mxu0 %v774
      %1366 = vmatpush1.bf16.msra.mxu0 %v773
      %1367 = vmatprep.subr.bf16.mxu0 %v771
      %1368 = vmatpush1.bf16.msra.mxu0 %v770
      %1369 = vmatprep.subr.bf16.mxu0 %v768
      %1370 = vmatpush1.bf16.msra.mxu0 %v767
      %1371 = vmatprep.subr.bf16.mxu0 0
      %1372 = vmatpush2.bf16.msra.mxu0 0
      %1373 = vmatprep.subr.bf16.mxu0 0
      %1374 = vmatpush2.bf16.msra.mxu0 0
      %1375 = vmatprep.subr.bf16.mxu0 0
      %1376 = vmatpush2.bf16.msra.mxu0 0
      %1377 = vmatprep.subr.bf16.mxu0 0
      %1378 = vmatpush2.bf16.msra.mxu0 0
      %1379 = vmatprep.subr.bf16.mxu0 0
      %1380 = vmatpush2.bf16.msra.mxu0 0
      %1381 = vmatprep.subr.bf16.mxu0 0
      %1382 = vmatpush2.bf16.msra.mxu0 0
      %1383 = vmatprep.subr.bf16.mxu0 0
      %1384 = vmatpush2.bf16.msra.mxu0 0
      %1385 = vmatprep.subr.bf16.mxu0 0
      %1386 = vmatpush2.bf16.msra.mxu0 0
      %1387 = vmatprep.mubr.bf16.mxu0 0
      %1388 = vmatmul.mubr.bf16.gmra.mxu0 %v1354
      %v1389 = vpop.f32.mrf.mxu0
      %v1390 = vadd.f32 0.0, %v1389
      %v1391 = vpop.f32.mrf.mxu0
      %v1392 = vadd.f32 0.0, %v1391
      %v1393 = vpop.f32.mrf.mxu0
      %v1394 = vpop.f32.mrf.mxu0
      %1395 = vdwg.mxu0
      %1396 = vmatprep.subr.bf16.mxu0 0
      %1397 = vmatpush1.bf16.msra.mxu0 %v790
      %1398 = vmatprep.subr.bf16.mxu0 0
      %1399 = vmatpush1.bf16.msra.mxu0 %v787
      %1400 = vmatprep.subr.bf16.mxu0 0
      %1401 = vmatpush1.bf16.msra.mxu0 %v784
      %1402 = vmatprep.subr.bf16.mxu0 0
      %1403 = vmatpush1.bf16.msra.mxu0 %v781
      %1404 = vmatprep.subr.bf16.mxu0 0
      %1405 = vmatpush1.bf16.msra.mxu0 %v778
      %1406 = vmatprep.subr.bf16.mxu0 0
      %1407 = vmatpush1.bf16.msra.mxu0 %v775
      %1408 = vmatprep.subr.bf16.mxu0 0
      %1409 = vmatpush1.bf16.msra.mxu0 %v772
      %1410 = vmatprep.subr.bf16.mxu0 0
      %1411 = vmatpush1.bf16.msra.mxu0 %v769
      %1412 = vmatprep.subr.bf16.mxu0 0
      %1413 = vmatpush2.bf16.msra.mxu0 0
      %1414 = vmatprep.subr.bf16.mxu0 0
      %1415 = vmatpush2.bf16.msra.mxu0 0
      %1416 = vmatprep.subr.bf16.mxu0 0
      %1417 = vmatpush2.bf16.msra.mxu0 0
      %1418 = vmatprep.subr.bf16.mxu0 0
      %1419 = vmatpush2.bf16.msra.mxu0 0
      %1420 = vmatprep.subr.bf16.mxu0 0
      %1421 = vmatpush2.bf16.msra.mxu0 0
      %1422 = vmatprep.subr.bf16.mxu0 0
      %1423 = vmatpush2.bf16.msra.mxu0 0
      %1424 = vmatprep.subr.bf16.mxu0 0
      %1425 = vmatpush2.bf16.msra.mxu0 0
      %1426 = vmatprep.subr.bf16.mxu0 0
      %1427 = vmatpush2.bf16.msra.mxu0 0
      %1428 = vmatprep.mubr.bf16.mxu0 0
      %1429 = vmatmul.mubr.bf16.gmra.mxu0 %v1354
      %v1430 = vpop.f32.mrf.mxu0
      %v1431 = vadd.f32 0.0, %v1430
      %v1432 = vpop.f32.mrf.mxu0
      %v1433 = vpop.f32.mrf.mxu0
      %v1434 = vpop.f32.mrf.mxu0
      %1435 = vdwg.mxu0
      %v1436 = vadd.f32 %v1351, %v1390
      %v1437 = vxor.u32 %v1436, 2147483648
      %v1438 = vmul.f32 %v1437, 1.442695
      %v1439 = vpow.pop %v1438
      %v1440 = vadd.f32 %v1439, 1.0
      %v1441 = vrcp.pop %v1440
      %v1442 = vmul.f32 1.0, %v1441
      %v1443 = vadd.f32 %v1352, %v1392
      %v1444 = vxor.u32 %v1443, 2147483648
      %v1445 = vmul.f32 %v1444, 1.442695
      %v1446 = vpow.pop %v1445
      %v1447 = vadd.f32 %v1446, 1.0
      %v1448 = vrcp.pop %v1447
      %v1449 = vmul.f32 1.0, %v1448
      %v1450 = vadd.f32 %v1431, %v680
      %v1451 = vmul.f32 %v1442, %v1450
      %v1452 = vadd.f32 %v1353, %v1451
      %v1453 = vtanh.pop %v1452
      %v1454 = vsub.f32 1.0, %v1449
      %v1455 = vmul.f32 %v1454, %v1453
      %v1456 = vmul.f32 %v1449, %v1349
      %v1457 = vadd.f32 %v1455, %v1456
      %s1458 = scalar_lea.vmem [#allocation2], 144
      %v1459 = vld [vmem:[%s1458] sm:$0xff]
      %v1460 = vld [vmem:[%s1458 + $0x8] sm:$0xff]
      %v1461 = vld [vmem:[%s1458 + $0x10] sm:$0xff]
      %v1462 = vpack.c.bf16 %v1457, %v1457
      %1463 = vmatprep.subr.bf16.mxu0 %v789
      %1464 = vmatpush1.bf16.msra.mxu0 %v788
      %1465 = vmatprep.subr.bf16.mxu0 %v786
      %1466 = vmatpush1.bf16.msra.mxu0 %v785
      %1467 = vmatprep.subr.bf16.mxu0 %v783
      %1468 = vmatpush1.bf16.msra.mxu0 %v782
      %1469 = vmatprep.subr.bf16.mxu0 %v780
      %1470 = vmatpush1.bf16.msra.mxu0 %v779
      %1471 = vmatprep.subr.bf16.mxu0 %v777
      %1472 = vmatpush1.bf16.msra.mxu0 %v776
      %1473 = vmatprep.subr.bf16.mxu0 %v774
      %1474 = vmatpush1.bf16.msra.mxu0 %v773
      %1475 = vmatprep.subr.bf16.mxu0 %v771
      %1476 = vmatpush1.bf16.msra.mxu0 %v770
      %1477 = vmatprep.subr.bf16.mxu0 %v768
      %1478 = vmatpush1.bf16.msra.mxu0 %v767
      %1479 = vmatprep.subr.bf16.mxu0 0
      %1480 = vmatpush2.bf16.msra.mxu0 0
      %1481 = vmatprep.subr.bf16.mxu0 0
      %1482 = vmatpush2.bf16.msra.mxu0 0
      %1483 = vmatprep.subr.bf16.mxu0 0
      %1484 = vmatpush2.bf16.msra.mxu0 0
      %1485 = vmatprep.subr.bf16.mxu0 0
      %1486 = vmatpush2.bf16.msra.mxu0 0
      %1487 = vmatprep.subr.bf16.mxu0 0
      %1488 = vmatpush2.bf16.msra.mxu0 0
      %1489 = vmatprep.subr.bf16.mxu0 0
      %1490 = vmatpush2.bf16.msra.mxu0 0
      %1491 = vmatprep.subr.bf16.mxu0 0
      %1492 = vmatpush2.bf16.msra.mxu0 0
      %1493 = vmatprep.subr.bf16.mxu0 0
      %1494 = vmatpush2.bf16.msra.mxu0 0
      %1495 = vmatprep.mubr.bf16.mxu0 0
      %1496 = vmatmul.mubr.bf16.gmra.mxu0 %v1462
      %v1497 = vpop.f32.mrf.mxu0
      %v1498 = vadd.f32 0.0, %v1497
      %v1499 = vpop.f32.mrf.mxu0
      %v1500 = vadd.f32 0.0, %v1499
      %v1501 = vpop.f32.mrf.mxu0
      %v1502 = vpop.f32.mrf.mxu0
      %1503 = vdwg.mxu0
      %1504 = vmatprep.subr.bf16.mxu0 0
      %1505 = vmatpush1.bf16.msra.mxu0 %v790
      %1506 = vmatprep.subr.bf16.mxu0 0
      %1507 = vmatpush1.bf16.msra.mxu0 %v787
      %1508 = vmatprep.subr.bf16.mxu0 0
      %1509 = vmatpush1.bf16.msra.mxu0 %v784
      %1510 = vmatprep.subr.bf16.mxu0 0
      %1511 = vmatpush1.bf16.msra.mxu0 %v781
      %1512 = vmatprep.subr.bf16.mxu0 0
      %1513 = vmatpush1.bf16.msra.mxu0 %v778
      %1514 = vmatprep.subr.bf16.mxu0 0
      %1515 = vmatpush1.bf16.msra.mxu0 %v775
      %1516 = vmatprep.subr.bf16.mxu0 0
      %1517 = vmatpush1.bf16.msra.mxu0 %v772
      %1518 = vmatprep.subr.bf16.mxu0 0
      %1519 = vmatpush1.bf16.msra.mxu0 %v769
      %1520 = vmatprep.subr.bf16.mxu0 0
      %1521 = vmatpush2.bf16.msra.mxu0 0
      %1522 = vmatprep.subr.bf16.mxu0 0
      %1523 = vmatpush2.bf16.msra.mxu0 0
      %1524 = vmatprep.subr.bf16.mxu0 0
      %1525 = vmatpush2.bf16.msra.mxu0 0
      %1526 = vmatprep.subr.bf16.mxu0 0
      %1527 = vmatpush2.bf16.msra.mxu0 0
      %1528 = vmatprep.subr.bf16.mxu0 0
      %1529 = vmatpush2.bf16.msra.mxu0 0
      %1530 = vmatprep.subr.bf16.mxu0 0
      %1531 = vmatpush2.bf16.msra.mxu0 0
      %1532 = vmatprep.subr.bf16.mxu0 0
      %1533 = vmatpush2.bf16.msra.mxu0 0
      %1534 = vmatprep.subr.bf16.mxu0 0
      %1535 = vmatpush2.bf16.msra.mxu0 0
      %1536 = vmatprep.mubr.bf16.mxu0 0
      %1537 = vmatmul.mubr.bf16.gmra.mxu0 %v1462
      %v1538 = vpop.f32.mrf.mxu0
      %v1539 = vadd.f32 0.0, %v1538
      %v1540 = vpop.f32.mrf.mxu0
      %v1541 = vpop.f32.mrf.mxu0
      %v1542 = vpop.f32.mrf.mxu0
      %1543 = vdwg.mxu0
      %v1544 = vadd.f32 %v1459, %v1498
      %v1545 = vxor.u32 %v1544, 2147483648
      %v1546 = vmul.f32 %v1545, 1.442695
      %v1547 = vpow.pop %v1546
      %v1548 = vadd.f32 %v1547, 1.0
      %v1549 = vrcp.pop %v1548
      %v1550 = vmul.f32 1.0, %v1549
      %v1551 = vadd.f32 %v1460, %v1500
      %v1552 = vxor.u32 %v1551, 2147483648
      %v1553 = vmul.f32 %v1552, 1.442695
      %v1554 = vpow.pop %v1553
      %v1555 = vadd.f32 %v1554, 1.0
      %v1556 = vrcp.pop %v1555
      %v1557 = vmul.f32 1.0, %v1556
      %v1558 = vadd.f32 %v1539, %v680
      %v1559 = vmul.f32 %v1550, %v1558
      %v1560 = vadd.f32 %v1461, %v1559
      %v1561 = vtanh.pop %v1560
      %v1562 = vsub.f32 1.0, %v1557
      %v1563 = vmul.f32 %v1562, %v1561
      %v1564 = vmul.f32 %v1557, %v1457
      %v1565 = vadd.f32 %v1563, %v1564
      %s1566 = scalar_lea.vmem [#allocation2], 168
      %v1567 = vld [vmem:[%s1566] sm:$0xff]
      %v1568 = vld [vmem:[%s1566 + $0x8] sm:$0xff]
      %v1569 = vld [vmem:[%s1566 + $0x10] sm:$0xff]
      %v1570 = vpack.c.bf16 %v1565, %v1565
      %1571 = vmatprep.subr.bf16.mxu0 %v789
      %1572 = vmatpush1.bf16.msra.mxu0 %v788
      %1573 = vmatprep.subr.bf16.mxu0 %v786
      %1574 = vmatpush1.bf16.msra.mxu0 %v785
      %1575 = vmatprep.subr.bf16.mxu0 %v783
      %1576 = vmatpush1.bf16.msra.mxu0 %v782
      %1577 = vmatprep.subr.bf16.mxu0 %v780
      %1578 = vmatpush1.bf16.msra.mxu0 %v779
      %1579 = vmatprep.subr.bf16.mxu0 %v777
      %1580 = vmatpush1.bf16.msra.mxu0 %v776
      %1581 = vmatprep.subr.bf16.mxu0 %v774
      %1582 = vmatpush1.bf16.msra.mxu0 %v773
      %1583 = vmatprep.subr.bf16.mxu0 %v771
      %1584 = vmatpush1.bf16.msra.mxu0 %v770
      %1585 = vmatprep.subr.bf16.mxu0 %v768
      %1586 = vmatpush1.bf16.msra.mxu0 %v767
      %1587 = vmatprep.subr.bf16.mxu0 0
      %1588 = vmatpush2.bf16.msra.mxu0 0
      %1589 = vmatprep.subr.bf16.mxu0 0
      %1590 = vmatpush2.bf16.msra.mxu0 0
      %1591 = vmatprep.subr.bf16.mxu0 0
      %1592 = vmatpush2.bf16.msra.mxu0 0
      %1593 = vmatprep.subr.bf16.mxu0 0
      %1594 = vmatpush2.bf16.msra.mxu0 0
      %1595 = vmatprep.subr.bf16.mxu0 0
      %1596 = vmatpush2.bf16.msra.mxu0 0
      %1597 = vmatprep.subr.bf16.mxu0 0
      %1598 = vmatpush2.bf16.msra.mxu0 0
      %1599 = vmatprep.subr.bf16.mxu0 0
      %1600 = vmatpush2.bf16.msra.mxu0 0
      %1601 = vmatprep.subr.bf16.mxu0 0
      %1602 = vmatpush2.bf16.msra.mxu0 0
      %1603 = vmatprep.mubr.bf16.mxu0 0
      %1604 = vmatmul.mubr.bf16.gmra.mxu0 %v1570
      %v1605 = vpop.f32.mrf.mxu0
      %v1606 = vadd.f32 0.0, %v1605
      %v1607 = vpop.f32.mrf.mxu0
      %v1608 = vadd.f32 0.0, %v1607
      %v1609 = vpop.f32.mrf.mxu0
      %v1610 = vpop.f32.mrf.mxu0
      %1611 = vdwg.mxu0
      %1612 = vmatprep.subr.bf16.mxu0 0
      %1613 = vmatpush1.bf16.msra.mxu0 %v790
      %1614 = vmatprep.subr.bf16.mxu0 0
      %1615 = vmatpush1.bf16.msra.mxu0 %v787
      %1616 = vmatprep.subr.bf16.mxu0 0
      %1617 = vmatpush1.bf16.msra.mxu0 %v784
      %1618 = vmatprep.subr.bf16.mxu0 0
      %1619 = vmatpush1.bf16.msra.mxu0 %v781
      %1620 = vmatprep.subr.bf16.mxu0 0
      %1621 = vmatpush1.bf16.msra.mxu0 %v778
      %1622 = vmatprep.subr.bf16.mxu0 0
      %1623 = vmatpush1.bf16.msra.mxu0 %v775
      %1624 = vmatprep.subr.bf16.mxu0 0
      %1625 = vmatpush1.bf16.msra.mxu0 %v772
      %1626 = vmatprep.subr.bf16.mxu0 0
      %1627 = vmatpush1.bf16.msra.mxu0 %v769
      %1628 = vmatprep.subr.bf16.mxu0 0
      %1629 = vmatpush2.bf16.msra.mxu0 0
      %1630 = vmatprep.subr.bf16.mxu0 0
      %1631 = vmatpush2.bf16.msra.mxu0 0
      %1632 = vmatprep.subr.bf16.mxu0 0
      %1633 = vmatpush2.bf16.msra.mxu0 0
      %1634 = vmatprep.subr.bf16.mxu0 0
      %1635 = vmatpush2.bf16.msra.mxu0 0
      %1636 = vmatprep.subr.bf16.mxu0 0
      %1637 = vmatpush2.bf16.msra.mxu0 0
      %1638 = vmatprep.subr.bf16.mxu0 0
      %1639 = vmatpush2.bf16.msra.mxu0 0
      %1640 = vmatprep.subr.bf16.mxu0 0
      %1641 = vmatpush2.bf16.msra.mxu0 0
      %1642 = vmatprep.subr.bf16.mxu0 0
      %1643 = vmatpush2.bf16.msra.mxu0 0
      %1644 = vmatprep.mubr.bf16.mxu0 0
      %1645 = vmatmul.mubr.bf16.gmra.mxu0 %v1570
      %v1646 = vpop.f32.mrf.mxu0
      %v1647 = vadd.f32 0.0, %v1646
      %v1648 = vpop.f32.mrf.mxu0
      %v1649 = vpop.f32.mrf.mxu0
      %v1650 = vpop.f32.mrf.mxu0
      %1651 = vdwg.mxu0
      %v1652 = vadd.f32 %v1567, %v1606
      %v1653 = vxor.u32 %v1652, 2147483648
      %v1654 = vmul.f32 %v1653, 1.442695
      %v1655 = vpow.pop %v1654
      %v1656 = vadd.f32 %v1655, 1.0
      %v1657 = vrcp.pop %v1656
      %v1658 = vmul.f32 1.0, %v1657
      %v1659 = vadd.f32 %v1568, %v1608
      %v1660 = vxor.u32 %v1659, 2147483648
      %v1661 = vmul.f32 %v1660, 1.442695
      %v1662 = vpow.pop %v1661
      %v1663 = vadd.f32 %v1662, 1.0
      %v1664 = vrcp.pop %v1663
      %v1665 = vmul.f32 1.0, %v1664
      %v1666 = vadd.f32 %v1647, %v680
      %v1667 = vmul.f32 %v1658, %v1666
      %v1668 = vadd.f32 %v1569, %v1667
      %v1669 = vtanh.pop %v1668
      %v1670 = vsub.f32 1.0, %v1665
      %v1671 = vmul.f32 %v1670, %v1669
      %v1672 = vmul.f32 %v1665, %v1565
      %v1673 = vadd.f32 %v1671, %v1672
      %1674 = vst [vmem:[#allocation3] sm:$0xff] %v1673
      %p1675 = scmp.eq.s32.totalorder %s18, 1
      // Predicated region
      $region53: #{gru_model_forward.3} parent=47 // pred_check
        %p1676 = pneg %p1675
      $region54: #{gru_model_forward.3} parent=47 // pred_check_branch
        %1678 = sbr.rel (%p1676) target = $region56
      $region55: #{gru_model_forward.3} parent=47 // pred_region
        %v1679 = vpack.c.bf16 %v1673, %v1673
        %v1680 = vld [vmem:[%s5] sm:$0xf]
        %v1681 = vld [vmem:[%s5 + $0x4] sm:$0xf]
        %v1682 = vld [vmem:[%s5 + $0x8] sm:$0xf]
        %v1683 = vld [vmem:[%s5 + $0xc] sm:$0xf]
        %v1684 = vld [vmem:[%s5 + $0x10] sm:$0xf]
        %v1685 = vld [vmem:[%s5 + $0x14] sm:$0xf]
        %v1686 = vld [vmem:[%s5 + $0x18] sm:$0xf]
        %v1687 = vld [vmem:[%s5 + $0x1c] sm:$0xf]
        %v1688 = vld [vmem:[%s5 + $0x20] sm:$0xf]
        %v1689 = vld [vmem:[%s5 + $0x24] sm:$0xf]
        %v1690 = vld [vmem:[%s5 + $0x28] sm:$0xf]
        %v1691 = vld [vmem:[%s5 + $0x2c] sm:$0xf]
        %v1692 = vld [vmem:[%s5 + $0x30] sm:$0xf]
        %v1693 = vld [vmem:[%s5 + $0x34] sm:$0xf]
        %v1694 = vld [vmem:[%s5 + $0x38] sm:$0xf]
        %v1695 = vld [vmem:[%s5 + $0x3c] sm:$0xf]
        %v1696 = vld [vmem:[%s6] sm:$0x1]
        %v1698 = vlaneseq
        %v1699 = vshrl.u32 %v1698, 7
        %v1700 = vsub.s32 0, %v1699
        %v1701 = vrot.slane %v1696, %v1700
        %v1719 = vunpack.c.l.b16 %v1680
        %v1720 = vunpack.c.l.b16 %v1681
        %v1721 = vunpack.c.l.b16 %v1682
        %v1722 = vunpack.c.l.b16 %v1683
        %v1723 = vunpack.c.l.b16 %v1684
        %v1724 = vunpack.c.l.b16 %v1685
        %v1725 = vunpack.c.l.b16 %v1686
        %v1726 = vunpack.c.l.b16 %v1687
        %v1727 = vunpack.c.l.b16 %v1688
        %v1728 = vunpack.c.l.b16 %v1689
        %v1729 = vunpack.c.l.b16 %v1690
        %v1730 = vunpack.c.l.b16 %v1691
        %v1731 = vunpack.c.l.b16 %v1692
        %v1732 = vunpack.c.l.b16 %v1693
        %v1733 = vunpack.c.l.b16 %v1694
        %v1734 = vunpack.c.l.b16 %v1695
        %v1735 = vpack.c.b16 %v1720, %v1719
        %v1736 = vpack.c.b16 %v1722, %v1721
        %v1737 = vpack.c.b16 %v1724, %v1723
        %v1738 = vpack.c.b16 %v1726, %v1725
        %v1739 = vpack.c.b16 %v1728, %v1727
        %v1740 = vpack.c.b16 %v1730, %v1729
        %v1741 = vpack.c.b16 %v1732, %v1731
        %v1742 = vpack.c.b16 %v1734, %v1733
        %1751 = vmatprep.subr.bf16.mxu0 0
        %1752 = vmatpush1.bf16.msra.mxu0 %v1742
        %1753 = vmatprep.subr.bf16.mxu0 0
        %1754 = vmatpush1.bf16.msra.mxu0 %v1741
        %1755 = vmatprep.subr.bf16.mxu0 0
        %1756 = vmatpush1.bf16.msra.mxu0 %v1740
        %1757 = vmatprep.subr.bf16.mxu0 0
        %1758 = vmatpush1.bf16.msra.mxu0 %v1739
        %1759 = vmatprep.subr.bf16.mxu0 0
        %1760 = vmatpush1.bf16.msra.mxu0 %v1738
        %1761 = vmatprep.subr.bf16.mxu0 0
        %1762 = vmatpush1.bf16.msra.mxu0 %v1737
        %1763 = vmatprep.subr.bf16.mxu0 0
        %1764 = vmatpush1.bf16.msra.mxu0 %v1736
        %1765 = vmatprep.subr.bf16.mxu0 0
        %1766 = vmatpush1.bf16.msra.mxu0 %v1735
        %1767 = vmatprep.subr.bf16.mxu0 0
        %1768 = vmatpush2.bf16.msra.mxu0 0
        %1769 = vmatprep.subr.bf16.mxu0 0
        %1770 = vmatpush2.bf16.msra.mxu0 0
        %1771 = vmatprep.subr.bf16.mxu0 0
        %1772 = vmatpush2.bf16.msra.mxu0 0
        %1773 = vmatprep.subr.bf16.mxu0 0
        %1774 = vmatpush2.bf16.msra.mxu0 0
        %1775 = vmatprep.subr.bf16.mxu0 0
        %1776 = vmatpush2.bf16.msra.mxu0 0
        %1777 = vmatprep.subr.bf16.mxu0 0
        %1778 = vmatpush2.bf16.msra.mxu0 0
        %1779 = vmatprep.subr.bf16.mxu0 0
        %1780 = vmatpush2.bf16.msra.mxu0 0
        %1781 = vmatprep.subr.bf16.mxu0 0
        %1782 = vmatpush2.bf16.msra.mxu0 0
        %1783 = vmatprep.mubr.bf16.mxu0 0
        %1784 = vmatmul.mubr.bf16.gmra.mxu0 %v1679
        %v1785 = vpop.f32.mrf.mxu0
        %v1786 = vadd.f32 %v1701, %v1785
        %v1787 = vpop.f32.mrf.mxu0
        %v1788 = vpop.f32.mrf.mxu0
        %v1789 = vpop.f32.mrf.mxu0
        %1790 = vdwg.mxu0
        %1791 = vst [vmem:[%s7] sm:$0xff] %v1786
      $region56: #{gru_model_forward.3} parent=47 // pred_fallthru
        _
      // Predicated region
      $region57: #{gru_model_forward.3} parent=47 // pred_check
        %p1792 = pneg %p183
      $region58: #{gru_model_forward.3} parent=47 // pred_check_branch
        %1794 = sbr.rel (%p1792) target = $region60
      $region59: #{gru_model_forward.3} parent=47 // pred_region
        _
      $region60: #{gru_model_forward.3} parent=47 // pred_fallthru
        _
      // Predicated region
      $region61: #{gru_model_forward.3} parent=47 // pred_check
        %p1795 = pneg %p183
      $region62: #{gru_model_forward.3} parent=47 // pred_check_branch
        %1797 = sbr.rel (%p1795) target = $region64
      $region63: #{gru_model_forward.3} parent=47 // pred_region
        _
      $region64: #{gru_model_forward.3} parent=47 // pred_fallthru
        _
    $region48: #{gru_model_forward.3} parent=5 // pred_fallthru
      _
    %p1798 = scmp.le.s32.totalorder 2, %s13
    // Predicated region
    $region65: #{gru_model_forward.3} parent=5 // pred_check
      %p1799 = pneg %p1798
    $region66: #{gru_model_forward.3} parent=5 // pred_check_branch
      %1801 = sbr.rel (%p1799) target = $region68
    $region67: #{gru_model_forward.3} parent=5 // pred_region
      %s1802 = ssub.s32 %s13, 2
    $region68: #{gru_model_forward.3} parent=5 // pred_fallthru
      _
  $region6: #{gru_model_forward.3} parent=0 // loop_footer
    %s17 = sadd.s32 1, %s13
  $region7: #{gru_model_forward.3} parent=0 // loop_footer_branch
    %12 = sbr.rel target = $region3
  $region8: #{gru_model_forward.3} parent=0 // loop_exit
    _

// kernel: gru_model_forward.2
$region0: #{gru_model_forward.2}
  #allocation0 [shape = 'u32[]', space=smem, size = 0x4, offset = 0x4, fixed_abs, tag = 'smem constant byte address 0x4 - core index']
  #allocation1 [shape = 'u32[144,128]{1,0:T(1,128)}', space=vmem, size = 0x12000, scoped, tag = 'internal scratch']
  #allocation2 [shape = 'f32[8,8,384]{2,1,0:T(8,128)}', space=vmem, size = 0x18000, scoped, tag = 'scratch operand']
  #allocation3 [shape = 'f32[8,128]{1,0:T(8,128)}', space=vmem, size = 0x1000, scoped, tag = 'scratch operand']
  %s0 = inlined_call_operand.vmem [shape: bf16[16,8,128], index: 0, kind: input, shape index: {}]
  %s1 = inlined_call_operand.hbm [shape: bf16[128,384], index: 1, kind: input, shape index: {}]
  %s2 = inlined_call_operand.vmem [shape: f32[1,384], index: 2, kind: input, shape index: {}]
  %s3 = inlined_call_operand.hbm [shape: bf16[128,384], index: 3, kind: input, shape index: {}]
  %s4 = inlined_call_operand.vmem [shape: f32[1,128], index: 4, kind: input, shape index: {}]
  %s5 = inlined_call_operand.vmem [shape: bf16[16,8,128], index: 5, kind: output, shape index: {}]
  %s6 = sld [smem:[#allocation0]]
  $region65: #{gru_model_forward.2} parent=0
    _
  %s8 = ssub.s32 1, %s6
  %s9 = scalar_select 0, %s8, %s6
  $region1: #{gru_model_forward.2} parent=0
    #allocation4 [shape = 'u8[98304]{0}', space=vmem, size = 0x18000, scoped, tag = 'input window, operand 1, single buffered']
    #allocation5 [shape = 's32[2]{0}', space=sflag, size = 0x8, scoped, tag = 'scoped memory for gru_model_forward.2']
    #allocation6 [shape = 'u8[98304]{0}', space=vmem, size = 0x18000, scoped, tag = 'input window, operand 3, single buffered']
    #allocation7 [shape = 's32[1]{0}', space=sflag, size = 0x4, scoped, tag = 'scoped memory for gru_model_forward.2']
    %10 = vsyncpa [#allocation5], 0
    %11 = vsyncpa [#allocation7], 0
    loop: start=0, step=1, limit=4
    $region2: #{gru_model_forward.2} parent=1 // loop_pre_header
      _
    $region3: #{gru_model_forward.2} parent=1 // loop_header
      %s13 = sphi 0, %s17
      %p14 = scmp.ge.s32.totalorder %s13, 4
      %s23 = sphi 0, %s25
      %s26 = sphi 0, %s23
      %s27 = sphi 0, %s26
      %s43 = sphi 0, %s27
      %s47 = sphi 0, %s47
      %s49 = sphi 0, %s47
      %s50 = sphi 0, %s49
      %s64 = sphi 0, %s50
      %s68 = sphi 0, %s68
      %s70 = sphi 0, %s68
      %s71 = sphi 0, %s70
      %s85 = sphi 0, %s71
      %s89 = sphi 0, %s89
      %s91 = sphi 0, %s89
      %s92 = sphi 0, %s91
      %s106 = sphi 0, %s92
      %s110 = sphi 0, %s110
      %s112 = sphi 0, %s110
      %s113 = sphi 0, %s112
      %s127 = sphi 0, %s113
      %s133 = sphi 0, %s135
      %s136 = sphi 0, %s133
      %s137 = sphi 0, %s136
      %s153 = sphi 0, %s137
    $region4: #{gru_model_forward.2} parent=1 // loop_header_branch
      %16 = sbr.rel (%p14) target = $region8
    $region5: #{gru_model_forward.2} parent=1 // loop_body
      %s18 = ssub.s32 %s13, 1
      %s19 = ssub.s32 %s13, 2
      %s20 = sadd.s32 %s13, 1
      %s21 = ssub.s32 %s13, %s20
      %p22 = scmp.eq.s32.totalorder %s21, 0
      %s24 = sadd.s32 %s23, 1
      %s25 = scalar_select %p22, %s23, %s24
      %p28 = pneg %p22
      %p29 = scmp.eq.s32.totalorder %s13, 1
      %p30 = por %p28, %p29
      %p31 = scmp.ne.s32.totalorder %s23, %s26
      %p32 = scmp.eq.s32.totalorder %s13, 0
      %p33 = por %p31, %p32
      %p34 = scmp.ne.s32.totalorder %s23, %s26
      %p35 = scmp.eq.s32.totalorder %s18, 1
      %p36 = por %p34, %p35
      %p37 = scmp.ne.s32.totalorder %s26, %s27
      %p38 = scmp.eq.s32.totalorder %s18, 0
      %p39 = por %p37, %p38
      %p40 = scmp.ne.s32.totalorder %s26, %s27
      %p41 = scmp.eq.s32.totalorder %s19, 1
      %p42 = por %p40, %p41
      %p44 = scmp.ne.s32.totalorder %s27, %s43
      %p45 = scmp.eq.s32.totalorder %s19, 0
      %p46 = por %p44, %p45
      %s48 = sadd.s32 %s47, 1
      %p51 = scmp.eq.s32.totalorder %s13, 1
      %p52 = scmp.ne.s32.totalorder %s47, %s49
      %p53 = scmp.eq.s32.totalorder %s13, 0
      %p54 = por %p52, %p53
      %p55 = scmp.ne.s32.totalorder %s47, %s49
      %p56 = scmp.eq.s32.totalorder %s18, 1
      %p57 = por %p55, %p56
      %p58 = scmp.ne.s32.totalorder %s49, %s50
      %p59 = scmp.eq.s32.totalorder %s18, 0
      %p60 = por %p58, %p59
      %p61 = scmp.ne.s32.totalorder %s49, %s50
      %p62 = scmp.eq.s32.totalorder %s19, 1
      %p63 = por %p61, %p62
      %p65 = scmp.ne.s32.totalorder %s50, %s64
      %p66 = scmp.eq.s32.totalorder %s19, 0
      %p67 = por %p65, %p66
      %s69 = sadd.s32 %s68, 1
      %p72 = scmp.eq.s32.totalorder %s13, 1
      %p73 = scmp.ne.s32.totalorder %s68, %s70
      %p74 = scmp.eq.s32.totalorder %s13, 0
      %p75 = por %p73, %p74
      %p76 = scmp.ne.s32.totalorder %s68, %s70
      %p77 = scmp.eq.s32.totalorder %s18, 1
      %p78 = por %p76, %p77
      %p79 = scmp.ne.s32.totalorder %s70, %s71
      %p80 = scmp.eq.s32.totalorder %s18, 0
      %p81 = por %p79, %p80
      %p82 = scmp.ne.s32.totalorder %s70, %s71
      %p83 = scmp.eq.s32.totalorder %s19, 1
      %p84 = por %p82, %p83
      %p86 = scmp.ne.s32.totalorder %s71, %s85
      %p87 = scmp.eq.s32.totalorder %s19, 0
      %p88 = por %p86, %p87
      %s90 = sadd.s32 %s89, 1
      %p93 = scmp.eq.s32.totalorder %s13, 1
      %p94 = scmp.ne.s32.totalorder %s89, %s91
      %p95 = scmp.eq.s32.totalorder %s13, 0
      %p96 = por %p94, %p95
      %p97 = scmp.ne.s32.totalorder %s89, %s91
      %p98 = scmp.eq.s32.totalorder %s18, 1
      %p99 = por %p97, %p98
      %p100 = scmp.ne.s32.totalorder %s91, %s92
      %p101 = scmp.eq.s32.totalorder %s18, 0
      %p102 = por %p100, %p101
      %p103 = scmp.ne.s32.totalorder %s91, %s92
      %p104 = scmp.eq.s32.totalorder %s19, 1
      %p105 = por %p103, %p104
      %p107 = scmp.ne.s32.totalorder %s92, %s106
      %p108 = scmp.eq.s32.totalorder %s19, 0
      %p109 = por %p107, %p108
      %s111 = sadd.s32 %s110, 1
      %p114 = scmp.eq.s32.totalorder %s13, 1
      %p115 = scmp.ne.s32.totalorder %s110, %s112
      %p116 = scmp.eq.s32.totalorder %s13, 0
      %p117 = por %p115, %p116
      %p118 = scmp.ne.s32.totalorder %s110, %s112
      %p119 = scmp.eq.s32.totalorder %s18, 1
      %p120 = por %p118, %p119
      %p121 = scmp.ne.s32.totalorder %s112, %s113
      %p122 = scmp.eq.s32.totalorder %s18, 0
      %p123 = por %p121, %p122
      %p124 = scmp.ne.s32.totalorder %s112, %s113
      %p125 = scmp.eq.s32.totalorder %s19, 1
      %p126 = por %p124, %p125
      %p128 = scmp.ne.s32.totalorder %s113, %s127
      %p129 = scmp.eq.s32.totalorder %s19, 0
      %p130 = por %p128, %p129
      %s131 = ssub.s32 %s13, %s20
      %p132 = scmp.eq.s32.totalorder %s131, 0
      %s134 = sadd.s32 %s133, 1
      %s135 = scalar_select %p132, %s133, %s134
      %p138 = pneg %p132
      %p139 = scmp.eq.s32.totalorder %s13, 1
      %p140 = por %p138, %p139
      %p141 = scmp.ne.s32.totalorder %s133, %s136
      %p142 = scmp.eq.s32.totalorder %s13, 0
      %p143 = por %p141, %p142
      %p144 = scmp.ne.s32.totalorder %s133, %s136
      %p145 = scmp.eq.s32.totalorder %s18, 1
      %p146 = por %p144, %p145
      %p147 = scmp.ne.s32.totalorder %s136, %s137
      %p148 = scmp.eq.s32.totalorder %s18, 0
      %p149 = por %p147, %p148
      %p150 = scmp.ne.s32.totalorder %s136, %s137
      %p151 = scmp.eq.s32.totalorder %s19, 1
      %p152 = por %p150, %p151
      %p154 = scmp.ne.s32.totalorder %s137, %s153
      %p155 = scmp.eq.s32.totalorder %s19, 0
      %p156 = por %p154, %p155
      %p157 = scmp.le.s32.totalorder 1, %s13
      %p158 = scmp.lt.s32.totalorder %s13, 3
      %p159 = pnand %p157, %p158
      %p160 = pneg %p159
      // Predicated region
      $region9: #{gru_model_forward.2} parent=5 // pred_check
        _
      $region10: #{gru_model_forward.2} parent=5 // pred_check_branch
        %162 = sbr.rel (%p159) target = $region12
      $region11: #{gru_model_forward.2} parent=5 // pred_region
        %s163 = ssub.s32 %s13, 1
        // Predicated region
        $region13: #{gru_model_forward.2} parent=11 // pred_check
          %p164 = pneg %p60
        $region14: #{gru_model_forward.2} parent=11 // pred_check_branch
          %166 = sbr.rel (%p164) target = $region16
        $region15: #{gru_model_forward.2} parent=11 // pred_region
          %s168 = ssub.s32 3072, 3072
          %169 = vsyncadd [#allocation5], %s168
          %s170 = sshll.u32 [#allocation4], 4
          %s171 = int_to_ptr.vmem [resolvable:$true] %s170
          %176 = dma.hbm_to_vmem [thread:$0]  %s1, 3072, %s171, [#allocation5], 192, 192, 12
        $region16: #{gru_model_forward.2} parent=11 // pred_fallthru
          _
        // Predicated region
        $region17: #{gru_model_forward.2} parent=11 // pred_check
          %p177 = pneg %p81
        $region18: #{gru_model_forward.2} parent=11 // pred_check_branch
          %179 = sbr.rel (%p177) target = $region20
        $region19: #{gru_model_forward.2} parent=11 // pred_region
          _
        $region20: #{gru_model_forward.2} parent=11 // pred_fallthru
          _
        // Predicated region
        $region21: #{gru_model_forward.2} parent=11 // pred_check
          %p180 = pneg %p102
        $region22: #{gru_model_forward.2} parent=11 // pred_check_branch
          %182 = sbr.rel (%p180) target = $region24
        $region23: #{gru_model_forward.2} parent=11 // pred_region
          %s184 = ssub.s32 3072, 3072
          %185 = vsyncadd [#allocation7], %s184
          %s186 = sshll.u32 [#allocation6], 4
          %s187 = int_to_ptr.vmem [resolvable:$true] %s186
          %192 = dma.hbm_to_vmem [thread:$0]  %s3, 3072, %s187, [#allocation7], 192, 192, 12
        $region24: #{gru_model_forward.2} parent=11 // pred_fallthru
          _
        // Predicated region
        $region25: #{gru_model_forward.2} parent=11 // pred_check
          %p193 = pneg %p123
        $region26: #{gru_model_forward.2} parent=11 // pred_check_branch
          %195 = sbr.rel (%p193) target = $region28
        $region27: #{gru_model_forward.2} parent=11 // pred_region
          _
        $region28: #{gru_model_forward.2} parent=11 // pred_fallthru
          _
      $region12: #{gru_model_forward.2} parent=5 // pred_fallthru
        _
      %p196 = scmp.lt.s32.totalorder %s13, 2
      // Predicated region
      $region29: #{gru_model_forward.2} parent=5 // pred_check
        %p197 = pneg %p196
      $region30: #{gru_model_forward.2} parent=5 // pred_check_branch
        %199 = sbr.rel (%p197) target = $region32
      $region31: #{gru_model_forward.2} parent=5 // pred_region
        // Predicated region
        $region33: #{gru_model_forward.2} parent=31 // pred_check
          %p200 = pneg %p33
        $region34: #{gru_model_forward.2} parent=31 // pred_check_branch
          %202 = sbr.rel (%p200) target = $region36
        $region35: #{gru_model_forward.2} parent=31 // pred_region
          %s203 = smul.u32 8, %s13
          %p204 = scmp.lt.s32.totalorder %s203, 15
          %s205 = scalar_select %p204, %s203, 15
          %s206 = smul.addr %s205, 4
          %s207 = scalar_lea.vmem %s0, %s206
          %s208 = smul.u32 8, %s13
        $region36: #{gru_model_forward.2} parent=31 // pred_fallthru
          _
      $region32: #{gru_model_forward.2} parent=5 // pred_fallthru
        _
      %p209 = scmp.le.s32.totalorder 1, %s13
      %p210 = scmp.lt.s32.totalorder %s13, 3
      %p211 = pnand %p209, %p210
      %p212 = pneg %p211
      // Predicated region
      $region37: #{gru_model_forward.2} parent=5 // pred_check
        _
      $region38: #{gru_model_forward.2} parent=5 // pred_check_branch
        %214 = sbr.rel (%p211) target = $region40
      $region39: #{gru_model_forward.2} parent=5 // pred_region
        %s215 = ssub.s32 %s13, 1
        // Predicated region
        $region41: #{gru_model_forward.2} parent=39 // pred_check
          %p216 = pneg %p60
        $region42: #{gru_model_forward.2} parent=39 // pred_check_branch
          %218 = sbr.rel (%p216) target = $region44
        $region43: #{gru_model_forward.2} parent=39 // pred_region
          %219 = dma.done [#allocation5], 3072
        $region44: #{gru_model_forward.2} parent=39 // pred_fallthru
          _
        // Predicated region
        $region45: #{gru_model_forward.2} parent=39 // pred_check
          %p220 = pneg %p102
        $region46: #{gru_model_forward.2} parent=39 // pred_check_branch
          %222 = sbr.rel (%p220) target = $region48
        $region47: #{gru_model_forward.2} parent=39 // pred_region
          %223 = dma.done [#allocation7], 3072
        $region48: #{gru_model_forward.2} parent=39 // pred_fallthru
          _
        %s224 = smul.u32 8, %s18
        %p225 = scmp.lt.s32.totalorder %s224, 15
        %s226 = scalar_select %p225, %s224, 15
        %s227 = smul.addr %s226, 4
        %s228 = scalar_lea.vmem %s0, %s227
        %p229 = pneg %p39
        %p230 = pneg %p36
        %p231 = pneg %p60
        %p232 = pneg %p57
        %p233 = pneg %p81
        %p234 = pneg %p78
        %p235 = pneg %p102
        %p236 = pneg %p99
        %p237 = pneg %p123
        %p238 = pneg %p120
        %p239 = pneg %p149
        %p240 = pneg %p146
        %s241 = smul.u32 8, %s18
        %p242 = scmp.lt.s32.totalorder %s241, 15
        %s243 = scalar_select %p242, %s241, 15
        %s244 = smul.addr %s243, 4
        %s245 = scalar_lea.vmem %s5, %s244
        %s246 = smul.u32 8, %s18
        %p247 = scmp.lt.s32.totalorder %s246, 15
        %s248 = scalar_select %p247, %s246, 15
        %s249 = smul.addr %s248, 4
        %s250 = scalar_lea.vmem %s0, %s249
        %s251 = smul.u32 8, %s18
        %s252 = smul.u32 8, %s18
        %p253 = scmp.lt.s32.totalorder %s252, 15
        %s254 = scalar_select %p253, %s252, 15
        %s255 = smul.addr %s254, 4
        %s256 = scalar_lea.vmem %s5, %s255
        %s257 = smul.u32 8, %s18
        %p259 = scmp.eq.s32.totalorder %s18, 0
        // Predicated region
        $region49: #{gru_model_forward.2} parent=39 // pred_check
          %p260 = pneg %p259
        $region50: #{gru_model_forward.2} parent=39 // pred_check_branch
          %262 = sbr.rel (%p260) target = $region52
        $region51: #{gru_model_forward.2} parent=39 // pred_region
          %263 = vst [vmem:[#allocation3] sm:$0xff] 0.0
        $region52: #{gru_model_forward.2} parent=39 // pred_fallthru
          _
        %v264 = vld [vmem:[%s250] sm:$0xf]
        %v265 = vld [vmem:[%s250 + $0x4] sm:$0xf]
        %v266 = vld [vmem:[%s250 + $0x8] sm:$0xf]
        %v267 = vld [vmem:[%s250 + $0xc] sm:$0xf]
        %v268 = vld [vmem:[%s250 + $0x10] sm:$0xf]
        %v269 = vld [vmem:[%s250 + $0x14] sm:$0xf]
        %v270 = vld [vmem:[%s250 + $0x18] sm:$0xf]
        %v271 = vld [vmem:[%s250 + $0x1c] sm:$0xf]
        %v272 = vld [vmem:[#allocation4] sm:$0xff]
        %v273 = vld [vmem:[#allocation4 + $0x8] sm:$0xf]
        %v274 = vld [vmem:[#allocation4 + $0xc] sm:$0xff]
        %v275 = vld [vmem:[#allocation4 + $0x14] sm:$0xf]
        %v276 = vld [vmem:[#allocation4 + $0x18] sm:$0xff]
        %v277 = vld [vmem:[#allocation4 + $0x20] sm:$0xf]
        %v278 = vld [vmem:[#allocation4 + $0x24] sm:$0xff]
        %v279 = vld [vmem:[#allocation4 + $0x2c] sm:$0xf]
        %v280 = vld [vmem:[#allocation4 + $0x30] sm:$0xff]
        %v281 = vld [vmem:[#allocation4 + $0x38] sm:$0xf]
        %v282 = vld [vmem:[#allocation4 + $0x3c] sm:$0xff]
        %v283 = vld [vmem:[#allocation4 + $0x44] sm:$0xf]
        %v284 = vld [vmem:[#allocation4 + $0x48] sm:$0xff]
        %v285 = vld [vmem:[#allocation4 + $0x50] sm:$0xf]
        %v286 = vld [vmem:[#allocation4 + $0x54] sm:$0xff]
        %v287 = vld [vmem:[#allocation4 + $0x5c] sm:$0xf]
        %v288 = vld [vmem:[#allocation4 + $0x60] sm:$0xff]
        %v289 = vld [vmem:[#allocation4 + $0x68] sm:$0xf]
        %v290 = vld [vmem:[#allocation4 + $0x6c] sm:$0xff]
        %v291 = vld [vmem:[#allocation4 + $0x74] sm:$0xf]
        %v292 = vld [vmem:[#allocation4 + $0x78] sm:$0xff]
        %v293 = vld [vmem:[#allocation4 + $0x80] sm:$0xf]
        %v294 = vld [vmem:[#allocation4 + $0x84] sm:$0xff]
        %v295 = vld [vmem:[#allocation4 + $0x8c] sm:$0xf]
        %v296 = vld [vmem:[#allocation4 + $0x90] sm:$0xff]
        %v297 = vld [vmem:[#allocation4 + $0x98] sm:$0xf]
        %v298 = vld [vmem:[#allocation4 + $0x9c] sm:$0xff]
        %v299 = vld [vmem:[#allocation4 + $0xa4] sm:$0xf]
        %v300 = vld [vmem:[#allocation4 + $0xa8] sm:$0xff]
        %v301 = vld [vmem:[#allocation4 + $0xb0] sm:$0xf]
        %v302 = vld [vmem:[#allocation4 + $0xb4] sm:$0xff]
        %v303 = vld [vmem:[#allocation4 + $0xbc] sm:$0xf]
        %v304 = vld [vmem:[%s2] sm:$0x7]
        %v306 = vlaneseq
        %v307 = vshrl.u32 %v306, 7
        %v308 = vsub.s32 0, %v307
        %v309 = vrot.slane %v304, %v308
        %v310 = vlaneseq
        %v311 = vshrl.u32 %v310, 7
        %v312 = vsub.s32 1, %v311
        %v313 = vrot.slane %v304, %v312
        %v314 = vlaneseq
        %v315 = vshrl.u32 %v314, 7
        %v316 = vsub.s32 2, %v315
        %v317 = vrot.slane %v304, %v316
        %v329 = vunpack.c.l.b16 %v264
        %v330 = vunpack.c.l.b16 %v265
        %v331 = vunpack.c.l.b16 %v266
        %v332 = vunpack.c.l.b16 %v267
        %v333 = vunpack.c.l.b16 %v268
        %v334 = vunpack.c.l.b16 %v269
        %v335 = vunpack.c.l.b16 %v270
        %v336 = vunpack.c.l.b16 %v271
        %v337 = vpack.c.b16 %v330, %v329
        %v338 = vpack.c.b16 %v332, %v331
        %v339 = vpack.c.b16 %v334, %v333
        %v340 = vpack.c.b16 %v336, %v335
        %v377 = vunpack.c.l.b16 %v272
        %v378 = vunpack.c.h.b16 %v272
        %v379 = vunpack.c.l.b16 %v273
        %v380 = vunpack.c.l.b16 %v274
        %v381 = vunpack.c.h.b16 %v274
        %v382 = vunpack.c.l.b16 %v275
        %v383 = vunpack.c.l.b16 %v276
        %v384 = vunpack.c.h.b16 %v276
        %v385 = vunpack.c.l.b16 %v277
        %v386 = vunpack.c.l.b16 %v278
        %v387 = vunpack.c.h.b16 %v278
        %v388 = vunpack.c.l.b16 %v279
        %v389 = vunpack.c.l.b16 %v280
        %v390 = vunpack.c.h.b16 %v280
        %v391 = vunpack.c.l.b16 %v281
        %v392 = vunpack.c.l.b16 %v282
        %v393 = vunpack.c.h.b16 %v282
        %v394 = vunpack.c.l.b16 %v283
        %v395 = vunpack.c.l.b16 %v284
        %v396 = vunpack.c.h.b16 %v284
        %v397 = vunpack.c.l.b16 %v285
        %v398 = vunpack.c.l.b16 %v286
        %v399 = vunpack.c.h.b16 %v286
        %v400 = vunpack.c.l.b16 %v287
        %v401 = vunpack.c.l.b16 %v288
        %v402 = vunpack.c.h.b16 %v288
        %v403 = vunpack.c.l.b16 %v289
        %v404 = vunpack.c.l.b16 %v290
        %v405 = vunpack.c.h.b16 %v290
        %v406 = vunpack.c.l.b16 %v291
        %v407 = vunpack.c.l.b16 %v292
        %v408 = vunpack.c.h.b16 %v292
        %v409 = vunpack.c.l.b16 %v293
        %v410 = vunpack.c.l.b16 %v294
        %v411 = vunpack.c.h.b16 %v294
        %v412 = vunpack.c.l.b16 %v295
        %v413 = vunpack.c.l.b16 %v296
        %v414 = vunpack.c.h.b16 %v296
        %v415 = vunpack.c.l.b16 %v297
        %v416 = vunpack.c.l.b16 %v298
        %v417 = vunpack.c.h.b16 %v298
        %v418 = vunpack.c.l.b16 %v299
        %v419 = vunpack.c.l.b16 %v300
        %v420 = vunpack.c.h.b16 %v300
        %v421 = vunpack.c.l.b16 %v301
        %v422 = vunpack.c.l.b16 %v302
        %v423 = vunpack.c.h.b16 %v302
        %v424 = vunpack.c.l.b16 %v303
        %v425 = vpack.c.b16 %v380, %v377
        %v426 = vpack.c.b16 %v381, %v378
        %v427 = vpack.c.b16 %v382, %v379
        %v428 = vpack.c.b16 %v386, %v383
        %v429 = vpack.c.b16 %v387, %v384
        %v430 = vpack.c.b16 %v388, %v385
        %v431 = vpack.c.b16 %v392, %v389
        %v432 = vpack.c.b16 %v393, %v390
        %v433 = vpack.c.b16 %v394, %v391
        %v434 = vpack.c.b16 %v398, %v395
        %v435 = vpack.c.b16 %v399, %v396
        %v436 = vpack.c.b16 %v400, %v397
        %v437 = vpack.c.b16 %v404, %v401
        %v438 = vpack.c.b16 %v405, %v402
        %v439 = vpack.c.b16 %v406, %v403
        %v440 = vpack.c.b16 %v410, %v407
        %v441 = vpack.c.b16 %v411, %v408
        %v442 = vpack.c.b16 %v412, %v409
        %v443 = vpack.c.b16 %v416, %v413
        %v444 = vpack.c.b16 %v417, %v414
        %v445 = vpack.c.b16 %v418, %v415
        %v446 = vpack.c.b16 %v422, %v419
        %v447 = vpack.c.b16 %v423, %v420
        %v448 = vpack.c.b16 %v424, %v421
        %473 = vmatprep.subr.bf16.mxu0 %v447
        %474 = vmatpush1.bf16.msra.mxu0 %v446
        %475 = vmatprep.subr.bf16.mxu0 %v444
        %476 = vmatpush1.bf16.msra.mxu0 %v443
        %477 = vmatprep.subr.bf16.mxu0 %v441
        %478 = vmatpush1.bf16.msra.mxu0 %v440
        %479 = vmatprep.subr.bf16.mxu0 %v438
        %480 = vmatpush1.bf16.msra.mxu0 %v437
        %481 = vmatprep.subr.bf16.mxu0 %v435
        %482 = vmatpush1.bf16.msra.mxu0 %v434
        %483 = vmatprep.subr.bf16.mxu0 %v432
        %484 = vmatpush1.bf16.msra.mxu0 %v431
        %485 = vmatprep.subr.bf16.mxu0 %v429
        %486 = vmatpush1.bf16.msra.mxu0 %v428
        %487 = vmatprep.subr.bf16.mxu0 %v426
        %488 = vmatpush1.bf16.msra.mxu0 %v425
        %489 = vmatprep.subr.bf16.mxu0 0
        %490 = vmatpush2.bf16.msra.mxu0 0
        %491 = vmatprep.subr.bf16.mxu0 0
        %492 = vmatpush2.bf16.msra.mxu0 0
        %493 = vmatprep.subr.bf16.mxu0 0
        %494 = vmatpush2.bf16.msra.mxu0 0
        %495 = vmatprep.subr.bf16.mxu0 0
        %496 = vmatpush2.bf16.msra.mxu0 0
        %497 = vmatprep.subr.bf16.mxu0 0
        %498 = vmatpush2.bf16.msra.mxu0 0
        %499 = vmatprep.subr.bf16.mxu0 0
        %500 = vmatpush2.bf16.msra.mxu0 0
        %501 = vmatprep.subr.bf16.mxu0 0
        %502 = vmatpush2.bf16.msra.mxu0 0
        %503 = vmatprep.subr.bf16.mxu0 0
        %504 = vmatpush2.bf16.msra.mxu0 0
        %505 = vmatprep.mubr.bf16.mxu0 0
        %506 = vmatmul.mubr.bf16.gmra.mxu0 %v337
        %v507 = vpop.f32.mrf.mxu0
        %v508 = vadd.f32 %v309, %v507
        %v509 = vpop.f32.mrf.mxu0
        %v510 = vadd.f32 %v313, %v509
        %v511 = vpop.f32.mrf.mxu0
        %v512 = vadd.f32 %v309, %v511
        %v513 = vpop.f32.mrf.mxu0
        %v514 = vadd.f32 %v313, %v513
        %515 = vmatprep.mubr.bf16.mxu0 0
        %516 = vmatmul.mubr.bf16.gmra.mxu0 %v338
        %v517 = vpop.f32.mrf.mxu0
        %v518 = vadd.f32 %v309, %v517
        %v519 = vpop.f32.mrf.mxu0
        %v520 = vadd.f32 %v313, %v519
        %v521 = vpop.f32.mrf.mxu0
        %v522 = vadd.f32 %v309, %v521
        %v523 = vpop.f32.mrf.mxu0
        %v524 = vadd.f32 %v313, %v523
        %525 = vmatprep.mubr.bf16.mxu0 0
        %526 = vmatmul.mubr.bf16.gmra.mxu0 %v339
        %v527 = vpop.f32.mrf.mxu0
        %v528 = vadd.f32 %v309, %v527
        %v529 = vpop.f32.mrf.mxu0
        %v530 = vadd.f32 %v313, %v529
        %v531 = vpop.f32.mrf.mxu0
        %v532 = vadd.f32 %v309, %v531
        %v533 = vpop.f32.mrf.mxu0
        %v534 = vadd.f32 %v313, %v533
        %535 = vmatprep.mubr.bf16.mxu0 0
        %536 = vmatmul.mubr.bf16.gmra.mxu0 %v340
        %v537 = vpop.f32.mrf.mxu0
        %v538 = vadd.f32 %v309, %v537
        %v539 = vpop.f32.mrf.mxu0
        %v540 = vadd.f32 %v313, %v539
        %v541 = vpop.f32.mrf.mxu0
        %v542 = vadd.f32 %v309, %v541
        %v543 = vpop.f32.mrf.mxu0
        %v544 = vadd.f32 %v313, %v543
        %545 = vdwg.mxu0
        %546 = vmatprep.subr.bf16.mxu0 0
        %547 = vmatpush1.bf16.msra.mxu0 %v448
        %548 = vmatprep.subr.bf16.mxu0 0
        %549 = vmatpush1.bf16.msra.mxu0 %v445
        %550 = vmatprep.subr.bf16.mxu0 0
        %551 = vmatpush1.bf16.msra.mxu0 %v442
        %552 = vmatprep.subr.bf16.mxu0 0
        %553 = vmatpush1.bf16.msra.mxu0 %v439
        %554 = vmatprep.subr.bf16.mxu0 0
        %555 = vmatpush1.bf16.msra.mxu0 %v436
        %556 = vmatprep.subr.bf16.mxu0 0
        %557 = vmatpush1.bf16.msra.mxu0 %v433
        %558 = vmatprep.subr.bf16.mxu0 0
        %559 = vmatpush1.bf16.msra.mxu0 %v430
        %560 = vmatprep.subr.bf16.mxu0 0
        %561 = vmatpush1.bf16.msra.mxu0 %v427
        %562 = vmatprep.subr.bf16.mxu0 0
        %563 = vmatpush2.bf16.msra.mxu0 0
        %564 = vmatprep.subr.bf16.mxu0 0
        %565 = vmatpush2.bf16.msra.mxu0 0
        %566 = vmatprep.subr.bf16.mxu0 0
        %567 = vmatpush2.bf16.msra.mxu0 0
        %568 = vmatprep.subr.bf16.mxu0 0
        %569 = vmatpush2.bf16.msra.mxu0 0
        %570 = vmatprep.subr.bf16.mxu0 0
        %571 = vmatpush2.bf16.msra.mxu0 0
        %572 = vmatprep.subr.bf16.mxu0 0
        %573 = vmatpush2.bf16.msra.mxu0 0
        %574 = vmatprep.subr.bf16.mxu0 0
        %575 = vmatpush2.bf16.msra.mxu0 0
        %576 = vmatprep.subr.bf16.mxu0 0
        %577 = vmatpush2.bf16.msra.mxu0 0
        %578 = vmatprep.mubr.bf16.mxu0 0
        %579 = vmatmul.mubr.bf16.gmra.mxu0 %v337
        %v580 = vpop.f32.mrf.mxu0
        %v581 = vadd.f32 %v317, %v580
        %v582 = vpop.f32.mrf.mxu0
        %v583 = vpop.f32.mrf.mxu0
        %v584 = vadd.f32 %v317, %v583
        %v585 = vpop.f32.mrf.mxu0
        %586 = vmatprep.mubr.bf16.mxu0 0
        %587 = vmatmul.mubr.bf16.gmra.mxu0 %v338
        %v588 = vpop.f32.mrf.mxu0
        %v589 = vadd.f32 %v317, %v588
        %v590 = vpop.f32.mrf.mxu0
        %v591 = vpop.f32.mrf.mxu0
        %v592 = vadd.f32 %v317, %v591
        %v593 = vpop.f32.mrf.mxu0
        %594 = vmatprep.mubr.bf16.mxu0 0
        %595 = vmatmul.mubr.bf16.gmra.mxu0 %v339
        %v596 = vpop.f32.mrf.mxu0
        %v597 = vadd.f32 %v317, %v596
        %v598 = vpop.f32.mrf.mxu0
        %v599 = vpop.f32.mrf.mxu0
        %v600 = vadd.f32 %v317, %v599
        %v601 = vpop.f32.mrf.mxu0
        %602 = vmatprep.mubr.bf16.mxu0 0
        %603 = vmatmul.mubr.bf16.gmra.mxu0 %v340
        %v604 = vpop.f32.mrf.mxu0
        %v605 = vadd.f32 %v317, %v604
        %v606 = vpop.f32.mrf.mxu0
        %v607 = vpop.f32.mrf.mxu0
        %v608 = vadd.f32 %v317, %v607
        %v609 = vpop.f32.mrf.mxu0
        %610 = vdwg.mxu0
        %611 = vst [vmem:[#allocation2] sm:$0xff] %v508
        %612 = vst [vmem:[#allocation2 + $0x8] sm:$0xff] %v510
        %613 = vst [vmem:[#allocation2 + $0x10] sm:$0xff] %v581
        %614 = vst [vmem:[#allocation2 + $0x18] sm:$0xff] %v512
        %615 = vst [vmem:[#allocation2 + $0x20] sm:$0xff] %v514
        %616 = vst [vmem:[#allocation2 + $0x28] sm:$0xff] %v584
        %617 = vst [vmem:[#allocation2 + $0x30] sm:$0xff] %v518
        %618 = vst [vmem:[#allocation2 + $0x38] sm:$0xff] %v520
        %619 = vst [vmem:[#allocation2 + $0x40] sm:$0xff] %v589
        %620 = vst [vmem:[#allocation2 + $0x48] sm:$0xff] %v522
        %621 = vst [vmem:[#allocation2 + $0x50] sm:$0xff] %v524
        %622 = vst [vmem:[#allocation2 + $0x58] sm:$0xff] %v592
        %623 = vst [vmem:[#allocation2 + $0x60] sm:$0xff] %v528
        %624 = vst [vmem:[#allocation2 + $0x68] sm:$0xff] %v530
        %625 = vst [vmem:[#allocation2 + $0x70] sm:$0xff] %v597
        %626 = vst [vmem:[#allocation2 + $0x78] sm:$0xff] %v532
        %627 = vst [vmem:[#allocation2 + $0x80] sm:$0xff] %v534
        %628 = vst [vmem:[#allocation2 + $0x88] sm:$0xff] %v600
        %629 = vst [vmem:[#allocation2 + $0x90] sm:$0xff] %v538
        %630 = vst [vmem:[#allocation2 + $0x98] sm:$0xff] %v540
        %631 = vst [vmem:[#allocation2 + $0xa0] sm:$0xff] %v605
        %632 = vst [vmem:[#allocation2 + $0xa8] sm:$0xff] %v542
        %633 = vst [vmem:[#allocation2 + $0xb0] sm:$0xff] %v544
        %634 = vst [vmem:[#allocation2 + $0xb8] sm:$0xff] %v608
        %v635 = vld [vmem:[#allocation6] sm:$0xff]
        %v636 = vld [vmem:[#allocation6 + $0x8] sm:$0xf]
        %v637 = vld [vmem:[#allocation6 + $0xc] sm:$0xff]
        %v638 = vld [vmem:[#allocation6 + $0x14] sm:$0xf]
        %v639 = vld [vmem:[#allocation6 + $0x18] sm:$0xff]
        %v640 = vld [vmem:[#allocation6 + $0x20] sm:$0xf]
        %v641 = vld [vmem:[#allocation6 + $0x24] sm:$0xff]
        %v642 = vld [vmem:[#allocation6 + $0x2c] sm:$0xf]
        %v643 = vld [vmem:[#allocation6 + $0x30] sm:$0xff]
        %v644 = vld [vmem:[#allocation6 + $0x38] sm:$0xf]
        %v645 = vld [vmem:[#allocation6 + $0x3c] sm:$0xff]
        %v646 = vld [vmem:[#allocation6 + $0x44] sm:$0xf]
        %v647 = vld [vmem:[#allocation6 + $0x48] sm:$0xff]
        %v648 = vld [vmem:[#allocation6 + $0x50] sm:$0xf]
        %v649 = vld [vmem:[#allocation6 + $0x54] sm:$0xff]
        %v650 = vld [vmem:[#allocation6 + $0x5c] sm:$0xf]
        %v651 = vld [vmem:[#allocation6 + $0x60] sm:$0xff]
        %v652 = vld [vmem:[#allocation6 + $0x68] sm:$0xf]
        %v653 = vld [vmem:[#allocation6 + $0x6c] sm:$0xff]
        %v654 = vld [vmem:[#allocation6 + $0x74] sm:$0xf]
        %v655 = vld [vmem:[#allocation6 + $0x78] sm:$0xff]
        %v656 = vld [vmem:[#allocation6 + $0x80] sm:$0xf]
        %v657 = vld [vmem:[#allocation6 + $0x84] sm:$0xff]
        %v658 = vld [vmem:[#allocation6 + $0x8c] sm:$0xf]
        %v659 = vld [vmem:[#allocation6 + $0x90] sm:$0xff]
        %v660 = vld [vmem:[#allocation6 + $0x98] sm:$0xf]
        %v661 = vld [vmem:[#allocation6 + $0x9c] sm:$0xff]
        %v662 = vld [vmem:[#allocation6 + $0xa4] sm:$0xf]
        %v663 = vld [vmem:[#allocation6 + $0xa8] sm:$0xff]
        %v664 = vld [vmem:[#allocation6 + $0xb0] sm:$0xf]
        %v665 = vld [vmem:[#allocation6 + $0xb4] sm:$0xff]
        %v666 = vld [vmem:[#allocation6 + $0xbc] sm:$0xf]
        %v667 = vld [vmem:[%s4] sm:$0x1]
        %v669 = vlaneseq
        %v670 = vshrl.u32 %v669, 7
        %v671 = vsub.s32 0, %v670
        %v672 = vrot.slane %v667, %v671
        %v674 = vld [vmem:[#allocation3] sm:$0xff]
        %v675 = vld [vmem:[#allocation2] sm:$0xff]
        %v676 = vld [vmem:[#allocation2 + $0x8] sm:$0xff]
        %v677 = vld [vmem:[#allocation2 + $0x10] sm:$0xff]
        %v678 = vpack.c.bf16 %v674, %v674
        %v711 = vunpack.c.l.b16 %v635
        %v712 = vunpack.c.h.b16 %v635
        %v713 = vunpack.c.l.b16 %v636
        %v714 = vunpack.c.l.b16 %v637
        %v715 = vunpack.c.h.b16 %v637
        %v716 = vunpack.c.l.b16 %v638
        %v717 = vunpack.c.l.b16 %v639
        %v718 = vunpack.c.h.b16 %v639
        %v719 = vunpack.c.l.b16 %v640
        %v720 = vunpack.c.l.b16 %v641
        %v721 = vunpack.c.h.b16 %v641
        %v722 = vunpack.c.l.b16 %v642
        %v723 = vunpack.c.l.b16 %v643
        %v724 = vunpack.c.h.b16 %v643
        %v725 = vunpack.c.l.b16 %v644
        %v726 = vunpack.c.l.b16 %v645
        %v727 = vunpack.c.h.b16 %v645
        %v728 = vunpack.c.l.b16 %v646
        %v729 = vunpack.c.l.b16 %v647
        %v730 = vunpack.c.h.b16 %v647
        %v731 = vunpack.c.l.b16 %v648
        %v732 = vunpack.c.l.b16 %v649
        %v733 = vunpack.c.h.b16 %v649
        %v734 = vunpack.c.l.b16 %v650
        %v735 = vunpack.c.l.b16 %v651
        %v736 = vunpack.c.h.b16 %v651
        %v737 = vunpack.c.l.b16 %v652
        %v738 = vunpack.c.l.b16 %v653
        %v739 = vunpack.c.h.b16 %v653
        %v740 = vunpack.c.l.b16 %v654
        %v741 = vunpack.c.l.b16 %v655
        %v742 = vunpack.c.h.b16 %v655
        %v743 = vunpack.c.l.b16 %v656
        %v744 = vunpack.c.l.b16 %v657
        %v745 = vunpack.c.h.b16 %v657
        %v746 = vunpack.c.l.b16 %v658
        %v747 = vunpack.c.l.b16 %v659
        %v748 = vunpack.c.h.b16 %v659
        %v749 = vunpack.c.l.b16 %v660
        %v750 = vunpack.c.l.b16 %v661
        %v751 = vunpack.c.h.b16 %v661
        %v752 = vunpack.c.l.b16 %v662
        %v753 = vunpack.c.l.b16 %v663
        %v754 = vunpack.c.h.b16 %v663
        %v755 = vunpack.c.l.b16 %v664
        %v756 = vunpack.c.l.b16 %v665
        %v757 = vunpack.c.h.b16 %v665
        %v758 = vunpack.c.l.b16 %v666
        %v759 = vpack.c.b16 %v714, %v711
        %v760 = vpack.c.b16 %v715, %v712
        %v761 = vpack.c.b16 %v716, %v713
        %v762 = vpack.c.b16 %v720, %v717
        %v763 = vpack.c.b16 %v721, %v718
        %v764 = vpack.c.b16 %v722, %v719
        %v765 = vpack.c.b16 %v726, %v723
        %v766 = vpack.c.b16 %v727, %v724
        %v767 = vpack.c.b16 %v728, %v725
        %v768 = vpack.c.b16 %v732, %v729
        %v769 = vpack.c.b16 %v733, %v730
        %v770 = vpack.c.b16 %v734, %v731
        %v771 = vpack.c.b16 %v738, %v735
        %v772 = vpack.c.b16 %v739, %v736
        %v773 = vpack.c.b16 %v740, %v737
        %v774 = vpack.c.b16 %v744, %v741
        %v775 = vpack.c.b16 %v745, %v742
        %v776 = vpack.c.b16 %v746, %v743
        %v777 = vpack.c.b16 %v750, %v747
        %v778 = vpack.c.b16 %v751, %v748
        %v779 = vpack.c.b16 %v752, %v749
        %v780 = vpack.c.b16 %v756, %v753
        %v781 = vpack.c.b16 %v757, %v754
        %v782 = vpack.c.b16 %v758, %v755
        %807 = vmatprep.subr.bf16.mxu0 %v781
        %808 = vmatpush1.bf16.msra.mxu0 %v780
        %809 = vmatprep.subr.bf16.mxu0 %v778
        %810 = vmatpush1.bf16.msra.mxu0 %v777
        %811 = vmatprep.subr.bf16.mxu0 %v775
        %812 = vmatpush1.bf16.msra.mxu0 %v774
        %813 = vmatprep.subr.bf16.mxu0 %v772
        %814 = vmatpush1.bf16.msra.mxu0 %v771
        %815 = vmatprep.subr.bf16.mxu0 %v769
        %816 = vmatpush1.bf16.msra.mxu0 %v768
        %817 = vmatprep.subr.bf16.mxu0 %v766
        %818 = vmatpush1.bf16.msra.mxu0 %v765
        %819 = vmatprep.subr.bf16.mxu0 %v763
        %820 = vmatpush1.bf16.msra.mxu0 %v762
        %821 = vmatprep.subr.bf16.mxu0 %v760
        %822 = vmatpush1.bf16.msra.mxu0 %v759
        %823 = vmatprep.subr.bf16.mxu0 0
        %824 = vmatpush2.bf16.msra.mxu0 0
        %825 = vmatprep.subr.bf16.mxu0 0
        %826 = vmatpush2.bf16.msra.mxu0 0
        %827 = vmatprep.subr.bf16.mxu0 0
        %828 = vmatpush2.bf16.msra.mxu0 0
        %829 = vmatprep.subr.bf16.mxu0 0
        %830 = vmatpush2.bf16.msra.mxu0 0
        %831 = vmatprep.subr.bf16.mxu0 0
        %832 = vmatpush2.bf16.msra.mxu0 0
        %833 = vmatprep.subr.bf16.mxu0 0
        %834 = vmatpush2.bf16.msra.mxu0 0
        %835 = vmatprep.subr.bf16.mxu0 0
        %836 = vmatpush2.bf16.msra.mxu0 0
        %837 = vmatprep.subr.bf16.mxu0 0
        %838 = vmatpush2.bf16.msra.mxu0 0
        %839 = vmatprep.mubr.bf16.mxu0 0
        %840 = vmatmul.mubr.bf16.gmra.mxu0 %v678
        %v841 = vpop.f32.mrf.mxu0
        %v842 = vadd.f32 0.0, %v841
        %v843 = vpop.f32.mrf.mxu0
        %v844 = vadd.f32 0.0, %v843
        %v845 = vpop.f32.mrf.mxu0
        %v846 = vpop.f32.mrf.mxu0
        %847 = vdwg.mxu0
        %848 = vmatprep.subr.bf16.mxu0 0
        %849 = vmatpush1.bf16.msra.mxu0 %v782
        %850 = vmatprep.subr.bf16.mxu0 0
        %851 = vmatpush1.bf16.msra.mxu0 %v779
        %852 = vmatprep.subr.bf16.mxu0 0
        %853 = vmatpush1.bf16.msra.mxu0 %v776
        %854 = vmatprep.subr.bf16.mxu0 0
        %855 = vmatpush1.bf16.msra.mxu0 %v773
        %856 = vmatprep.subr.bf16.mxu0 0
        %857 = vmatpush1.bf16.msra.mxu0 %v770
        %858 = vmatprep.subr.bf16.mxu0 0
        %859 = vmatpush1.bf16.msra.mxu0 %v767
        %860 = vmatprep.subr.bf16.mxu0 0
        %861 = vmatpush1.bf16.msra.mxu0 %v764
        %862 = vmatprep.subr.bf16.mxu0 0
        %863 = vmatpush1.bf16.msra.mxu0 %v761
        %864 = vmatprep.subr.bf16.mxu0 0
        %865 = vmatpush2.bf16.msra.mxu0 0
        %866 = vmatprep.subr.bf16.mxu0 0
        %867 = vmatpush2.bf16.msra.mxu0 0
        %868 = vmatprep.subr.bf16.mxu0 0
        %869 = vmatpush2.bf16.msra.mxu0 0
        %870 = vmatprep.subr.bf16.mxu0 0
        %871 = vmatpush2.bf16.msra.mxu0 0
        %872 = vmatprep.subr.bf16.mxu0 0
        %873 = vmatpush2.bf16.msra.mxu0 0
        %874 = vmatprep.subr.bf16.mxu0 0
        %875 = vmatpush2.bf16.msra.mxu0 0
        %876 = vmatprep.subr.bf16.mxu0 0
        %877 = vmatpush2.bf16.msra.mxu0 0
        %878 = vmatprep.subr.bf16.mxu0 0
        %879 = vmatpush2.bf16.msra.mxu0 0
        %880 = vmatprep.mubr.bf16.mxu0 0
        %881 = vmatmul.mubr.bf16.gmra.mxu0 %v678
        %v882 = vpop.f32.mrf.mxu0
        %v883 = vadd.f32 0.0, %v882
        %v884 = vpop.f32.mrf.mxu0
        %v885 = vpop.f32.mrf.mxu0
        %v886 = vpop.f32.mrf.mxu0
        %887 = vdwg.mxu0
        %v888 = vadd.f32 %v675, %v842
        %v889 = vxor.u32 %v888, 2147483648
        %v890 = vmul.f32 %v889, 1.442695
        %v891 = vpow.pop %v890
        %v892 = vadd.f32 %v891, 1.0
        %v893 = vrcp.pop %v892
        %v894 = vmul.f32 1.0, %v893
        %v895 = vadd.f32 %v676, %v844
        %v896 = vxor.u32 %v895, 2147483648
        %v897 = vmul.f32 %v896, 1.442695
        %v898 = vpow.pop %v897
        %v899 = vadd.f32 %v898, 1.0
        %v900 = vrcp.pop %v899
        %v901 = vmul.f32 1.0, %v900
        %v902 = vadd.f32 %v883, %v672
        %v903 = vmul.f32 %v894, %v902
        %v904 = vadd.f32 %v677, %v903
        %v905 = vtanh.pop %v904
        %v906 = vsub.f32 1.0, %v901
        %v907 = vmul.f32 %v906, %v905
        %v908 = vmul.f32 %v901, %v674
        %v909 = vadd.f32 %v907, %v908
        %v910 = vpack.c.bf16 %v909, %v909
        %911 = vst [vmem:[%s256] sm:$0xf] %v910
        %s912 = scalar_lea.vmem [#allocation2], 24
        %v913 = vld [vmem:[%s912] sm:$0xff]
        %v914 = vld [vmem:[%s912 + $0x8] sm:$0xff]
        %v915 = vld [vmem:[%s912 + $0x10] sm:$0xff]
        %916 = vmatprep.subr.bf16.mxu0 %v781
        %917 = vmatpush1.bf16.msra.mxu0 %v780
        %918 = vmatprep.subr.bf16.mxu0 %v778
        %919 = vmatpush1.bf16.msra.mxu0 %v777
        %920 = vmatprep.subr.bf16.mxu0 %v775
        %921 = vmatpush1.bf16.msra.mxu0 %v774
        %922 = vmatprep.subr.bf16.mxu0 %v772
        %923 = vmatpush1.bf16.msra.mxu0 %v771
        %924 = vmatprep.subr.bf16.mxu0 %v769
        %925 = vmatpush1.bf16.msra.mxu0 %v768
        %926 = vmatprep.subr.bf16.mxu0 %v766
        %927 = vmatpush1.bf16.msra.mxu0 %v765
        %928 = vmatprep.subr.bf16.mxu0 %v763
        %929 = vmatpush1.bf16.msra.mxu0 %v762
        %930 = vmatprep.subr.bf16.mxu0 %v760
        %931 = vmatpush1.bf16.msra.mxu0 %v759
        %932 = vmatprep.subr.bf16.mxu0 0
        %933 = vmatpush2.bf16.msra.mxu0 0
        %934 = vmatprep.subr.bf16.mxu0 0
        %935 = vmatpush2.bf16.msra.mxu0 0
        %936 = vmatprep.subr.bf16.mxu0 0
        %937 = vmatpush2.bf16.msra.mxu0 0
        %938 = vmatprep.subr.bf16.mxu0 0
        %939 = vmatpush2.bf16.msra.mxu0 0
        %940 = vmatprep.subr.bf16.mxu0 0
        %941 = vmatpush2.bf16.msra.mxu0 0
        %942 = vmatprep.subr.bf16.mxu0 0
        %943 = vmatpush2.bf16.msra.mxu0 0
        %944 = vmatprep.subr.bf16.mxu0 0
        %945 = vmatpush2.bf16.msra.mxu0 0
        %946 = vmatprep.subr.bf16.mxu0 0
        %947 = vmatpush2.bf16.msra.mxu0 0
        %948 = vmatprep.mubr.bf16.mxu0 0
        %949 = vmatmul.mubr.bf16.gmra.mxu0 %v910
        %v950 = vpop.f32.mrf.mxu0
        %v951 = vadd.f32 0.0, %v950
        %v952 = vpop.f32.mrf.mxu0
        %v953 = vadd.f32 0.0, %v952
        %v954 = vpop.f32.mrf.mxu0
        %v955 = vpop.f32.mrf.mxu0
        %956 = vdwg.mxu0
        %957 = vmatprep.subr.bf16.mxu0 0
        %958 = vmatpush1.bf16.msra.mxu0 %v782
        %959 = vmatprep.subr.bf16.mxu0 0
        %960 = vmatpush1.bf16.msra.mxu0 %v779
        %961 = vmatprep.subr.bf16.mxu0 0
        %962 = vmatpush1.bf16.msra.mxu0 %v776
        %963 = vmatprep.subr.bf16.mxu0 0
        %964 = vmatpush1.bf16.msra.mxu0 %v773
        %965 = vmatprep.subr.bf16.mxu0 0
        %966 = vmatpush1.bf16.msra.mxu0 %v770
        %967 = vmatprep.subr.bf16.mxu0 0
        %968 = vmatpush1.bf16.msra.mxu0 %v767
        %969 = vmatprep.subr.bf16.mxu0 0
        %970 = vmatpush1.bf16.msra.mxu0 %v764
        %971 = vmatprep.subr.bf16.mxu0 0
        %972 = vmatpush1.bf16.msra.mxu0 %v761
        %973 = vmatprep.subr.bf16.mxu0 0
        %974 = vmatpush2.bf16.msra.mxu0 0
        %975 = vmatprep.subr.bf16.mxu0 0
        %976 = vmatpush2.bf16.msra.mxu0 0
        %977 = vmatprep.subr.bf16.mxu0 0
        %978 = vmatpush2.bf16.msra.mxu0 0
        %979 = vmatprep.subr.bf16.mxu0 0
        %980 = vmatpush2.bf16.msra.mxu0 0
        %981 = vmatprep.subr.bf16.mxu0 0
        %982 = vmatpush2.bf16.msra.mxu0 0
        %983 = vmatprep.subr.bf16.mxu0 0
        %984 = vmatpush2.bf16.msra.mxu0 0
        %985 = vmatprep.subr.bf16.mxu0 0
        %986 = vmatpush2.bf16.msra.mxu0 0
        %987 = vmatprep.subr.bf16.mxu0 0
        %988 = vmatpush2.bf16.msra.mxu0 0
        %989 = vmatprep.mubr.bf16.mxu0 0
        %990 = vmatmul.mubr.bf16.gmra.mxu0 %v910
        %v991 = vpop.f32.mrf.mxu0
        %v992 = vadd.f32 0.0, %v991
        %v993 = vpop.f32.mrf.mxu0
        %v994 = vpop.f32.mrf.mxu0
        %v995 = vpop.f32.mrf.mxu0
        %996 = vdwg.mxu0
        %v997 = vadd.f32 %v913, %v951
        %v998 = vxor.u32 %v997, 2147483648
        %v999 = vmul.f32 %v998, 1.442695
        %v1000 = vpow.pop %v999
        %v1001 = vadd.f32 %v1000, 1.0
        %v1002 = vrcp.pop %v1001
        %v1003 = vmul.f32 1.0, %v1002
        %v1004 = vadd.f32 %v914, %v953
        %v1005 = vxor.u32 %v1004, 2147483648
        %v1006 = vmul.f32 %v1005, 1.442695
        %v1007 = vpow.pop %v1006
        %v1008 = vadd.f32 %v1007, 1.0
        %v1009 = vrcp.pop %v1008
        %v1010 = vmul.f32 1.0, %v1009
        %v1011 = vadd.f32 %v992, %v672
        %v1012 = vmul.f32 %v1003, %v1011
        %v1013 = vadd.f32 %v915, %v1012
        %v1014 = vtanh.pop %v1013
        %v1015 = vsub.f32 1.0, %v1010
        %v1016 = vmul.f32 %v1015, %v1014
        %v1017 = vmul.f32 %v1010, %v909
        %v1018 = vadd.f32 %v1016, %v1017
        %v1019 = vpack.c.bf16 %v1018, %v1018
        %s1020 = scalar_lea.vmem %s256, 4
        %1021 = vst [vmem:[%s1020] sm:$0xf] %v1019
        %s1022 = scalar_lea.vmem [#allocation2], 48
        %v1023 = vld [vmem:[%s1022] sm:$0xff]
        %v1024 = vld [vmem:[%s1022 + $0x8] sm:$0xff]
        %v1025 = vld [vmem:[%s1022 + $0x10] sm:$0xff]
        %1026 = vmatprep.subr.bf16.mxu0 %v781
        %1027 = vmatpush1.bf16.msra.mxu0 %v780
        %1028 = vmatprep.subr.bf16.mxu0 %v778
        %1029 = vmatpush1.bf16.msra.mxu0 %v777
        %1030 = vmatprep.subr.bf16.mxu0 %v775
        %1031 = vmatpush1.bf16.msra.mxu0 %v774
        %1032 = vmatprep.subr.bf16.mxu0 %v772
        %1033 = vmatpush1.bf16.msra.mxu0 %v771
        %1034 = vmatprep.subr.bf16.mxu0 %v769
        %1035 = vmatpush1.bf16.msra.mxu0 %v768
        %1036 = vmatprep.subr.bf16.mxu0 %v766
        %1037 = vmatpush1.bf16.msra.mxu0 %v765
        %1038 = vmatprep.subr.bf16.mxu0 %v763
        %1039 = vmatpush1.bf16.msra.mxu0 %v762
        %1040 = vmatprep.subr.bf16.mxu0 %v760
        %1041 = vmatpush1.bf16.msra.mxu0 %v759
        %1042 = vmatprep.subr.bf16.mxu0 0
        %1043 = vmatpush2.bf16.msra.mxu0 0
        %1044 = vmatprep.subr.bf16.mxu0 0
        %1045 = vmatpush2.bf16.msra.mxu0 0
        %1046 = vmatprep.subr.bf16.mxu0 0
        %1047 = vmatpush2.bf16.msra.mxu0 0
        %1048 = vmatprep.subr.bf16.mxu0 0
        %1049 = vmatpush2.bf16.msra.mxu0 0
        %1050 = vmatprep.subr.bf16.mxu0 0
        %1051 = vmatpush2.bf16.msra.mxu0 0
        %1052 = vmatprep.subr.bf16.mxu0 0
        %1053 = vmatpush2.bf16.msra.mxu0 0
        %1054 = vmatprep.subr.bf16.mxu0 0
        %1055 = vmatpush2.bf16.msra.mxu0 0
        %1056 = vmatprep.subr.bf16.mxu0 0
        %1057 = vmatpush2.bf16.msra.mxu0 0
        %1058 = vmatprep.mubr.bf16.mxu0 0
        %1059 = vmatmul.mubr.bf16.gmra.mxu0 %v1019
        %v1060 = vpop.f32.mrf.mxu0
        %v1061 = vadd.f32 0.0, %v1060
        %v1062 = vpop.f32.mrf.mxu0
        %v1063 = vadd.f32 0.0, %v1062
        %v1064 = vpop.f32.mrf.mxu0
        %v1065 = vpop.f32.mrf.mxu0
        %1066 = vdwg.mxu0
        %1067 = vmatprep.subr.bf16.mxu0 0
        %1068 = vmatpush1.bf16.msra.mxu0 %v782
        %1069 = vmatprep.subr.bf16.mxu0 0
        %1070 = vmatpush1.bf16.msra.mxu0 %v779
        %1071 = vmatprep.subr.bf16.mxu0 0
        %1072 = vmatpush1.bf16.msra.mxu0 %v776
        %1073 = vmatprep.subr.bf16.mxu0 0
        %1074 = vmatpush1.bf16.msra.mxu0 %v773
        %1075 = vmatprep.subr.bf16.mxu0 0
        %1076 = vmatpush1.bf16.msra.mxu0 %v770
        %1077 = vmatprep.subr.bf16.mxu0 0
        %1078 = vmatpush1.bf16.msra.mxu0 %v767
        %1079 = vmatprep.subr.bf16.mxu0 0
        %1080 = vmatpush1.bf16.msra.mxu0 %v764
        %1081 = vmatprep.subr.bf16.mxu0 0
        %1082 = vmatpush1.bf16.msra.mxu0 %v761
        %1083 = vmatprep.subr.bf16.mxu0 0
        %1084 = vmatpush2.bf16.msra.mxu0 0
        %1085 = vmatprep.subr.bf16.mxu0 0
        %1086 = vmatpush2.bf16.msra.mxu0 0
        %1087 = vmatprep.subr.bf16.mxu0 0
        %1088 = vmatpush2.bf16.msra.mxu0 0
        %1089 = vmatprep.subr.bf16.mxu0 0
        %1090 = vmatpush2.bf16.msra.mxu0 0
        %1091 = vmatprep.subr.bf16.mxu0 0
        %1092 = vmatpush2.bf16.msra.mxu0 0
        %1093 = vmatprep.subr.bf16.mxu0 0
        %1094 = vmatpush2.bf16.msra.mxu0 0
        %1095 = vmatprep.subr.bf16.mxu0 0
        %1096 = vmatpush2.bf16.msra.mxu0 0
        %1097 = vmatprep.subr.bf16.mxu0 0
        %1098 = vmatpush2.bf16.msra.mxu0 0
        %1099 = vmatprep.mubr.bf16.mxu0 0
        %1100 = vmatmul.mubr.bf16.gmra.mxu0 %v1019
        %v1101 = vpop.f32.mrf.mxu0
        %v1102 = vadd.f32 0.0, %v1101
        %v1103 = vpop.f32.mrf.mxu0
        %v1104 = vpop.f32.mrf.mxu0
        %v1105 = vpop.f32.mrf.mxu0
        %1106 = vdwg.mxu0
        %v1107 = vadd.f32 %v1023, %v1061
        %v1108 = vxor.u32 %v1107, 2147483648
        %v1109 = vmul.f32 %v1108, 1.442695
        %v1110 = vpow.pop %v1109
        %v1111 = vadd.f32 %v1110, 1.0
        %v1112 = vrcp.pop %v1111
        %v1113 = vmul.f32 1.0, %v1112
        %v1114 = vadd.f32 %v1024, %v1063
        %v1115 = vxor.u32 %v1114, 2147483648
        %v1116 = vmul.f32 %v1115, 1.442695
        %v1117 = vpow.pop %v1116
        %v1118 = vadd.f32 %v1117, 1.0
        %v1119 = vrcp.pop %v1118
        %v1120 = vmul.f32 1.0, %v1119
        %v1121 = vadd.f32 %v1102, %v672
        %v1122 = vmul.f32 %v1113, %v1121
        %v1123 = vadd.f32 %v1025, %v1122
        %v1124 = vtanh.pop %v1123
        %v1125 = vsub.f32 1.0, %v1120
        %v1126 = vmul.f32 %v1125, %v1124
        %v1127 = vmul.f32 %v1120, %v1018
        %v1128 = vadd.f32 %v1126, %v1127
        %v1129 = vpack.c.bf16 %v1128, %v1128
        %s1130 = scalar_lea.vmem %s256, 8
        %1131 = vst [vmem:[%s1130] sm:$0xf] %v1129
        %s1132 = scalar_lea.vmem [#allocation2], 72
        %v1133 = vld [vmem:[%s1132] sm:$0xff]
        %v1134 = vld [vmem:[%s1132 + $0x8] sm:$0xff]
        %v1135 = vld [vmem:[%s1132 + $0x10] sm:$0xff]
        %1136 = vmatprep.subr.bf16.mxu0 %v781
        %1137 = vmatpush1.bf16.msra.mxu0 %v780
        %1138 = vmatprep.subr.bf16.mxu0 %v778
        %1139 = vmatpush1.bf16.msra.mxu0 %v777
        %1140 = vmatprep.subr.bf16.mxu0 %v775
        %1141 = vmatpush1.bf16.msra.mxu0 %v774
        %1142 = vmatprep.subr.bf16.mxu0 %v772
        %1143 = vmatpush1.bf16.msra.mxu0 %v771
        %1144 = vmatprep.subr.bf16.mxu0 %v769
        %1145 = vmatpush1.bf16.msra.mxu0 %v768
        %1146 = vmatprep.subr.bf16.mxu0 %v766
        %1147 = vmatpush1.bf16.msra.mxu0 %v765
        %1148 = vmatprep.subr.bf16.mxu0 %v763
        %1149 = vmatpush1.bf16.msra.mxu0 %v762
        %1150 = vmatprep.subr.bf16.mxu0 %v760
        %1151 = vmatpush1.bf16.msra.mxu0 %v759
        %1152 = vmatprep.subr.bf16.mxu0 0
        %1153 = vmatpush2.bf16.msra.mxu0 0
        %1154 = vmatprep.subr.bf16.mxu0 0
        %1155 = vmatpush2.bf16.msra.mxu0 0
        %1156 = vmatprep.subr.bf16.mxu0 0
        %1157 = vmatpush2.bf16.msra.mxu0 0
        %1158 = vmatprep.subr.bf16.mxu0 0
        %1159 = vmatpush2.bf16.msra.mxu0 0
        %1160 = vmatprep.subr.bf16.mxu0 0
        %1161 = vmatpush2.bf16.msra.mxu0 0
        %1162 = vmatprep.subr.bf16.mxu0 0
        %1163 = vmatpush2.bf16.msra.mxu0 0
        %1164 = vmatprep.subr.bf16.mxu0 0
        %1165 = vmatpush2.bf16.msra.mxu0 0
        %1166 = vmatprep.subr.bf16.mxu0 0
        %1167 = vmatpush2.bf16.msra.mxu0 0
        %1168 = vmatprep.mubr.bf16.mxu0 0
        %1169 = vmatmul.mubr.bf16.gmra.mxu0 %v1129
        %v1170 = vpop.f32.mrf.mxu0
        %v1171 = vadd.f32 0.0, %v1170
        %v1172 = vpop.f32.mrf.mxu0
        %v1173 = vadd.f32 0.0, %v1172
        %v1174 = vpop.f32.mrf.mxu0
        %v1175 = vpop.f32.mrf.mxu0
        %1176 = vdwg.mxu0
        %1177 = vmatprep.subr.bf16.mxu0 0
        %1178 = vmatpush1.bf16.msra.mxu0 %v782
        %1179 = vmatprep.subr.bf16.mxu0 0
        %1180 = vmatpush1.bf16.msra.mxu0 %v779
        %1181 = vmatprep.subr.bf16.mxu0 0
        %1182 = vmatpush1.bf16.msra.mxu0 %v776
        %1183 = vmatprep.subr.bf16.mxu0 0
        %1184 = vmatpush1.bf16.msra.mxu0 %v773
        %1185 = vmatprep.subr.bf16.mxu0 0
        %1186 = vmatpush1.bf16.msra.mxu0 %v770
        %1187 = vmatprep.subr.bf16.mxu0 0
        %1188 = vmatpush1.bf16.msra.mxu0 %v767
        %1189 = vmatprep.subr.bf16.mxu0 0
        %1190 = vmatpush1.bf16.msra.mxu0 %v764
        %1191 = vmatprep.subr.bf16.mxu0 0
        %1192 = vmatpush1.bf16.msra.mxu0 %v761
        %1193 = vmatprep.subr.bf16.mxu0 0
        %1194 = vmatpush2.bf16.msra.mxu0 0
        %1195 = vmatprep.subr.bf16.mxu0 0
        %1196 = vmatpush2.bf16.msra.mxu0 0
        %1197 = vmatprep.subr.bf16.mxu0 0
        %1198 = vmatpush2.bf16.msra.mxu0 0
        %1199 = vmatprep.subr.bf16.mxu0 0
        %1200 = vmatpush2.bf16.msra.mxu0 0
        %1201 = vmatprep.subr.bf16.mxu0 0
        %1202 = vmatpush2.bf16.msra.mxu0 0
        %1203 = vmatprep.subr.bf16.mxu0 0
        %1204 = vmatpush2.bf16.msra.mxu0 0
        %1205 = vmatprep.subr.bf16.mxu0 0
        %1206 = vmatpush2.bf16.msra.mxu0 0
        %1207 = vmatprep.subr.bf16.mxu0 0
        %1208 = vmatpush2.bf16.msra.mxu0 0
        %1209 = vmatprep.mubr.bf16.mxu0 0
        %1210 = vmatmul.mubr.bf16.gmra.mxu0 %v1129
        %v1211 = vpop.f32.mrf.mxu0
        %v1212 = vadd.f32 0.0, %v1211
        %v1213 = vpop.f32.mrf.mxu0
        %v1214 = vpop.f32.mrf.mxu0
        %v1215 = vpop.f32.mrf.mxu0
        %1216 = vdwg.mxu0
        %v1217 = vadd.f32 %v1133, %v1171
        %v1218 = vxor.u32 %v1217, 2147483648
        %v1219 = vmul.f32 %v1218, 1.442695
        %v1220 = vpow.pop %v1219
        %v1221 = vadd.f32 %v1220, 1.0
        %v1222 = vrcp.pop %v1221
        %v1223 = vmul.f32 1.0, %v1222
        %v1224 = vadd.f32 %v1134, %v1173
        %v1225 = vxor.u32 %v1224, 2147483648
        %v1226 = vmul.f32 %v1225, 1.442695
        %v1227 = vpow.pop %v1226
        %v1228 = vadd.f32 %v1227, 1.0
        %v1229 = vrcp.pop %v1228
        %v1230 = vmul.f32 1.0, %v1229
        %v1231 = vadd.f32 %v1212, %v672
        %v1232 = vmul.f32 %v1223, %v1231
        %v1233 = vadd.f32 %v1135, %v1232
        %v1234 = vtanh.pop %v1233
        %v1235 = vsub.f32 1.0, %v1230
        %v1236 = vmul.f32 %v1235, %v1234
        %v1237 = vmul.f32 %v1230, %v1128
        %v1238 = vadd.f32 %v1236, %v1237
        %v1239 = vpack.c.bf16 %v1238, %v1238
        %s1240 = scalar_lea.vmem %s256, 12
        %1241 = vst [vmem:[%s1240] sm:$0xf] %v1239
        %s1242 = scalar_lea.vmem [#allocation2], 96
        %v1243 = vld [vmem:[%s1242] sm:$0xff]
        %v1244 = vld [vmem:[%s1242 + $0x8] sm:$0xff]
        %v1245 = vld [vmem:[%s1242 + $0x10] sm:$0xff]
        %1246 = vmatprep.subr.bf16.mxu0 %v781
        %1247 = vmatpush1.bf16.msra.mxu0 %v780
        %1248 = vmatprep.subr.bf16.mxu0 %v778
        %1249 = vmatpush1.bf16.msra.mxu0 %v777
        %1250 = vmatprep.subr.bf16.mxu0 %v775
        %1251 = vmatpush1.bf16.msra.mxu0 %v774
        %1252 = vmatprep.subr.bf16.mxu0 %v772
        %1253 = vmatpush1.bf16.msra.mxu0 %v771
        %1254 = vmatprep.subr.bf16.mxu0 %v769
        %1255 = vmatpush1.bf16.msra.mxu0 %v768
        %1256 = vmatprep.subr.bf16.mxu0 %v766
        %1257 = vmatpush1.bf16.msra.mxu0 %v765
        %1258 = vmatprep.subr.bf16.mxu0 %v763
        %1259 = vmatpush1.bf16.msra.mxu0 %v762
        %1260 = vmatprep.subr.bf16.mxu0 %v760
        %1261 = vmatpush1.bf16.msra.mxu0 %v759
        %1262 = vmatprep.subr.bf16.mxu0 0
        %1263 = vmatpush2.bf16.msra.mxu0 0
        %1264 = vmatprep.subr.bf16.mxu0 0
        %1265 = vmatpush2.bf16.msra.mxu0 0
        %1266 = vmatprep.subr.bf16.mxu0 0
        %1267 = vmatpush2.bf16.msra.mxu0 0
        %1268 = vmatprep.subr.bf16.mxu0 0
        %1269 = vmatpush2.bf16.msra.mxu0 0
        %1270 = vmatprep.subr.bf16.mxu0 0
        %1271 = vmatpush2.bf16.msra.mxu0 0
        %1272 = vmatprep.subr.bf16.mxu0 0
        %1273 = vmatpush2.bf16.msra.mxu0 0
        %1274 = vmatprep.subr.bf16.mxu0 0
        %1275 = vmatpush2.bf16.msra.mxu0 0
        %1276 = vmatprep.subr.bf16.mxu0 0
        %1277 = vmatpush2.bf16.msra.mxu0 0
        %1278 = vmatprep.mubr.bf16.mxu0 0
        %1279 = vmatmul.mubr.bf16.gmra.mxu0 %v1239
        %v1280 = vpop.f32.mrf.mxu0
        %v1281 = vadd.f32 0.0, %v1280
        %v1282 = vpop.f32.mrf.mxu0
        %v1283 = vadd.f32 0.0, %v1282
        %v1284 = vpop.f32.mrf.mxu0
        %v1285 = vpop.f32.mrf.mxu0
        %1286 = vdwg.mxu0
        %1287 = vmatprep.subr.bf16.mxu0 0
        %1288 = vmatpush1.bf16.msra.mxu0 %v782
        %1289 = vmatprep.subr.bf16.mxu0 0
        %1290 = vmatpush1.bf16.msra.mxu0 %v779
        %1291 = vmatprep.subr.bf16.mxu0 0
        %1292 = vmatpush1.bf16.msra.mxu0 %v776
        %1293 = vmatprep.subr.bf16.mxu0 0
        %1294 = vmatpush1.bf16.msra.mxu0 %v773
        %1295 = vmatprep.subr.bf16.mxu0 0
        %1296 = vmatpush1.bf16.msra.mxu0 %v770
        %1297 = vmatprep.subr.bf16.mxu0 0
        %1298 = vmatpush1.bf16.msra.mxu0 %v767
        %1299 = vmatprep.subr.bf16.mxu0 0
        %1300 = vmatpush1.bf16.msra.mxu0 %v764
        %1301 = vmatprep.subr.bf16.mxu0 0
        %1302 = vmatpush1.bf16.msra.mxu0 %v761
        %1303 = vmatprep.subr.bf16.mxu0 0
        %1304 = vmatpush2.bf16.msra.mxu0 0
        %1305 = vmatprep.subr.bf16.mxu0 0
        %1306 = vmatpush2.bf16.msra.mxu0 0
        %1307 = vmatprep.subr.bf16.mxu0 0
        %1308 = vmatpush2.bf16.msra.mxu0 0
        %1309 = vmatprep.subr.bf16.mxu0 0
        %1310 = vmatpush2.bf16.msra.mxu0 0
        %1311 = vmatprep.subr.bf16.mxu0 0
        %1312 = vmatpush2.bf16.msra.mxu0 0
        %1313 = vmatprep.subr.bf16.mxu0 0
        %1314 = vmatpush2.bf16.msra.mxu0 0
        %1315 = vmatprep.subr.bf16.mxu0 0
        %1316 = vmatpush2.bf16.msra.mxu0 0
        %1317 = vmatprep.subr.bf16.mxu0 0
        %1318 = vmatpush2.bf16.msra.mxu0 0
        %1319 = vmatprep.mubr.bf16.mxu0 0
        %1320 = vmatmul.mubr.bf16.gmra.mxu0 %v1239
        %v1321 = vpop.f32.mrf.mxu0
        %v1322 = vadd.f32 0.0, %v1321
        %v1323 = vpop.f32.mrf.mxu0
        %v1324 = vpop.f32.mrf.mxu0
        %v1325 = vpop.f32.mrf.mxu0
        %1326 = vdwg.mxu0
        %v1327 = vadd.f32 %v1243, %v1281
        %v1328 = vxor.u32 %v1327, 2147483648
        %v1329 = vmul.f32 %v1328, 1.442695
        %v1330 = vpow.pop %v1329
        %v1331 = vadd.f32 %v1330, 1.0
        %v1332 = vrcp.pop %v1331
        %v1333 = vmul.f32 1.0, %v1332
        %v1334 = vadd.f32 %v1244, %v1283
        %v1335 = vxor.u32 %v1334, 2147483648
        %v1336 = vmul.f32 %v1335, 1.442695
        %v1337 = vpow.pop %v1336
        %v1338 = vadd.f32 %v1337, 1.0
        %v1339 = vrcp.pop %v1338
        %v1340 = vmul.f32 1.0, %v1339
        %v1341 = vadd.f32 %v1322, %v672
        %v1342 = vmul.f32 %v1333, %v1341
        %v1343 = vadd.f32 %v1245, %v1342
        %v1344 = vtanh.pop %v1343
        %v1345 = vsub.f32 1.0, %v1340
        %v1346 = vmul.f32 %v1345, %v1344
        %v1347 = vmul.f32 %v1340, %v1238
        %v1348 = vadd.f32 %v1346, %v1347
        %v1349 = vpack.c.bf16 %v1348, %v1348
        %s1350 = scalar_lea.vmem %s256, 16
        %1351 = vst [vmem:[%s1350] sm:$0xf] %v1349
        %s1352 = scalar_lea.vmem [#allocation2], 120
        %v1353 = vld [vmem:[%s1352] sm:$0xff]
        %v1354 = vld [vmem:[%s1352 + $0x8] sm:$0xff]
        %v1355 = vld [vmem:[%s1352 + $0x10] sm:$0xff]
        %1356 = vmatprep.subr.bf16.mxu0 %v781
        %1357 = vmatpush1.bf16.msra.mxu0 %v780
        %1358 = vmatprep.subr.bf16.mxu0 %v778
        %1359 = vmatpush1.bf16.msra.mxu0 %v777
        %1360 = vmatprep.subr.bf16.mxu0 %v775
        %1361 = vmatpush1.bf16.msra.mxu0 %v774
        %1362 = vmatprep.subr.bf16.mxu0 %v772
        %1363 = vmatpush1.bf16.msra.mxu0 %v771
        %1364 = vmatprep.subr.bf16.mxu0 %v769
        %1365 = vmatpush1.bf16.msra.mxu0 %v768
        %1366 = vmatprep.subr.bf16.mxu0 %v766
        %1367 = vmatpush1.bf16.msra.mxu0 %v765
        %1368 = vmatprep.subr.bf16.mxu0 %v763
        %1369 = vmatpush1.bf16.msra.mxu0 %v762
        %1370 = vmatprep.subr.bf16.mxu0 %v760
        %1371 = vmatpush1.bf16.msra.mxu0 %v759
        %1372 = vmatprep.subr.bf16.mxu0 0
        %1373 = vmatpush2.bf16.msra.mxu0 0
        %1374 = vmatprep.subr.bf16.mxu0 0
        %1375 = vmatpush2.bf16.msra.mxu0 0
        %1376 = vmatprep.subr.bf16.mxu0 0
        %1377 = vmatpush2.bf16.msra.mxu0 0
        %1378 = vmatprep.subr.bf16.mxu0 0
        %1379 = vmatpush2.bf16.msra.mxu0 0
        %1380 = vmatprep.subr.bf16.mxu0 0
        %1381 = vmatpush2.bf16.msra.mxu0 0
        %1382 = vmatprep.subr.bf16.mxu0 0
        %1383 = vmatpush2.bf16.msra.mxu0 0
        %1384 = vmatprep.subr.bf16.mxu0 0
        %1385 = vmatpush2.bf16.msra.mxu0 0
        %1386 = vmatprep.subr.bf16.mxu0 0
        %1387 = vmatpush2.bf16.msra.mxu0 0
        %1388 = vmatprep.mubr.bf16.mxu0 0
        %1389 = vmatmul.mubr.bf16.gmra.mxu0 %v1349
        %v1390 = vpop.f32.mrf.mxu0
        %v1391 = vadd.f32 0.0, %v1390
        %v1392 = vpop.f32.mrf.mxu0
        %v1393 = vadd.f32 0.0, %v1392
        %v1394 = vpop.f32.mrf.mxu0
        %v1395 = vpop.f32.mrf.mxu0
        %1396 = vdwg.mxu0
        %1397 = vmatprep.subr.bf16.mxu0 0
        %1398 = vmatpush1.bf16.msra.mxu0 %v782
        %1399 = vmatprep.subr.bf16.mxu0 0
        %1400 = vmatpush1.bf16.msra.mxu0 %v779
        %1401 = vmatprep.subr.bf16.mxu0 0
        %1402 = vmatpush1.bf16.msra.mxu0 %v776
        %1403 = vmatprep.subr.bf16.mxu0 0
        %1404 = vmatpush1.bf16.msra.mxu0 %v773
        %1405 = vmatprep.subr.bf16.mxu0 0
        %1406 = vmatpush1.bf16.msra.mxu0 %v770
        %1407 = vmatprep.subr.bf16.mxu0 0
        %1408 = vmatpush1.bf16.msra.mxu0 %v767
        %1409 = vmatprep.subr.bf16.mxu0 0
        %1410 = vmatpush1.bf16.msra.mxu0 %v764
        %1411 = vmatprep.subr.bf16.mxu0 0
        %1412 = vmatpush1.bf16.msra.mxu0 %v761
        %1413 = vmatprep.subr.bf16.mxu0 0
        %1414 = vmatpush2.bf16.msra.mxu0 0
        %1415 = vmatprep.subr.bf16.mxu0 0
        %1416 = vmatpush2.bf16.msra.mxu0 0
        %1417 = vmatprep.subr.bf16.mxu0 0
        %1418 = vmatpush2.bf16.msra.mxu0 0
        %1419 = vmatprep.subr.bf16.mxu0 0
        %1420 = vmatpush2.bf16.msra.mxu0 0
        %1421 = vmatprep.subr.bf16.mxu0 0
        %1422 = vmatpush2.bf16.msra.mxu0 0
        %1423 = vmatprep.subr.bf16.mxu0 0
        %1424 = vmatpush2.bf16.msra.mxu0 0
        %1425 = vmatprep.subr.bf16.mxu0 0
        %1426 = vmatpush2.bf16.msra.mxu0 0
        %1427 = vmatprep.subr.bf16.mxu0 0
        %1428 = vmatpush2.bf16.msra.mxu0 0
        %1429 = vmatprep.mubr.bf16.mxu0 0
        %1430 = vmatmul.mubr.bf16.gmra.mxu0 %v1349
        %v1431 = vpop.f32.mrf.mxu0
        %v1432 = vadd.f32 0.0, %v1431
        %v1433 = vpop.f32.mrf.mxu0
        %v1434 = vpop.f32.mrf.mxu0
        %v1435 = vpop.f32.mrf.mxu0
        %1436 = vdwg.mxu0
        %v1437 = vadd.f32 %v1353, %v1391
        %v1438 = vxor.u32 %v1437, 2147483648
        %v1439 = vmul.f32 %v1438, 1.442695
        %v1440 = vpow.pop %v1439
        %v1441 = vadd.f32 %v1440, 1.0
        %v1442 = vrcp.pop %v1441
        %v1443 = vmul.f32 1.0, %v1442
        %v1444 = vadd.f32 %v1354, %v1393
        %v1445 = vxor.u32 %v1444, 2147483648
        %v1446 = vmul.f32 %v1445, 1.442695
        %v1447 = vpow.pop %v1446
        %v1448 = vadd.f32 %v1447, 1.0
        %v1449 = vrcp.pop %v1448
        %v1450 = vmul.f32 1.0, %v1449
        %v1451 = vadd.f32 %v1432, %v672
        %v1452 = vmul.f32 %v1443, %v1451
        %v1453 = vadd.f32 %v1355, %v1452
        %v1454 = vtanh.pop %v1453
        %v1455 = vsub.f32 1.0, %v1450
        %v1456 = vmul.f32 %v1455, %v1454
        %v1457 = vmul.f32 %v1450, %v1348
        %v1458 = vadd.f32 %v1456, %v1457
        %v1459 = vpack.c.bf16 %v1458, %v1458
        %s1460 = scalar_lea.vmem %s256, 20
        %1461 = vst [vmem:[%s1460] sm:$0xf] %v1459
        %s1462 = scalar_lea.vmem [#allocation2], 144
        %v1463 = vld [vmem:[%s1462] sm:$0xff]
        %v1464 = vld [vmem:[%s1462 + $0x8] sm:$0xff]
        %v1465 = vld [vmem:[%s1462 + $0x10] sm:$0xff]
        %1466 = vmatprep.subr.bf16.mxu0 %v781
        %1467 = vmatpush1.bf16.msra.mxu0 %v780
        %1468 = vmatprep.subr.bf16.mxu0 %v778
        %1469 = vmatpush1.bf16.msra.mxu0 %v777
        %1470 = vmatprep.subr.bf16.mxu0 %v775
        %1471 = vmatpush1.bf16.msra.mxu0 %v774
        %1472 = vmatprep.subr.bf16.mxu0 %v772
        %1473 = vmatpush1.bf16.msra.mxu0 %v771
        %1474 = vmatprep.subr.bf16.mxu0 %v769
        %1475 = vmatpush1.bf16.msra.mxu0 %v768
        %1476 = vmatprep.subr.bf16.mxu0 %v766
        %1477 = vmatpush1.bf16.msra.mxu0 %v765
        %1478 = vmatprep.subr.bf16.mxu0 %v763
        %1479 = vmatpush1.bf16.msra.mxu0 %v762
        %1480 = vmatprep.subr.bf16.mxu0 %v760
        %1481 = vmatpush1.bf16.msra.mxu0 %v759
        %1482 = vmatprep.subr.bf16.mxu0 0
        %1483 = vmatpush2.bf16.msra.mxu0 0
        %1484 = vmatprep.subr.bf16.mxu0 0
        %1485 = vmatpush2.bf16.msra.mxu0 0
        %1486 = vmatprep.subr.bf16.mxu0 0
        %1487 = vmatpush2.bf16.msra.mxu0 0
        %1488 = vmatprep.subr.bf16.mxu0 0
        %1489 = vmatpush2.bf16.msra.mxu0 0
        %1490 = vmatprep.subr.bf16.mxu0 0
        %1491 = vmatpush2.bf16.msra.mxu0 0
        %1492 = vmatprep.subr.bf16.mxu0 0
        %1493 = vmatpush2.bf16.msra.mxu0 0
        %1494 = vmatprep.subr.bf16.mxu0 0
        %1495 = vmatpush2.bf16.msra.mxu0 0
        %1496 = vmatprep.subr.bf16.mxu0 0
        %1497 = vmatpush2.bf16.msra.mxu0 0
        %1498 = vmatprep.mubr.bf16.mxu0 0
        %1499 = vmatmul.mubr.bf16.gmra.mxu0 %v1459
        %v1500 = vpop.f32.mrf.mxu0
        %v1501 = vadd.f32 0.0, %v1500
        %v1502 = vpop.f32.mrf.mxu0
        %v1503 = vadd.f32 0.0, %v1502
        %v1504 = vpop.f32.mrf.mxu0
        %v1505 = vpop.f32.mrf.mxu0
        %1506 = vdwg.mxu0
        %1507 = vmatprep.subr.bf16.mxu0 0
        %1508 = vmatpush1.bf16.msra.mxu0 %v782
        %1509 = vmatprep.subr.bf16.mxu0 0
        %1510 = vmatpush1.bf16.msra.mxu0 %v779
        %1511 = vmatprep.subr.bf16.mxu0 0
        %1512 = vmatpush1.bf16.msra.mxu0 %v776
        %1513 = vmatprep.subr.bf16.mxu0 0
        %1514 = vmatpush1.bf16.msra.mxu0 %v773
        %1515 = vmatprep.subr.bf16.mxu0 0
        %1516 = vmatpush1.bf16.msra.mxu0 %v770
        %1517 = vmatprep.subr.bf16.mxu0 0
        %1518 = vmatpush1.bf16.msra.mxu0 %v767
        %1519 = vmatprep.subr.bf16.mxu0 0
        %1520 = vmatpush1.bf16.msra.mxu0 %v764
        %1521 = vmatprep.subr.bf16.mxu0 0
        %1522 = vmatpush1.bf16.msra.mxu0 %v761
        %1523 = vmatprep.subr.bf16.mxu0 0
        %1524 = vmatpush2.bf16.msra.mxu0 0
        %1525 = vmatprep.subr.bf16.mxu0 0
        %1526 = vmatpush2.bf16.msra.mxu0 0
        %1527 = vmatprep.subr.bf16.mxu0 0
        %1528 = vmatpush2.bf16.msra.mxu0 0
        %1529 = vmatprep.subr.bf16.mxu0 0
        %1530 = vmatpush2.bf16.msra.mxu0 0
        %1531 = vmatprep.subr.bf16.mxu0 0
        %1532 = vmatpush2.bf16.msra.mxu0 0
        %1533 = vmatprep.subr.bf16.mxu0 0
        %1534 = vmatpush2.bf16.msra.mxu0 0
        %1535 = vmatprep.subr.bf16.mxu0 0
        %1536 = vmatpush2.bf16.msra.mxu0 0
        %1537 = vmatprep.subr.bf16.mxu0 0
        %1538 = vmatpush2.bf16.msra.mxu0 0
        %1539 = vmatprep.mubr.bf16.mxu0 0
        %1540 = vmatmul.mubr.bf16.gmra.mxu0 %v1459
        %v1541 = vpop.f32.mrf.mxu0
        %v1542 = vadd.f32 0.0, %v1541
        %v1543 = vpop.f32.mrf.mxu0
        %v1544 = vpop.f32.mrf.mxu0
        %v1545 = vpop.f32.mrf.mxu0
        %1546 = vdwg.mxu0
        %v1547 = vadd.f32 %v1463, %v1501
        %v1548 = vxor.u32 %v1547, 2147483648
        %v1549 = vmul.f32 %v1548, 1.442695
        %v1550 = vpow.pop %v1549
        %v1551 = vadd.f32 %v1550, 1.0
        %v1552 = vrcp.pop %v1551
        %v1553 = vmul.f32 1.0, %v1552
        %v1554 = vadd.f32 %v1464, %v1503
        %v1555 = vxor.u32 %v1554, 2147483648
        %v1556 = vmul.f32 %v1555, 1.442695
        %v1557 = vpow.pop %v1556
        %v1558 = vadd.f32 %v1557, 1.0
        %v1559 = vrcp.pop %v1558
        %v1560 = vmul.f32 1.0, %v1559
        %v1561 = vadd.f32 %v1542, %v672
        %v1562 = vmul.f32 %v1553, %v1561
        %v1563 = vadd.f32 %v1465, %v1562
        %v1564 = vtanh.pop %v1563
        %v1565 = vsub.f32 1.0, %v1560
        %v1566 = vmul.f32 %v1565, %v1564
        %v1567 = vmul.f32 %v1560, %v1458
        %v1568 = vadd.f32 %v1566, %v1567
        %v1569 = vpack.c.bf16 %v1568, %v1568
        %s1570 = scalar_lea.vmem %s256, 24
        %1571 = vst [vmem:[%s1570] sm:$0xf] %v1569
        %s1572 = scalar_lea.vmem [#allocation2], 168
        %v1573 = vld [vmem:[%s1572] sm:$0xff]
        %v1574 = vld [vmem:[%s1572 + $0x8] sm:$0xff]
        %v1575 = vld [vmem:[%s1572 + $0x10] sm:$0xff]
        %1576 = vmatprep.subr.bf16.mxu0 %v781
        %1577 = vmatpush1.bf16.msra.mxu0 %v780
        %1578 = vmatprep.subr.bf16.mxu0 %v778
        %1579 = vmatpush1.bf16.msra.mxu0 %v777
        %1580 = vmatprep.subr.bf16.mxu0 %v775
        %1581 = vmatpush1.bf16.msra.mxu0 %v774
        %1582 = vmatprep.subr.bf16.mxu0 %v772
        %1583 = vmatpush1.bf16.msra.mxu0 %v771
        %1584 = vmatprep.subr.bf16.mxu0 %v769
        %1585 = vmatpush1.bf16.msra.mxu0 %v768
        %1586 = vmatprep.subr.bf16.mxu0 %v766
        %1587 = vmatpush1.bf16.msra.mxu0 %v765
        %1588 = vmatprep.subr.bf16.mxu0 %v763
        %1589 = vmatpush1.bf16.msra.mxu0 %v762
        %1590 = vmatprep.subr.bf16.mxu0 %v760
        %1591 = vmatpush1.bf16.msra.mxu0 %v759
        %1592 = vmatprep.subr.bf16.mxu0 0
        %1593 = vmatpush2.bf16.msra.mxu0 0
        %1594 = vmatprep.subr.bf16.mxu0 0
        %1595 = vmatpush2.bf16.msra.mxu0 0
        %1596 = vmatprep.subr.bf16.mxu0 0
        %1597 = vmatpush2.bf16.msra.mxu0 0
        %1598 = vmatprep.subr.bf16.mxu0 0
        %1599 = vmatpush2.bf16.msra.mxu0 0
        %1600 = vmatprep.subr.bf16.mxu0 0
        %1601 = vmatpush2.bf16.msra.mxu0 0
        %1602 = vmatprep.subr.bf16.mxu0 0
        %1603 = vmatpush2.bf16.msra.mxu0 0
        %1604 = vmatprep.subr.bf16.mxu0 0
        %1605 = vmatpush2.bf16.msra.mxu0 0
        %1606 = vmatprep.subr.bf16.mxu0 0
        %1607 = vmatpush2.bf16.msra.mxu0 0
        %1608 = vmatprep.mubr.bf16.mxu0 0
        %1609 = vmatmul.mubr.bf16.gmra.mxu0 %v1569
        %v1610 = vpop.f32.mrf.mxu0
        %v1611 = vadd.f32 0.0, %v1610
        %v1612 = vpop.f32.mrf.mxu0
        %v1613 = vadd.f32 0.0, %v1612
        %v1614 = vpop.f32.mrf.mxu0
        %v1615 = vpop.f32.mrf.mxu0
        %1616 = vdwg.mxu0
        %1617 = vmatprep.subr.bf16.mxu0 0
        %1618 = vmatpush1.bf16.msra.mxu0 %v782
        %1619 = vmatprep.subr.bf16.mxu0 0
        %1620 = vmatpush1.bf16.msra.mxu0 %v779
        %1621 = vmatprep.subr.bf16.mxu0 0
        %1622 = vmatpush1.bf16.msra.mxu0 %v776
        %1623 = vmatprep.subr.bf16.mxu0 0
        %1624 = vmatpush1.bf16.msra.mxu0 %v773
        %1625 = vmatprep.subr.bf16.mxu0 0
        %1626 = vmatpush1.bf16.msra.mxu0 %v770
        %1627 = vmatprep.subr.bf16.mxu0 0
        %1628 = vmatpush1.bf16.msra.mxu0 %v767
        %1629 = vmatprep.subr.bf16.mxu0 0
        %1630 = vmatpush1.bf16.msra.mxu0 %v764
        %1631 = vmatprep.subr.bf16.mxu0 0
        %1632 = vmatpush1.bf16.msra.mxu0 %v761
        %1633 = vmatprep.subr.bf16.mxu0 0
        %1634 = vmatpush2.bf16.msra.mxu0 0
        %1635 = vmatprep.subr.bf16.mxu0 0
        %1636 = vmatpush2.bf16.msra.mxu0 0
        %1637 = vmatprep.subr.bf16.mxu0 0
        %1638 = vmatpush2.bf16.msra.mxu0 0
        %1639 = vmatprep.subr.bf16.mxu0 0
        %1640 = vmatpush2.bf16.msra.mxu0 0
        %1641 = vmatprep.subr.bf16.mxu0 0
        %1642 = vmatpush2.bf16.msra.mxu0 0
        %1643 = vmatprep.subr.bf16.mxu0 0
        %1644 = vmatpush2.bf16.msra.mxu0 0
        %1645 = vmatprep.subr.bf16.mxu0 0
        %1646 = vmatpush2.bf16.msra.mxu0 0
        %1647 = vmatprep.subr.bf16.mxu0 0
        %1648 = vmatpush2.bf16.msra.mxu0 0
        %1649 = vmatprep.mubr.bf16.mxu0 0
        %1650 = vmatmul.mubr.bf16.gmra.mxu0 %v1569
        %v1651 = vpop.f32.mrf.mxu0
        %v1652 = vadd.f32 0.0, %v1651
        %v1653 = vpop.f32.mrf.mxu0
        %v1654 = vpop.f32.mrf.mxu0
        %v1655 = vpop.f32.mrf.mxu0
        %1656 = vdwg.mxu0
        %v1657 = vadd.f32 %v1573, %v1611
        %v1658 = vxor.u32 %v1657, 2147483648
        %v1659 = vmul.f32 %v1658, 1.442695
        %v1660 = vpow.pop %v1659
        %v1661 = vadd.f32 %v1660, 1.0
        %v1662 = vrcp.pop %v1661
        %v1663 = vmul.f32 1.0, %v1662
        %v1664 = vadd.f32 %v1574, %v1613
        %v1665 = vxor.u32 %v1664, 2147483648
        %v1666 = vmul.f32 %v1665, 1.442695
        %v1667 = vpow.pop %v1666
        %v1668 = vadd.f32 %v1667, 1.0
        %v1669 = vrcp.pop %v1668
        %v1670 = vmul.f32 1.0, %v1669
        %v1671 = vadd.f32 %v1652, %v672
        %v1672 = vmul.f32 %v1663, %v1671
        %v1673 = vadd.f32 %v1575, %v1672
        %v1674 = vtanh.pop %v1673
        %v1675 = vsub.f32 1.0, %v1670
        %v1676 = vmul.f32 %v1675, %v1674
        %v1677 = vmul.f32 %v1670, %v1568
        %v1678 = vadd.f32 %v1676, %v1677
        %v1679 = vpack.c.bf16 %v1678, %v1678
        %s1680 = scalar_lea.vmem %s256, 28
        %1681 = vst [vmem:[%s1680] sm:$0xf] %v1679
        %1682 = vst [vmem:[#allocation3] sm:$0xff] %v1678
        %s1683 = smul.u32 8, %s18
        %p1684 = scmp.lt.s32.totalorder %s1683, 15
        %s1685 = scalar_select %p1684, %s1683, 15
        %s1686 = smul.addr %s1685, 4
        %s1687 = scalar_lea.vmem %s5, %s1686
        // Predicated region
        $region53: #{gru_model_forward.2} parent=39 // pred_check
          %p1688 = pneg %p146
        $region54: #{gru_model_forward.2} parent=39 // pred_check_branch
          %1690 = sbr.rel (%p1688) target = $region56
        $region55: #{gru_model_forward.2} parent=39 // pred_region
          %s1691 = smul.u32 8, %s18
        $region56: #{gru_model_forward.2} parent=39 // pred_fallthru
          _
      $region40: #{gru_model_forward.2} parent=5 // pred_fallthru
        _
      %p1692 = scmp.le.s32.totalorder 2, %s13
      // Predicated region
      $region57: #{gru_model_forward.2} parent=5 // pred_check
        %p1693 = pneg %p1692
      $region58: #{gru_model_forward.2} parent=5 // pred_check_branch
        %1695 = sbr.rel (%p1693) target = $region60
      $region59: #{gru_model_forward.2} parent=5 // pred_region
        %s1696 = ssub.s32 %s13, 2
        // Predicated region
        $region61: #{gru_model_forward.2} parent=59 // pred_check
          %p1697 = pneg %p152
        $region62: #{gru_model_forward.2} parent=59 // pred_check_branch
          %1699 = sbr.rel (%p1697) target = $region64
        $region63: #{gru_model_forward.2} parent=59 // pred_region
          %s1700 = smul.u32 8, %s19
          %p1701 = scmp.lt.s32.totalorder %s1700, 15
          %s1702 = scalar_select %p1701, %s1700, 15
          %s1703 = smul.addr %s1702, 4
          %s1704 = scalar_lea.vmem %s5, %s1703
        $region64: #{gru_model_forward.2} parent=59 // pred_fallthru
          _
      $region60: #{gru_model_forward.2} parent=5 // pred_fallthru
        _
    $region6: #{gru_model_forward.2} parent=1 // loop_footer
      %s17 = sadd.s32 1, %s13
    $region7: #{gru_model_forward.2} parent=1 // loop_footer_branch
      %12 = sbr.rel target = $region3
    $region8: #{gru_model_forward.2} parent=1 // loop_exit
      _
    %1705 = vsyncpa [#allocation5], 1
    %s1706 = scalar_lea.sflag [#allocation5], 1
    %1707 = vsyncpa %s1706, 1
    %1708 = vsyncpa [#allocation7], 1

</llo_original>
